<compile_context>
chip_gen: v5e
topology: v5e:2x2
jax: 0.10.0
libtpu: 0.0.40
codegen_flags: <defaults>
</compile_context>

<pallas_src>
import numpy as np
import jax
import jax.numpy as jnp
from jax import lax
from jax.experimental import pallas as pl
from jax.experimental.pallas import tpu as pltpu

C_IN = 192
C_OUT = 192
KSIZE = 3
STRIDE = 2
BN_EPS = 1e-3
NTAPS = KSIZE * KSIZE          # 9
K_FLAT = NTAPS * C_IN          # 1728 (contraction dim of the fused matmul)
C_CAT = C_OUT + C_IN           # 384 = 3 * 128 -> lane-dense output slab


def _round_up(x, m):
    return ((x + m - 1) // m) * m


def _block5a_kernel(p_ref, w_ref, scale_ref, bias_ref, out_ref):
    # p_ref:     (TM, 1728) bf16  im2col patches, tap-major then channel
    # w_ref:     (1728, 192) bf16 conv weights flattened in the same order
    # scale_ref: (1, 192) f32     folded BN scale = gamma / sqrt(var + eps)
    # bias_ref:  (1, 192) f32     folded BN bias  = beta - mean * scale
    # out_ref:   (TM, 384) f32    [:, :192] conv+BN+ReLU | [:, 192:] 3x3/2 maxpool
    acc = jnp.dot(p_ref[...], w_ref[...], preferred_element_type=jnp.float32)
    conv = jnp.maximum(acc * scale_ref[...] + bias_ref[...], 0.0)

    # Maxpool branch: max over the 9 contiguous 192-wide tap slices (bf16 max is exact).
    pool = p_ref[:, 0:C_IN]
    for t in range(1, NTAPS):  # static unroll; hides under the MXU matmul above
        pool = jnp.maximum(pool, p_ref[:, t * C_IN:(t + 1) * C_IN])

    out_ref[...] = jnp.concatenate(
        [conv, pool.astype(jnp.float32)], axis=-1).astype(out_ref.dtype)


def incept_block5a(x_nchw, w_hwio, gamma, beta, run_mean, run_var, *, tm=512):
    """x_nchw: (N, 192, H, W) float32. Returns (N, 384, Ho, Wo) float32."""
    N, C, H, W = x_nchw.shape
    assert C == C_IN
    Ho = (H - KSIZE) // STRIDE + 1
    Wo = (W - KSIZE) // STRIDE + 1
    M = N * Ho * Wo

    # --- glue: NCHW -> NHWC and strided 3x3 window extraction (im2col) ---
    x = jnp.transpose(x_nchw, (0, 2, 3, 1))  # (N, H, W, C)
    taps = []
    for kh in range(KSIZE):
        for kw in range(KSIZE):
            taps.append(x[:,
                          kh:kh + STRIDE * (Ho - 1) + 1:STRIDE,
                          kw:kw + STRIDE * (Wo - 1) + 1:STRIDE,
                          :])
    # (N, Ho, Wo, 9, C) -> (M, 9*C): tap-major then channel (must match w flatten order)
    patches = jnp.stack(taps, axis=3).reshape(M, K_FLAT)

    # --- row tiling: clamp tile to the problem size, pad M so any shape works ---
    tm_eff = _round_up(min(tm, _round_up(M, 128)), 8)
    M_pad = _round_up(M, tm_eff)
    if M_pad != M:
        patches = jnp.pad(patches, ((0, M_pad - M), (0, 0)))

    # bf16 operands, f32 accumulation in the kernel.
    patches = patches.astype(jnp.bfloat16)
    w = w_hwio.reshape(K_FLAT, C_OUT).astype(jnp.bfloat16)

    # --- fold BN into per-output-channel affine (inference semantics) ---
    scale = (gamma / jnp.sqrt(run_var + BN_EPS)).astype(jnp.float32).reshape(1, C_OUT)
    bias = (beta.astype(jnp.float32)
            - run_mean.astype(jnp.float32) * scale[0]).reshape(1, C_OUT)

    out = pl.pallas_call(
        _block5a_kernel,
        out_shape=jax.ShapeDtypeStruct((M_pad, C_CAT), jnp.float32),
        grid=(M_pad // tm_eff,),
        in_specs=[
            pl.BlockSpec((tm_eff, K_FLAT), lambda i: (i, 0)),
            pl.BlockSpec((K_FLAT, C_OUT), lambda i: (0, 0)),
            pl.BlockSpec((1, C_OUT), lambda i: (0, 0)),
            pl.BlockSpec((1, C_OUT), lambda i: (0, 0)),
        ],
        out_specs=pl.BlockSpec((tm_eff, C_CAT), lambda i: (i, 0)),
        compiler_params=pltpu.CompilerParams(
            dimension_semantics=("parallel",)),
    )(patches, w, scale, bias)

    # --- glue: drop pad rows, back to NCHW; channel order already = [conv | pool] ---
    out = out[:M].reshape(N, Ho, Wo, C_CAT)
    return jnp.transpose(out, (0, 3, 1, 2))


def _reference(x_nchw, w_hwio, gamma, beta, run_mean, run_var):
    """Pure-JAX reference (XLA conv / reduce_window) for correctness check."""
    x = jnp.transpose(x_nchw, (0, 2, 3, 1))
    y = lax.conv_general_dilated(
        x, w_hwio, window_strides=(STRIDE, STRIDE), padding='VALID',
        dimension_numbers=('NHWC', 'HWIO', 'NHWC'))
    y = (y - run_mean) / jnp.sqrt(run_var + BN_EPS) * gamma + beta
    y = jnp.maximum(y, 0.0)
    p = lax.reduce_window(x, -jnp.inf, lax.max,
                          (1, KSIZE, KSIZE, 1), (1, STRIDE, STRIDE, 1), 'VALID')
    return jnp.concatenate([jnp.transpose(y, (0, 3, 1, 2)),
                            jnp.transpose(p, (0, 3, 1, 2))], axis=1)


if __name__ == "__main__":
    key = jax.random.PRNGKey(0)
    kx, kw, kg, kb, km, kv = jax.random.split(key, 6)

    # Small spatial, but channels fixed at 192 by the module definition.
    N, H, W = 2, 9, 9
    x = jax.random.normal(kx, (N, C_IN, H, W), jnp.float32)

    # Deterministic synthetic parameters (conv weight stored HWIO).
    w_hwio = jax.random.normal(kw, (KSIZE, KSIZE, C_IN, C_OUT), jnp.float32) * 0.05
    gamma = jax.random.uniform(kg, (C_OUT,), jnp.float32, 0.5, 1.5)
    beta = jax.random.normal(kb, (C_OUT,), jnp.float32) * 0.1
    run_mean = jax.random.normal(km, (C_OUT,), jnp.float32) * 0.1
    run_var = jax.random.uniform(kv, (C_OUT,), jnp.float32, 0.5, 1.5)

    out = incept_block5a(x, w_hwio, gamma, beta, run_mean, run_var)
    out = jax.block_until_ready(out)

    ref = jax.block_until_ready(
        _reference(x, w_hwio, gamma, beta, run_mean, run_var))

    assert out.shape == (N, C_OUT + C_IN, 4, 4), out.shape
    # bf16 operands (f32 accumulation) -> loosened tolerance vs. the f32 reference.
    np.testing.assert_allclose(np.asarray(out), np.asarray(ref),
                               rtol=2e-2, atol=5e-2)
    print("KERNEL_OK")
</pallas_src>

<mosaic_0001>
module attributes {stable_mosaic.version = 11 : i64} {
  func.func @_block5a_kernel(%arg0: i32, %arg1: memref<128x1728xbf16, #tpu.memory_space<vmem>>, %arg2: memref<1728x192xbf16, #tpu.memory_space<vmem>>, %arg3: memref<1x192xf32, #tpu.memory_space<vmem>>, %arg4: memref<1x192xf32, #tpu.memory_space<vmem>>, %arg5: memref<128x384xf32, #tpu.memory_space<vmem>>) attributes {dimension_semantics = [#tpu.dimension_semantics<parallel>], iteration_bounds = array<i64: 1>, scalar_prefetch = 0 : i64, scratch_operands = 0 : i64, tpu.core_type = #tpu.core_type<tc>, window_params = [{transform_indices = @transform_0, window_bounds = array<i64: 128, 1728>}, {pipeline_mode = #tpu.pipeline_mode<synchronous>, transform_indices = @transform_1, window_bounds = array<i64: 1728, 192>}, {pipeline_mode = #tpu.pipeline_mode<synchronous>, transform_indices = @transform_2, window_bounds = array<i64: 1, 192>}, {pipeline_mode = #tpu.pipeline_mode<synchronous>, transform_indices = @transform_3, window_bounds = array<i64: 1, 192>}, {transform_indices = @transform_4, window_bounds = array<i64: 128, 384>}]} {
    %c0 = arith.constant 0 : index
    %c0_0 = arith.constant 0 : index
    %0 = vector.load %arg1[%c0, %c0_0] : memref<128x1728xbf16, #tpu.memory_space<vmem>>, vector<128x1728xbf16>
    %c0_1 = arith.constant 0 : index
    %c0_2 = arith.constant 0 : index
    %1 = vector.load %arg2[%c0_1, %c0_2] : memref<1728x192xbf16, #tpu.memory_space<vmem>>, vector<1728x192xbf16>
    %cst = arith.constant dense<0.000000e+00> : vector<128x192xf32>
    %2 = tpu.matmul %0, %1, %cst {dimension_numbers = #tpu.dot_dimension_numbers<[1], [0], [0], [1], [0, 0, 1, 1], [], []>} : vector<128x1728xbf16>, vector<1728x192xbf16>, vector<128x192xf32> -> vector<128x192xf32>
    %c0_3 = arith.constant 0 : index
    %c0_4 = arith.constant 0 : index
    %3 = vector.load %arg3[%c0_3, %c0_4] : memref<1x192xf32, #tpu.memory_space<vmem>>, vector<1x192xf32>
    %4 = vector.broadcast %3 : vector<1x192xf32> to vector<128x192xf32>
    %5 = arith.mulf %2, %4 : vector<128x192xf32>
    %c0_5 = arith.constant 0 : index
    %c0_6 = arith.constant 0 : index
    %6 = vector.load %arg4[%c0_5, %c0_6] : memref<1x192xf32, #tpu.memory_space<vmem>>, vector<1x192xf32>
    %7 = vector.broadcast %6 : vector<1x192xf32> to vector<128x192xf32>
    %8 = arith.addf %5, %7 : vector<128x192xf32>
    %cst_7 = arith.constant 0.000000e+00 : f32
    %9 = vector.broadcast %cst_7 : f32 to vector<128x192xf32>
    %10 = arith.maximumf %8, %9 : vector<128x192xf32>
    %c0_8 = arith.constant 0 : index
    %c0_9 = arith.constant 0 : index
    %11 = vector.load %arg1[%c0_8, %c0_9] : memref<128x1728xbf16, #tpu.memory_space<vmem>>, vector<128x192xbf16>
    %c0_10 = arith.constant 0 : index
    %c192 = arith.constant 192 : index
    %12 = vector.load %arg1[%c0_10, %c192] : memref<128x1728xbf16, #tpu.memory_space<vmem>>, vector<128x192xbf16>
    %13 = arith.maximumf %11, %12 : vector<128x192xbf16>
    %c0_11 = arith.constant 0 : index
    %c384 = arith.constant 384 : index
    %14 = vector.load %arg1[%c0_11, %c384] : memref<128x1728xbf16, #tpu.memory_space<vmem>>, vector<128x192xbf16>
    %15 = arith.maximumf %13, %14 : vector<128x192xbf16>
    %c0_12 = arith.constant 0 : index
    %c576 = arith.constant 576 : index
    %16 = vector.load %arg1[%c0_12, %c576] : memref<128x1728xbf16, #tpu.memory_space<vmem>>, vector<128x192xbf16>
    %17 = arith.maximumf %15, %16 : vector<128x192xbf16>
    %c0_13 = arith.constant 0 : index
    %c768 = arith.constant 768 : index
    %18 = vector.load %arg1[%c0_13, %c768] : memref<128x1728xbf16, #tpu.memory_space<vmem>>, vector<128x192xbf16>
    %19 = arith.maximumf %17, %18 : vector<128x192xbf16>
    %c0_14 = arith.constant 0 : index
    %c960 = arith.constant 960 : index
    %20 = vector.load %arg1[%c0_14, %c960] : memref<128x1728xbf16, #tpu.memory_space<vmem>>, vector<128x192xbf16>
    %21 = arith.maximumf %19, %20 : vector<128x192xbf16>
    %c0_15 = arith.constant 0 : index
    %c1152 = arith.constant 1152 : index
    %22 = vector.load %arg1[%c0_15, %c1152] : memref<128x1728xbf16, #tpu.memory_space<vmem>>, vector<128x192xbf16>
    %23 = arith.maximumf %21, %22 : vector<128x192xbf16>
    %c0_16 = arith.constant 0 : index
    %c1344 = arith.constant 1344 : index
    %24 = vector.load %arg1[%c0_16, %c1344] : memref<128x1728xbf16, #tpu.memory_space<vmem>>, vector<128x192xbf16>
    %25 = arith.maximumf %23, %24 : vector<128x192xbf16>
    %c0_17 = arith.constant 0 : index
    %c1536 = arith.constant 1536 : index
    %26 = vector.load %arg1[%c0_17, %c1536] : memref<128x1728xbf16, #tpu.memory_space<vmem>>, vector<128x192xbf16>
    %27 = arith.maximumf %25, %26 : vector<128x192xbf16>
    %28 = arith.extf %27 : vector<128x192xbf16> to vector<128x192xf32>
    %29 = tpu.concatenate %10, %28 in 1 : vector<128x192xf32>, vector<128x192xf32> -> vector<128x384xf32>
    %c0_18 = arith.constant 0 : index
    %c0_19 = arith.constant 0 : index
    %30 = vector.load %arg5[%c0_18, %c0_19] : memref<128x384xf32, #tpu.memory_space<vmem>>, vector<128x384xf32>
    tpu.vector_store %arg5[%c0_18, %c0_19], %29 {strides = array<i32>} : memref<128x384xf32, #tpu.memory_space<vmem>>, vector<128x384xf32>,
    return
  }
  func.func @transform_0(%arg0: i32) -> (i32, i32) {
    %c0_i32 = arith.constant 0 : i32
    %c0_i32_0 = arith.constant 0 : i32
    return %arg0, %c0_i32 : i32, i32
  }
  func.func @transform_1(%arg0: i32) -> (i32, i32) {
    %c0_i32 = arith.constant 0 : i32
    %c0_i32_0 = arith.constant 0 : i32
    %c0_i32_1 = arith.constant 0 : i32
    return %c0_i32, %c0_i32_0 : i32, i32
  }
  func.func @transform_2(%arg0: i32) -> (i32, i32) {
    %c0_i32 = arith.constant 0 : i32
    %c0_i32_0 = arith.constant 0 : i32
    %c0_i32_1 = arith.constant 0 : i32
    return %c0_i32, %c0_i32_0 : i32, i32
  }
  func.func @transform_3(%arg0: i32) -> (i32, i32) {
    %c0_i32 = arith.constant 0 : i32
    %c0_i32_0 = arith.constant 0 : i32
    %c0_i32_1 = arith.constant 0 : i32
    return %c0_i32, %c0_i32_0 : i32, i32
  }
  func.func @transform_4(%arg0: i32) -> (i32, i32) {
    %c0_i32 = arith.constant 0 : i32
    %c0_i32_0 = arith.constant 0 : i32
    return %arg0, %c0_i32 : i32, i32
  }
}

</mosaic_0001>

<llo_original>
// kernel: tpu_custom_call.1
$region0: #{tpu_custom_call.1}
  #allocation0 [shape = 'u32[]', space=smem, size = 0x4, offset = 0x4, fixed_abs, tag = 'smem constant byte address 0x4 - core index']
  #allocation1 [shape = 'u32[72,128]{1,0:T(1,128)}', space=vmem, size = 0x9000, scoped, tag = 'internal scratch']
  %s0 = inlined_call_operand.vmem [shape: bf16[128,1728], index: 0, kind: input, shape index: {}]
  %s1 = inlined_call_operand.vmem [shape: bf16[1728,192], index: 1, kind: input, shape index: {}]
  %s2 = inlined_call_operand.vmem [shape: f32[1,192], index: 2, kind: input, shape index: {}]
  %s3 = inlined_call_operand.vmem [shape: f32[1,192], index: 3, kind: input, shape index: {}]
  %s4 = inlined_call_operand.hbm [shape: f32[128,384], index: 4, kind: output, shape index: {}]
  %s5 = sld [smem:[#allocation0]]
  $region26: #{tpu_custom_call.1} parent=0
    _
  %s7 = ssub.s32 1, %s5
  %s8 = scalar_select 0, %s7, %s5
  $region1: #{tpu_custom_call.1} parent=0
    #allocation2 [shape = 'u8[196608]{0}', space=vmem, size = 0x30000, scoped, tag = 'output window, operand 0, single buffered']
    #allocation3 [shape = 's32[1]{0}', space=sflag, size = 0x4, scoped, tag = 'scoped memory for tpu_custom_call.1']
    %9 = vsyncpa [#allocation3], 0
    // Predicated region
    $region2: #{tpu_custom_call.1} parent=1 // pred_check
      _
    $region3: #{tpu_custom_call.1} parent=1 // pred_check_branch
      %11 = sbr.rel (0) target = $region5
    $region4: #{tpu_custom_call.1} parent=1 // pred_region
      _
    $region5: #{tpu_custom_call.1} parent=1 // pred_fallthru
      _
    // Predicated region
    $region6: #{tpu_custom_call.1} parent=1 // pred_check
      _
    $region7: #{tpu_custom_call.1} parent=1 // pred_check_branch
      %13 = sbr.rel (0) target = $region9
    $region8: #{tpu_custom_call.1} parent=1 // pred_region
      _
    $region9: #{tpu_custom_call.1} parent=1 // pred_fallthru
      _
    // Predicated region
    $region10: #{tpu_custom_call.1} parent=1 // pred_check
      _
    $region11: #{tpu_custom_call.1} parent=1 // pred_check_branch
      %15 = sbr.rel (0) target = $region13
    $region12: #{tpu_custom_call.1} parent=1 // pred_region
      _
    $region13: #{tpu_custom_call.1} parent=1 // pred_fallthru
      _
    // Predicated region
    $region14: #{tpu_custom_call.1} parent=1 // pred_check
      _
    $region15: #{tpu_custom_call.1} parent=1 // pred_check_branch
      %17 = sbr.rel (0) target = $region17
    $region16: #{tpu_custom_call.1} parent=1 // pred_region
      _
    $region17: #{tpu_custom_call.1} parent=1 // pred_fallthru
      _
    %v19 = vld [vmem:[%s0] sm:$0xff]
    %v20 = vld [vmem:[%s0 + $0x8] sm:$0xff]
    %v21 = vld [vmem:[%s0 + $0x10] sm:$0xff]
    %v22 = vld [vmem:[%s0 + $0x18] sm:$0xff]
    %v23 = vld [vmem:[%s0 + $0x20] sm:$0xff]
    %v24 = vld [vmem:[%s0 + $0x28] sm:$0xff]
    %v25 = vld [vmem:[%s0 + $0x30] sm:$0xff]
    %v26 = vld [vmem:[%s0 + $0x38] sm:$0xff]
    %v27 = vld [vmem:[%s0 + $0x40] sm:$0xff]
    %v28 = vld [vmem:[%s0 + $0x48] sm:$0xff]
    %v29 = vld [vmem:[%s0 + $0x50] sm:$0xff]
    %v30 = vld [vmem:[%s0 + $0x58] sm:$0xff]
    %v31 = vld [vmem:[%s0 + $0x60] sm:$0xff]
    %v32 = vld [vmem:[%s0 + $0x68] sm:$0xff]
    %v33 = vld [vmem:[%s0 + $0x70] sm:$0xff]
    %v34 = vld [vmem:[%s0 + $0x78] sm:$0xff]
    %v35 = vld [vmem:[%s0 + $0x80] sm:$0xff]
    %v36 = vld [vmem:[%s0 + $0x88] sm:$0xff]
    %v37 = vld [vmem:[%s0 + $0x90] sm:$0xff]
    %v38 = vld [vmem:[%s0 + $0x98] sm:$0xff]
    %v39 = vld [vmem:[%s0 + $0xa0] sm:$0xff]
    %v40 = vld [vmem:[%s0 + $0xa8] sm:$0xff]
    %v41 = vld [vmem:[%s0 + $0xb0] sm:$0xff]
    %v42 = vld [vmem:[%s0 + $0xb8] sm:$0xff]
    %v43 = vld [vmem:[%s0 + $0xc0] sm:$0xff]
    %v44 = vld [vmem:[%s0 + $0xc8] sm:$0xff]
    %v45 = vld [vmem:[%s0 + $0xd0] sm:$0xff]
    %v46 = vld [vmem:[%s0 + $0xd8] sm:$0xff]
    %v47 = vld [vmem:[%s0 + $0xe0] sm:$0xff]
    %v48 = vld [vmem:[%s0 + $0xe8] sm:$0xff]
    %v49 = vld [vmem:[%s0 + $0xf0] sm:$0xff]
    %v50 = vld [vmem:[%s0 + $0xf8] sm:$0xff]
    %v51 = vld [vmem:[%s0 + $0x100] sm:$0xff]
    %v52 = vld [vmem:[%s0 + $0x108] sm:$0xff]
    %v53 = vld [vmem:[%s0 + $0x110] sm:$0xff]
    %v54 = vld [vmem:[%s0 + $0x118] sm:$0xff]
    %v55 = vld [vmem:[%s0 + $0x120] sm:$0xff]
    %v56 = vld [vmem:[%s0 + $0x128] sm:$0xff]
    %v57 = vld [vmem:[%s0 + $0x130] sm:$0xff]
    %v58 = vld [vmem:[%s0 + $0x138] sm:$0xff]
    %v59 = vld [vmem:[%s0 + $0x140] sm:$0xff]
    %v60 = vld [vmem:[%s0 + $0x148] sm:$0xff]
    %v61 = vld [vmem:[%s0 + $0x150] sm:$0xff]
    %v62 = vld [vmem:[%s0 + $0x158] sm:$0xff]
    %v63 = vld [vmem:[%s0 + $0x160] sm:$0xff]
    %v64 = vld [vmem:[%s0 + $0x168] sm:$0xff]
    %v65 = vld [vmem:[%s0 + $0x170] sm:$0xff]
    %v66 = vld [vmem:[%s0 + $0x178] sm:$0xff]
    %v67 = vld [vmem:[%s0 + $0x180] sm:$0xff]
    %v68 = vld [vmem:[%s0 + $0x188] sm:$0xff]
    %v69 = vld [vmem:[%s0 + $0x190] sm:$0xff]
    %v70 = vld [vmem:[%s0 + $0x198] sm:$0xff]
    %v71 = vld [vmem:[%s0 + $0x1a0] sm:$0xff]
    %v72 = vld [vmem:[%s0 + $0x1a8] sm:$0xff]
    %v73 = vld [vmem:[%s0 + $0x1b0] sm:$0xff]
    %v74 = vld [vmem:[%s0 + $0x1b8] sm:$0xff]
    %v75 = vld [vmem:[%s0 + $0x1c0] sm:$0xff]
    %v76 = vld [vmem:[%s0 + $0x1c8] sm:$0xff]
    %v77 = vld [vmem:[%s0 + $0x1d0] sm:$0xff]
    %v78 = vld [vmem:[%s0 + $0x1d8] sm:$0xff]
    %v79 = vld [vmem:[%s0 + $0x1e0] sm:$0xff]
    %v80 = vld [vmem:[%s0 + $0x1e8] sm:$0xff]
    %v81 = vld [vmem:[%s0 + $0x1f0] sm:$0xff]
    %v82 = vld [vmem:[%s0 + $0x1f8] sm:$0xff]
    %v83 = vld [vmem:[%s0 + $0x200] sm:$0xff]
    %v84 = vld [vmem:[%s0 + $0x208] sm:$0xff]
    %v85 = vld [vmem:[%s0 + $0x210] sm:$0xff]
    %v86 = vld [vmem:[%s0 + $0x218] sm:$0xff]
    %v87 = vld [vmem:[%s0 + $0x220] sm:$0xff]
    %v88 = vld [vmem:[%s0 + $0x228] sm:$0xff]
    %v89 = vld [vmem:[%s0 + $0x230] sm:$0xff]
    %v90 = vld [vmem:[%s0 + $0x238] sm:$0xff]
    %v91 = vld [vmem:[%s0 + $0x240] sm:$0xff]
    %v92 = vld [vmem:[%s0 + $0x248] sm:$0xff]
    %v93 = vld [vmem:[%s0 + $0x250] sm:$0xff]
    %v94 = vld [vmem:[%s0 + $0x258] sm:$0xff]
    %v95 = vld [vmem:[%s0 + $0x260] sm:$0xff]
    %v96 = vld [vmem:[%s0 + $0x268] sm:$0xff]
    %v97 = vld [vmem:[%s0 + $0x270] sm:$0xff]
    %v98 = vld [vmem:[%s0 + $0x278] sm:$0xff]
    %v99 = vld [vmem:[%s0 + $0x280] sm:$0xff]
    %v100 = vld [vmem:[%s0 + $0x288] sm:$0xff]
    %v101 = vld [vmem:[%s0 + $0x290] sm:$0xff]
    %v102 = vld [vmem:[%s0 + $0x298] sm:$0xff]
    %v103 = vld [vmem:[%s0 + $0x2a0] sm:$0xff]
    %v104 = vld [vmem:[%s0 + $0x2a8] sm:$0xff]
    %v105 = vld [vmem:[%s0 + $0x2b0] sm:$0xff]
    %v106 = vld [vmem:[%s0 + $0x2b8] sm:$0xff]
    %v107 = vld [vmem:[%s0 + $0x2c0] sm:$0xff]
    %v108 = vld [vmem:[%s0 + $0x2c8] sm:$0xff]
    %v109 = vld [vmem:[%s0 + $0x2d0] sm:$0xff]
    %v110 = vld [vmem:[%s0 + $0x2d8] sm:$0xff]
    %v111 = vld [vmem:[%s0 + $0x2e0] sm:$0xff]
    %v112 = vld [vmem:[%s0 + $0x2e8] sm:$0xff]
    %v113 = vld [vmem:[%s0 + $0x2f0] sm:$0xff]
    %v114 = vld [vmem:[%s0 + $0x2f8] sm:$0xff]
    %v115 = vld [vmem:[%s0 + $0x300] sm:$0xff]
    %v116 = vld [vmem:[%s0 + $0x308] sm:$0xff]
    %v117 = vld [vmem:[%s0 + $0x310] sm:$0xff]
    %v118 = vld [vmem:[%s0 + $0x318] sm:$0xff]
    %v119 = vld [vmem:[%s0 + $0x320] sm:$0xff]
    %v120 = vld [vmem:[%s0 + $0x328] sm:$0xff]
    %v121 = vld [vmem:[%s0 + $0x330] sm:$0xff]
    %v122 = vld [vmem:[%s0 + $0x338] sm:$0xff]
    %v123 = vld [vmem:[%s0 + $0x340] sm:$0xff]
    %v124 = vld [vmem:[%s0 + $0x348] sm:$0xff]
    %v125 = vld [vmem:[%s0 + $0x350] sm:$0xff]
    %v126 = vld [vmem:[%s0 + $0x358] sm:$0xff]
    %v127 = vld [vmem:[%s0 + $0x360] sm:$0xff]
    %v128 = vld [vmem:[%s0 + $0x368] sm:$0xff]
    %v129 = vld [vmem:[%s0 + $0x370] sm:$0xff]
    %v130 = vld [vmem:[%s0 + $0x378] sm:$0xff]
    %v131 = vld [vmem:[%s1] sm:$0xff]
    %v132 = vld [vmem:[%s1 + $0x8] sm:$0xff]
    %v133 = vld [vmem:[%s1 + $0x10] sm:$0xff]
    %v134 = vld [vmem:[%s1 + $0x18] sm:$0xff]
    %v135 = vld [vmem:[%s1 + $0x20] sm:$0xff]
    %v136 = vld [vmem:[%s1 + $0x28] sm:$0xff]
    %v137 = vld [vmem:[%s1 + $0x30] sm:$0xff]
    %v138 = vld [vmem:[%s1 + $0x38] sm:$0xff]
    %v139 = vld [vmem:[%s1 + $0x40] sm:$0xff]
    %v140 = vld [vmem:[%s1 + $0x48] sm:$0xff]
    %v141 = vld [vmem:[%s1 + $0x50] sm:$0xff]
    %v142 = vld [vmem:[%s1 + $0x58] sm:$0xff]
    %v143 = vld [vmem:[%s1 + $0x60] sm:$0xff]
    %v144 = vld [vmem:[%s1 + $0x68] sm:$0xff]
    %v145 = vld [vmem:[%s1 + $0x70] sm:$0xff]
    %v146 = vld [vmem:[%s1 + $0x78] sm:$0xff]
    %v147 = vld [vmem:[%s1 + $0x80] sm:$0xff]
    %v148 = vld [vmem:[%s1 + $0x88] sm:$0xff]
    %v149 = vld [vmem:[%s1 + $0x90] sm:$0xff]
    %v150 = vld [vmem:[%s1 + $0x98] sm:$0xff]
    %v151 = vld [vmem:[%s1 + $0xa0] sm:$0xff]
    %v152 = vld [vmem:[%s1 + $0xa8] sm:$0xff]
    %v153 = vld [vmem:[%s1 + $0xb0] sm:$0xff]
    %v154 = vld [vmem:[%s1 + $0xb8] sm:$0xff]
    %v155 = vld [vmem:[%s1 + $0xc0] sm:$0xff]
    %v156 = vld [vmem:[%s1 + $0xc8] sm:$0xff]
    %v157 = vld [vmem:[%s1 + $0xd0] sm:$0xff]
    %v158 = vld [vmem:[%s1 + $0xd8] sm:$0xff]
    %v159 = vld [vmem:[%s1 + $0xe0] sm:$0xff]
    %v160 = vld [vmem:[%s1 + $0xe8] sm:$0xff]
    %v161 = vld [vmem:[%s1 + $0xf0] sm:$0xff]
    %v162 = vld [vmem:[%s1 + $0xf8] sm:$0xff]
    %v163 = vld [vmem:[%s1 + $0x100] sm:$0xff]
    %v164 = vld [vmem:[%s1 + $0x108] sm:$0xff]
    %v165 = vld [vmem:[%s1 + $0x110] sm:$0xff]
    %v166 = vld [vmem:[%s1 + $0x118] sm:$0xff]
    %v167 = vld [vmem:[%s1 + $0x120] sm:$0xff]
    %v168 = vld [vmem:[%s1 + $0x128] sm:$0xff]
    %v169 = vld [vmem:[%s1 + $0x130] sm:$0xff]
    %v170 = vld [vmem:[%s1 + $0x138] sm:$0xff]
    %v171 = vld [vmem:[%s1 + $0x140] sm:$0xff]
    %v172 = vld [vmem:[%s1 + $0x148] sm:$0xff]
    %v173 = vld [vmem:[%s1 + $0x150] sm:$0xff]
    %v174 = vld [vmem:[%s1 + $0x158] sm:$0xff]
    %v175 = vld [vmem:[%s1 + $0x160] sm:$0xff]
    %v176 = vld [vmem:[%s1 + $0x168] sm:$0xff]
    %v177 = vld [vmem:[%s1 + $0x170] sm:$0xff]
    %v178 = vld [vmem:[%s1 + $0x178] sm:$0xff]
    %v179 = vld [vmem:[%s1 + $0x180] sm:$0xff]
    %v180 = vld [vmem:[%s1 + $0x188] sm:$0xff]
    %v181 = vld [vmem:[%s1 + $0x190] sm:$0xff]
    %v182 = vld [vmem:[%s1 + $0x198] sm:$0xff]
    %v183 = vld [vmem:[%s1 + $0x1a0] sm:$0xff]
    %v184 = vld [vmem:[%s1 + $0x1a8] sm:$0xff]
    %v185 = vld [vmem:[%s1 + $0x1b0] sm:$0xff]
    %v186 = vld [vmem:[%s1 + $0x1b8] sm:$0xff]
    %v187 = vld [vmem:[%s1 + $0x1c0] sm:$0xff]
    %v188 = vld [vmem:[%s1 + $0x1c8] sm:$0xff]
    %v189 = vld [vmem:[%s1 + $0x1d0] sm:$0xff]
    %v190 = vld [vmem:[%s1 + $0x1d8] sm:$0xff]
    %v191 = vld [vmem:[%s1 + $0x1e0] sm:$0xff]
    %v192 = vld [vmem:[%s1 + $0x1e8] sm:$0xff]
    %v193 = vld [vmem:[%s1 + $0x1f0] sm:$0xff]
    %v194 = vld [vmem:[%s1 + $0x1f8] sm:$0xff]
    %v195 = vld [vmem:[%s1 + $0x200] sm:$0xff]
    %v196 = vld [vmem:[%s1 + $0x208] sm:$0xff]
    %v197 = vld [vmem:[%s1 + $0x210] sm:$0xff]
    %v198 = vld [vmem:[%s1 + $0x218] sm:$0xff]
    %v199 = vld [vmem:[%s1 + $0x220] sm:$0xff]
    %v200 = vld [vmem:[%s1 + $0x228] sm:$0xff]
    %v201 = vld [vmem:[%s1 + $0x230] sm:$0xff]
    %v202 = vld [vmem:[%s1 + $0x238] sm:$0xff]
    %v203 = vld [vmem:[%s1 + $0x240] sm:$0xff]
    %v204 = vld [vmem:[%s1 + $0x248] sm:$0xff]
    %v205 = vld [vmem:[%s1 + $0x250] sm:$0xff]
    %v206 = vld [vmem:[%s1 + $0x258] sm:$0xff]
    %v207 = vld [vmem:[%s1 + $0x260] sm:$0xff]
    %v208 = vld [vmem:[%s1 + $0x268] sm:$0xff]
    %v209 = vld [vmem:[%s1 + $0x270] sm:$0xff]
    %v210 = vld [vmem:[%s1 + $0x278] sm:$0xff]
    %v211 = vld [vmem:[%s1 + $0x280] sm:$0xff]
    %v212 = vld [vmem:[%s1 + $0x288] sm:$0xff]
    %v213 = vld [vmem:[%s1 + $0x290] sm:$0xff]
    %v214 = vld [vmem:[%s1 + $0x298] sm:$0xff]
    %v215 = vld [vmem:[%s1 + $0x2a0] sm:$0xff]
    %v216 = vld [vmem:[%s1 + $0x2a8] sm:$0xff]
    %v217 = vld [vmem:[%s1 + $0x2b0] sm:$0xff]
    %v218 = vld [vmem:[%s1 + $0x2b8] sm:$0xff]
    %v219 = vld [vmem:[%s1 + $0x2c0] sm:$0xff]
    %v220 = vld [vmem:[%s1 + $0x2c8] sm:$0xff]
    %v221 = vld [vmem:[%s1 + $0x2d0] sm:$0xff]
    %v222 = vld [vmem:[%s1 + $0x2d8] sm:$0xff]
    %v223 = vld [vmem:[%s1 + $0x2e0] sm:$0xff]
    %v224 = vld [vmem:[%s1 + $0x2e8] sm:$0xff]
    %v225 = vld [vmem:[%s1 + $0x2f0] sm:$0xff]
    %v226 = vld [vmem:[%s1 + $0x2f8] sm:$0xff]
    %v227 = vld [vmem:[%s1 + $0x300] sm:$0xff]
    %v228 = vld [vmem:[%s1 + $0x308] sm:$0xff]
    %v229 = vld [vmem:[%s1 + $0x310] sm:$0xff]
    %v230 = vld [vmem:[%s1 + $0x318] sm:$0xff]
    %v231 = vld [vmem:[%s1 + $0x320] sm:$0xff]
    %v232 = vld [vmem:[%s1 + $0x328] sm:$0xff]
    %v233 = vld [vmem:[%s1 + $0x330] sm:$0xff]
    %v234 = vld [vmem:[%s1 + $0x338] sm:$0xff]
    %v235 = vld [vmem:[%s1 + $0x340] sm:$0xff]
    %v236 = vld [vmem:[%s1 + $0x348] sm:$0xff]
    %v237 = vld [vmem:[%s1 + $0x350] sm:$0xff]
    %v238 = vld [vmem:[%s1 + $0x358] sm:$0xff]
    %v239 = vld [vmem:[%s1 + $0x360] sm:$0xff]
    %v240 = vld [vmem:[%s1 + $0x368] sm:$0xff]
    %v241 = vld [vmem:[%s1 + $0x370] sm:$0xff]
    %v242 = vld [vmem:[%s1 + $0x378] sm:$0xff]
    %v243 = vld [vmem:[%s1 + $0x380] sm:$0xff]
    %v244 = vld [vmem:[%s1 + $0x388] sm:$0xff]
    %v245 = vld [vmem:[%s1 + $0x390] sm:$0xff]
    %v246 = vld [vmem:[%s1 + $0x398] sm:$0xff]
    %v247 = vld [vmem:[%s1 + $0x3a0] sm:$0xff]
    %v248 = vld [vmem:[%s1 + $0x3a8] sm:$0xff]
    %v249 = vld [vmem:[%s1 + $0x3b0] sm:$0xff]
    %v250 = vld [vmem:[%s1 + $0x3b8] sm:$0xff]
    %v251 = vld [vmem:[%s1 + $0x3c0] sm:$0xff]
    %v252 = vld [vmem:[%s1 + $0x3c8] sm:$0xff]
    %v253 = vld [vmem:[%s1 + $0x3d0] sm:$0xff]
    %v254 = vld [vmem:[%s1 + $0x3d8] sm:$0xff]
    %v255 = vld [vmem:[%s1 + $0x3e0] sm:$0xff]
    %v256 = vld [vmem:[%s1 + $0x3e8] sm:$0xff]
    %v257 = vld [vmem:[%s1 + $0x3f0] sm:$0xff]
    %v258 = vld [vmem:[%s1 + $0x3f8] sm:$0xff]
    %v259 = vld [vmem:[%s1 + $0x400] sm:$0xff]
    %v260 = vld [vmem:[%s1 + $0x408] sm:$0xff]
    %v261 = vld [vmem:[%s1 + $0x410] sm:$0xff]
    %v262 = vld [vmem:[%s1 + $0x418] sm:$0xff]
    %v263 = vld [vmem:[%s1 + $0x420] sm:$0xff]
    %v264 = vld [vmem:[%s1 + $0x428] sm:$0xff]
    %v265 = vld [vmem:[%s1 + $0x430] sm:$0xff]
    %v266 = vld [vmem:[%s1 + $0x438] sm:$0xff]
    %v267 = vld [vmem:[%s1 + $0x440] sm:$0xff]
    %v268 = vld [vmem:[%s1 + $0x448] sm:$0xff]
    %v269 = vld [vmem:[%s1 + $0x450] sm:$0xff]
    %v270 = vld [vmem:[%s1 + $0x458] sm:$0xff]
    %v271 = vld [vmem:[%s1 + $0x460] sm:$0xff]
    %v272 = vld [vmem:[%s1 + $0x468] sm:$0xff]
    %v273 = vld [vmem:[%s1 + $0x470] sm:$0xff]
    %v274 = vld [vmem:[%s1 + $0x478] sm:$0xff]
    %v275 = vld [vmem:[%s1 + $0x480] sm:$0xff]
    %v276 = vld [vmem:[%s1 + $0x488] sm:$0xff]
    %v277 = vld [vmem:[%s1 + $0x490] sm:$0xff]
    %v278 = vld [vmem:[%s1 + $0x498] sm:$0xff]
    %v279 = vld [vmem:[%s1 + $0x4a0] sm:$0xff]
    %v280 = vld [vmem:[%s1 + $0x4a8] sm:$0xff]
    %v281 = vld [vmem:[%s1 + $0x4b0] sm:$0xff]
    %v282 = vld [vmem:[%s1 + $0x4b8] sm:$0xff]
    %v283 = vld [vmem:[%s1 + $0x4c0] sm:$0xff]
    %v284 = vld [vmem:[%s1 + $0x4c8] sm:$0xff]
    %v285 = vld [vmem:[%s1 + $0x4d0] sm:$0xff]
    %v286 = vld [vmem:[%s1 + $0x4d8] sm:$0xff]
    %v287 = vld [vmem:[%s1 + $0x4e0] sm:$0xff]
    %v288 = vld [vmem:[%s1 + $0x4e8] sm:$0xff]
    %v289 = vld [vmem:[%s1 + $0x4f0] sm:$0xff]
    %v290 = vld [vmem:[%s1 + $0x4f8] sm:$0xff]
    %v291 = vld [vmem:[%s1 + $0x500] sm:$0xff]
    %v292 = vld [vmem:[%s1 + $0x508] sm:$0xff]
    %v293 = vld [vmem:[%s1 + $0x510] sm:$0xff]
    %v294 = vld [vmem:[%s1 + $0x518] sm:$0xff]
    %v295 = vld [vmem:[%s1 + $0x520] sm:$0xff]
    %v296 = vld [vmem:[%s1 + $0x528] sm:$0xff]
    %v297 = vld [vmem:[%s1 + $0x530] sm:$0xff]
    %v298 = vld [vmem:[%s1 + $0x538] sm:$0xff]
    %v299 = vld [vmem:[%s1 + $0x540] sm:$0xff]
    %v300 = vld [vmem:[%s1 + $0x548] sm:$0xff]
    %v301 = vld [vmem:[%s1 + $0x550] sm:$0xff]
    %v302 = vld [vmem:[%s1 + $0x558] sm:$0xff]
    %v303 = vld [vmem:[%s1 + $0x560] sm:$0xff]
    %v304 = vld [vmem:[%s1 + $0x568] sm:$0xff]
    %v305 = vld [vmem:[%s1 + $0x570] sm:$0xff]
    %v306 = vld [vmem:[%s1 + $0x578] sm:$0xff]
    %v307 = vld [vmem:[%s1 + $0x580] sm:$0xff]
    %v308 = vld [vmem:[%s1 + $0x588] sm:$0xff]
    %v309 = vld [vmem:[%s1 + $0x590] sm:$0xff]
    %v310 = vld [vmem:[%s1 + $0x598] sm:$0xff]
    %v311 = vld [vmem:[%s1 + $0x5a0] sm:$0xff]
    %v312 = vld [vmem:[%s1 + $0x5a8] sm:$0xff]
    %v313 = vld [vmem:[%s1 + $0x5b0] sm:$0xff]
    %v314 = vld [vmem:[%s1 + $0x5b8] sm:$0xff]
    %v315 = vld [vmem:[%s1 + $0x5c0] sm:$0xff]
    %v316 = vld [vmem:[%s1 + $0x5c8] sm:$0xff]
    %v317 = vld [vmem:[%s1 + $0x5d0] sm:$0xff]
    %v318 = vld [vmem:[%s1 + $0x5d8] sm:$0xff]
    %v319 = vld [vmem:[%s1 + $0x5e0] sm:$0xff]
    %v320 = vld [vmem:[%s1 + $0x5e8] sm:$0xff]
    %v321 = vld [vmem:[%s1 + $0x5f0] sm:$0xff]
    %v322 = vld [vmem:[%s1 + $0x5f8] sm:$0xff]
    %v323 = vld [vmem:[%s1 + $0x600] sm:$0xff]
    %v324 = vld [vmem:[%s1 + $0x608] sm:$0xff]
    %v325 = vld [vmem:[%s1 + $0x610] sm:$0xff]
    %v326 = vld [vmem:[%s1 + $0x618] sm:$0xff]
    %v327 = vld [vmem:[%s1 + $0x620] sm:$0xff]
    %v328 = vld [vmem:[%s1 + $0x628] sm:$0xff]
    %v329 = vld [vmem:[%s1 + $0x630] sm:$0xff]
    %v330 = vld [vmem:[%s1 + $0x638] sm:$0xff]
    %v331 = vld [vmem:[%s1 + $0x640] sm:$0xff]
    %v332 = vld [vmem:[%s1 + $0x648] sm:$0xff]
    %v333 = vld [vmem:[%s1 + $0x650] sm:$0xff]
    %v334 = vld [vmem:[%s1 + $0x658] sm:$0xff]
    %v335 = vld [vmem:[%s1 + $0x660] sm:$0xff]
    %v336 = vld [vmem:[%s1 + $0x668] sm:$0xff]
    %v337 = vld [vmem:[%s1 + $0x670] sm:$0xff]
    %v338 = vld [vmem:[%s1 + $0x678] sm:$0xff]
    %v339 = vld [vmem:[%s1 + $0x680] sm:$0xff]
    %v340 = vld [vmem:[%s1 + $0x688] sm:$0xff]
    %v341 = vld [vmem:[%s1 + $0x690] sm:$0xff]
    %v342 = vld [vmem:[%s1 + $0x698] sm:$0xff]
    %v343 = vld [vmem:[%s1 + $0x6a0] sm:$0xff]
    %v344 = vld [vmem:[%s1 + $0x6a8] sm:$0xff]
    %v345 = vld [vmem:[%s1 + $0x6b0] sm:$0xff]
    %v346 = vld [vmem:[%s1 + $0x6b8] sm:$0xff]
    %v459 = vunpack.c.l.b16 %v19
    %v460 = vunpack.c.h.b16 %v19
    %v461 = vunpack.c.l.b16 %v20
    %v462 = vunpack.c.h.b16 %v20
    %v463 = vunpack.c.l.b16 %v21
    %v464 = vunpack.c.h.b16 %v21
    %v465 = vunpack.c.l.b16 %v22
    %v466 = vunpack.c.h.b16 %v22
    %v467 = vunpack.c.l.b16 %v23
    %v468 = vunpack.c.h.b16 %v23
    %v469 = vunpack.c.l.b16 %v24
    %v470 = vunpack.c.h.b16 %v24
    %v471 = vunpack.c.l.b16 %v25
    %v472 = vunpack.c.h.b16 %v25
    %v473 = vunpack.c.l.b16 %v26
    %v474 = vunpack.c.h.b16 %v26
    %v475 = vunpack.c.l.b16 %v27
    %v476 = vunpack.c.h.b16 %v27
    %v477 = vunpack.c.l.b16 %v28
    %v478 = vunpack.c.h.b16 %v28
    %v479 = vunpack.c.l.b16 %v29
    %v480 = vunpack.c.h.b16 %v29
    %v481 = vunpack.c.l.b16 %v30
    %v482 = vunpack.c.h.b16 %v30
    %v483 = vunpack.c.l.b16 %v31
    %v484 = vunpack.c.h.b16 %v31
    %v485 = vunpack.c.l.b16 %v32
    %v486 = vunpack.c.h.b16 %v32
    %v487 = vunpack.c.l.b16 %v33
    %v488 = vunpack.c.h.b16 %v33
    %v489 = vunpack.c.l.b16 %v34
    %v490 = vunpack.c.h.b16 %v34
    %v491 = vunpack.c.l.b16 %v35
    %v492 = vunpack.c.h.b16 %v35
    %v493 = vunpack.c.l.b16 %v36
    %v494 = vunpack.c.h.b16 %v36
    %v495 = vunpack.c.l.b16 %v37
    %v496 = vunpack.c.h.b16 %v37
    %v497 = vunpack.c.l.b16 %v38
    %v498 = vunpack.c.h.b16 %v38
    %v499 = vunpack.c.l.b16 %v39
    %v500 = vunpack.c.h.b16 %v39
    %v501 = vunpack.c.l.b16 %v40
    %v502 = vunpack.c.h.b16 %v40
    %v503 = vunpack.c.l.b16 %v41
    %v504 = vunpack.c.h.b16 %v41
    %v505 = vunpack.c.l.b16 %v42
    %v506 = vunpack.c.h.b16 %v42
    %v507 = vunpack.c.l.b16 %v43
    %v508 = vunpack.c.h.b16 %v43
    %v509 = vunpack.c.l.b16 %v44
    %v510 = vunpack.c.h.b16 %v44
    %v511 = vunpack.c.l.b16 %v45
    %v512 = vunpack.c.h.b16 %v45
    %v513 = vunpack.c.l.b16 %v46
    %v514 = vunpack.c.h.b16 %v46
    %v515 = vunpack.c.l.b16 %v47
    %v516 = vunpack.c.h.b16 %v47
    %v517 = vunpack.c.l.b16 %v48
    %v518 = vunpack.c.h.b16 %v48
    %v519 = vunpack.c.l.b16 %v49
    %v520 = vunpack.c.h.b16 %v49
    %v521 = vunpack.c.l.b16 %v50
    %v522 = vunpack.c.h.b16 %v50
    %v523 = vunpack.c.l.b16 %v51
    %v524 = vunpack.c.h.b16 %v51
    %v525 = vunpack.c.l.b16 %v52
    %v526 = vunpack.c.h.b16 %v52
    %v527 = vunpack.c.l.b16 %v53
    %v528 = vunpack.c.h.b16 %v53
    %v529 = vunpack.c.l.b16 %v54
    %v530 = vunpack.c.h.b16 %v54
    %v531 = vunpack.c.l.b16 %v55
    %v532 = vunpack.c.h.b16 %v55
    %v533 = vunpack.c.l.b16 %v56
    %v534 = vunpack.c.h.b16 %v56
    %v535 = vunpack.c.l.b16 %v57
    %v536 = vunpack.c.h.b16 %v57
    %v537 = vunpack.c.l.b16 %v58
    %v538 = vunpack.c.h.b16 %v58
    %v539 = vunpack.c.l.b16 %v59
    %v540 = vunpack.c.h.b16 %v59
    %v541 = vunpack.c.l.b16 %v60
    %v542 = vunpack.c.h.b16 %v60
    %v543 = vunpack.c.l.b16 %v61
    %v544 = vunpack.c.h.b16 %v61
    %v545 = vunpack.c.l.b16 %v62
    %v546 = vunpack.c.h.b16 %v62
    %v547 = vunpack.c.l.b16 %v63
    %v548 = vunpack.c.h.b16 %v63
    %v549 = vunpack.c.l.b16 %v64
    %v550 = vunpack.c.h.b16 %v64
    %v551 = vunpack.c.l.b16 %v65
    %v552 = vunpack.c.h.b16 %v65
    %v553 = vunpack.c.l.b16 %v66
    %v554 = vunpack.c.h.b16 %v66
    %v555 = vunpack.c.l.b16 %v67
    %v556 = vunpack.c.h.b16 %v67
    %v557 = vunpack.c.l.b16 %v68
    %v558 = vunpack.c.h.b16 %v68
    %v559 = vunpack.c.l.b16 %v69
    %v560 = vunpack.c.h.b16 %v69
    %v561 = vunpack.c.l.b16 %v70
    %v562 = vunpack.c.h.b16 %v70
    %v563 = vunpack.c.l.b16 %v71
    %v564 = vunpack.c.h.b16 %v71
    %v565 = vunpack.c.l.b16 %v72
    %v566 = vunpack.c.h.b16 %v72
    %v567 = vunpack.c.l.b16 %v73
    %v568 = vunpack.c.h.b16 %v73
    %v569 = vunpack.c.l.b16 %v74
    %v570 = vunpack.c.h.b16 %v74
    %v571 = vunpack.c.l.b16 %v75
    %v572 = vunpack.c.h.b16 %v75
    %v573 = vunpack.c.l.b16 %v76
    %v574 = vunpack.c.h.b16 %v76
    %v575 = vunpack.c.l.b16 %v77
    %v576 = vunpack.c.h.b16 %v77
    %v577 = vunpack.c.l.b16 %v78
    %v578 = vunpack.c.h.b16 %v78
    %v579 = vunpack.c.l.b16 %v79
    %v580 = vunpack.c.h.b16 %v79
    %v581 = vunpack.c.l.b16 %v80
    %v582 = vunpack.c.h.b16 %v80
    %v583 = vunpack.c.l.b16 %v81
    %v584 = vunpack.c.h.b16 %v81
    %v585 = vunpack.c.l.b16 %v82
    %v586 = vunpack.c.h.b16 %v82
    %v587 = vunpack.c.l.b16 %v83
    %v588 = vunpack.c.h.b16 %v83
    %v589 = vunpack.c.l.b16 %v84
    %v590 = vunpack.c.h.b16 %v84
    %v591 = vunpack.c.l.b16 %v85
    %v592 = vunpack.c.h.b16 %v85
    %v593 = vunpack.c.l.b16 %v86
    %v594 = vunpack.c.h.b16 %v86
    %v595 = vunpack.c.l.b16 %v87
    %v596 = vunpack.c.h.b16 %v87
    %v597 = vunpack.c.l.b16 %v88
    %v598 = vunpack.c.h.b16 %v88
    %v599 = vunpack.c.l.b16 %v89
    %v600 = vunpack.c.h.b16 %v89
    %v601 = vunpack.c.l.b16 %v90
    %v602 = vunpack.c.h.b16 %v90
    %v603 = vunpack.c.l.b16 %v91
    %v604 = vunpack.c.h.b16 %v91
    %v605 = vunpack.c.l.b16 %v92
    %v606 = vunpack.c.h.b16 %v92
    %v607 = vunpack.c.l.b16 %v93
    %v608 = vunpack.c.h.b16 %v93
    %v609 = vunpack.c.l.b16 %v94
    %v610 = vunpack.c.h.b16 %v94
    %v611 = vunpack.c.l.b16 %v95
    %v612 = vunpack.c.h.b16 %v95
    %v613 = vunpack.c.l.b16 %v96
    %v614 = vunpack.c.h.b16 %v96
    %v615 = vunpack.c.l.b16 %v97
    %v616 = vunpack.c.h.b16 %v97
    %v617 = vunpack.c.l.b16 %v98
    %v618 = vunpack.c.h.b16 %v98
    %v619 = vunpack.c.l.b16 %v99
    %v620 = vunpack.c.h.b16 %v99
    %v621 = vunpack.c.l.b16 %v100
    %v622 = vunpack.c.h.b16 %v100
    %v623 = vunpack.c.l.b16 %v101
    %v624 = vunpack.c.h.b16 %v101
    %v625 = vunpack.c.l.b16 %v102
    %v626 = vunpack.c.h.b16 %v102
    %v627 = vunpack.c.l.b16 %v103
    %v628 = vunpack.c.h.b16 %v103
    %v629 = vunpack.c.l.b16 %v104
    %v630 = vunpack.c.h.b16 %v104
    %v631 = vunpack.c.l.b16 %v105
    %v632 = vunpack.c.h.b16 %v105
    %v633 = vunpack.c.l.b16 %v106
    %v634 = vunpack.c.h.b16 %v106
    %v635 = vunpack.c.l.b16 %v107
    %v636 = vunpack.c.h.b16 %v107
    %v637 = vunpack.c.l.b16 %v108
    %v638 = vunpack.c.h.b16 %v108
    %v639 = vunpack.c.l.b16 %v109
    %v640 = vunpack.c.h.b16 %v109
    %v641 = vunpack.c.l.b16 %v110
    %v642 = vunpack.c.h.b16 %v110
    %v643 = vunpack.c.l.b16 %v111
    %v644 = vunpack.c.h.b16 %v111
    %v645 = vunpack.c.l.b16 %v112
    %v646 = vunpack.c.h.b16 %v112
    %v647 = vunpack.c.l.b16 %v113
    %v648 = vunpack.c.h.b16 %v113
    %v649 = vunpack.c.l.b16 %v114
    %v650 = vunpack.c.h.b16 %v114
    %v651 = vunpack.c.l.b16 %v115
    %v652 = vunpack.c.h.b16 %v115
    %v653 = vunpack.c.l.b16 %v116
    %v654 = vunpack.c.h.b16 %v116
    %v655 = vunpack.c.l.b16 %v117
    %v656 = vunpack.c.h.b16 %v117
    %v657 = vunpack.c.l.b16 %v118
    %v658 = vunpack.c.h.b16 %v118
    %v659 = vunpack.c.l.b16 %v119
    %v660 = vunpack.c.h.b16 %v119
    %v661 = vunpack.c.l.b16 %v120
    %v662 = vunpack.c.h.b16 %v120
    %v663 = vunpack.c.l.b16 %v121
    %v664 = vunpack.c.h.b16 %v121
    %v665 = vunpack.c.l.b16 %v122
    %v666 = vunpack.c.h.b16 %v122
    %v667 = vunpack.c.l.b16 %v123
    %v668 = vunpack.c.h.b16 %v123
    %v669 = vunpack.c.l.b16 %v124
    %v670 = vunpack.c.h.b16 %v124
    %v671 = vunpack.c.l.b16 %v125
    %v672 = vunpack.c.h.b16 %v125
    %v673 = vunpack.c.l.b16 %v126
    %v674 = vunpack.c.h.b16 %v126
    %v675 = vunpack.c.l.b16 %v127
    %v676 = vunpack.c.h.b16 %v127
    %v677 = vunpack.c.l.b16 %v128
    %v678 = vunpack.c.h.b16 %v128
    %v679 = vunpack.c.l.b16 %v129
    %v680 = vunpack.c.h.b16 %v129
    %v681 = vunpack.c.l.b16 %v130
    %v682 = vunpack.c.h.b16 %v130
    %v683 = vpack.c.b16 %v473, %v459
    %v684 = vpack.c.b16 %v474, %v460
    %v685 = vpack.c.b16 %v475, %v461
    %v686 = vpack.c.b16 %v476, %v462
    %v687 = vpack.c.b16 %v477, %v463
    %v688 = vpack.c.b16 %v478, %v464
    %v689 = vpack.c.b16 %v479, %v465
    %v690 = vpack.c.b16 %v480, %v466
    %v691 = vpack.c.b16 %v481, %v467
    %v692 = vpack.c.b16 %v482, %v468
    %v693 = vpack.c.b16 %v483, %v469
    %v694 = vpack.c.b16 %v484, %v470
    %v695 = vpack.c.b16 %v485, %v471
    %v696 = vpack.c.b16 %v486, %v472
    %v697 = vpack.c.b16 %v501, %v487
    %v698 = vpack.c.b16 %v502, %v488
    %v699 = vpack.c.b16 %v503, %v489
    %v700 = vpack.c.b16 %v504, %v490
    %v701 = vpack.c.b16 %v505, %v491
    %v702 = vpack.c.b16 %v506, %v492
    %v703 = vpack.c.b16 %v507, %v493
    %v704 = vpack.c.b16 %v508, %v494
    %v705 = vpack.c.b16 %v509, %v495
    %v706 = vpack.c.b16 %v510, %v496
    %v707 = vpack.c.b16 %v511, %v497
    %v708 = vpack.c.b16 %v512, %v498
    %v709 = vpack.c.b16 %v513, %v499
    %v710 = vpack.c.b16 %v514, %v500
    %v711 = vpack.c.b16 %v529, %v515
    %v712 = vpack.c.b16 %v530, %v516
    %v713 = vpack.c.b16 %v531, %v517
    %v714 = vpack.c.b16 %v532, %v518
    %v715 = vpack.c.b16 %v533, %v519
    %v716 = vpack.c.b16 %v534, %v520
    %v717 = vpack.c.b16 %v535, %v521
    %v718 = vpack.c.b16 %v536, %v522
    %v719 = vpack.c.b16 %v537, %v523
    %v720 = vpack.c.b16 %v538, %v524
    %v721 = vpack.c.b16 %v539, %v525
    %v722 = vpack.c.b16 %v540, %v526
    %v723 = vpack.c.b16 %v541, %v527
    %v724 = vpack.c.b16 %v542, %v528
    %v725 = vpack.c.b16 %v557, %v543
    %v726 = vpack.c.b16 %v558, %v544
    %v727 = vpack.c.b16 %v559, %v545
    %v728 = vpack.c.b16 %v560, %v546
    %v729 = vpack.c.b16 %v561, %v547
    %v730 = vpack.c.b16 %v562, %v548
    %v731 = vpack.c.b16 %v563, %v549
    %v732 = vpack.c.b16 %v564, %v550
    %v733 = vpack.c.b16 %v565, %v551
    %v734 = vpack.c.b16 %v566, %v552
    %v735 = vpack.c.b16 %v567, %v553
    %v736 = vpack.c.b16 %v568, %v554
    %v737 = vpack.c.b16 %v569, %v555
    %v738 = vpack.c.b16 %v570, %v556
    %v739 = vpack.c.b16 %v585, %v571
    %v740 = vpack.c.b16 %v586, %v572
    %v741 = vpack.c.b16 %v587, %v573
    %v742 = vpack.c.b16 %v588, %v574
    %v743 = vpack.c.b16 %v589, %v575
    %v744 = vpack.c.b16 %v590, %v576
    %v745 = vpack.c.b16 %v591, %v577
    %v746 = vpack.c.b16 %v592, %v578
    %v747 = vpack.c.b16 %v593, %v579
    %v748 = vpack.c.b16 %v594, %v580
    %v749 = vpack.c.b16 %v595, %v581
    %v750 = vpack.c.b16 %v596, %v582
    %v751 = vpack.c.b16 %v597, %v583
    %v752 = vpack.c.b16 %v598, %v584
    %v753 = vpack.c.b16 %v613, %v599
    %v754 = vpack.c.b16 %v614, %v600
    %v755 = vpack.c.b16 %v615, %v601
    %v756 = vpack.c.b16 %v616, %v602
    %v757 = vpack.c.b16 %v617, %v603
    %v758 = vpack.c.b16 %v618, %v604
    %v759 = vpack.c.b16 %v619, %v605
    %v760 = vpack.c.b16 %v620, %v606
    %v761 = vpack.c.b16 %v621, %v607
    %v762 = vpack.c.b16 %v622, %v608
    %v763 = vpack.c.b16 %v623, %v609
    %v764 = vpack.c.b16 %v624, %v610
    %v765 = vpack.c.b16 %v625, %v611
    %v766 = vpack.c.b16 %v626, %v612
    %v767 = vpack.c.b16 %v641, %v627
    %v768 = vpack.c.b16 %v642, %v628
    %v769 = vpack.c.b16 %v643, %v629
    %v770 = vpack.c.b16 %v644, %v630
    %v771 = vpack.c.b16 %v645, %v631
    %v772 = vpack.c.b16 %v646, %v632
    %v773 = vpack.c.b16 %v647, %v633
    %v774 = vpack.c.b16 %v648, %v634
    %v775 = vpack.c.b16 %v649, %v635
    %v776 = vpack.c.b16 %v650, %v636
    %v777 = vpack.c.b16 %v651, %v637
    %v778 = vpack.c.b16 %v652, %v638
    %v779 = vpack.c.b16 %v653, %v639
    %v780 = vpack.c.b16 %v654, %v640
    %v781 = vpack.c.b16 %v669, %v655
    %v782 = vpack.c.b16 %v670, %v656
    %v783 = vpack.c.b16 %v671, %v657
    %v784 = vpack.c.b16 %v672, %v658
    %v785 = vpack.c.b16 %v673, %v659
    %v786 = vpack.c.b16 %v674, %v660
    %v787 = vpack.c.b16 %v675, %v661
    %v788 = vpack.c.b16 %v676, %v662
    %v789 = vpack.c.b16 %v677, %v663
    %v790 = vpack.c.b16 %v678, %v664
    %v791 = vpack.c.b16 %v679, %v665
    %v792 = vpack.c.b16 %v680, %v666
    %v793 = vpack.c.b16 %v681, %v667
    %v794 = vpack.c.b16 %v682, %v668
    %v1115 = vunpack.c.l.b16 %v131
    %v1116 = vunpack.c.h.b16 %v131
    %v1117 = vunpack.c.l.b16 %v132
    %v1118 = vunpack.c.h.b16 %v132
    %v1119 = vunpack.c.l.b16 %v133
    %v1120 = vunpack.c.h.b16 %v133
    %v1121 = vunpack.c.l.b16 %v134
    %v1122 = vunpack.c.h.b16 %v134
    %v1123 = vunpack.c.l.b16 %v135
    %v1124 = vunpack.c.h.b16 %v135
    %v1125 = vunpack.c.l.b16 %v136
    %v1126 = vunpack.c.h.b16 %v136
    %v1127 = vunpack.c.l.b16 %v137
    %v1128 = vunpack.c.h.b16 %v137
    %v1129 = vunpack.c.l.b16 %v138
    %v1130 = vunpack.c.h.b16 %v138
    %v1131 = vunpack.c.l.b16 %v139
    %v1132 = vunpack.c.h.b16 %v139
    %v1133 = vunpack.c.l.b16 %v140
    %v1134 = vunpack.c.h.b16 %v140
    %v1135 = vunpack.c.l.b16 %v141
    %v1136 = vunpack.c.h.b16 %v141
    %v1137 = vunpack.c.l.b16 %v142
    %v1138 = vunpack.c.h.b16 %v142
    %v1139 = vunpack.c.l.b16 %v143
    %v1140 = vunpack.c.h.b16 %v143
    %v1141 = vunpack.c.l.b16 %v144
    %v1142 = vunpack.c.h.b16 %v144
    %v1143 = vunpack.c.l.b16 %v145
    %v1144 = vunpack.c.h.b16 %v145
    %v1145 = vunpack.c.l.b16 %v146
    %v1146 = vunpack.c.h.b16 %v146
    %v1147 = vunpack.c.l.b16 %v147
    %v1148 = vunpack.c.h.b16 %v147
    %v1149 = vunpack.c.l.b16 %v148
    %v1150 = vunpack.c.h.b16 %v148
    %v1151 = vunpack.c.l.b16 %v149
    %v1152 = vunpack.c.h.b16 %v149
    %v1153 = vunpack.c.l.b16 %v150
    %v1154 = vunpack.c.h.b16 %v150
    %v1155 = vunpack.c.l.b16 %v151
    %v1156 = vunpack.c.h.b16 %v151
    %v1157 = vunpack.c.l.b16 %v152
    %v1158 = vunpack.c.h.b16 %v152
    %v1159 = vunpack.c.l.b16 %v153
    %v1160 = vunpack.c.h.b16 %v153
    %v1161 = vunpack.c.l.b16 %v154
    %v1162 = vunpack.c.h.b16 %v154
    %v1163 = vunpack.c.l.b16 %v155
    %v1164 = vunpack.c.h.b16 %v155
    %v1165 = vunpack.c.l.b16 %v156
    %v1166 = vunpack.c.h.b16 %v156
    %v1167 = vunpack.c.l.b16 %v157
    %v1168 = vunpack.c.h.b16 %v157
    %v1169 = vunpack.c.l.b16 %v158
    %v1170 = vunpack.c.h.b16 %v158
    %v1171 = vunpack.c.l.b16 %v159
    %v1172 = vunpack.c.h.b16 %v159
    %v1173 = vunpack.c.l.b16 %v160
    %v1174 = vunpack.c.h.b16 %v160
    %v1175 = vunpack.c.l.b16 %v161
    %v1176 = vunpack.c.h.b16 %v161
    %v1177 = vunpack.c.l.b16 %v162
    %v1178 = vunpack.c.h.b16 %v162
    %v1179 = vunpack.c.l.b16 %v163
    %v1180 = vunpack.c.h.b16 %v163
    %v1181 = vunpack.c.l.b16 %v164
    %v1182 = vunpack.c.h.b16 %v164
    %v1183 = vunpack.c.l.b16 %v165
    %v1184 = vunpack.c.h.b16 %v165
    %v1185 = vunpack.c.l.b16 %v166
    %v1186 = vunpack.c.h.b16 %v166
    %v1187 = vunpack.c.l.b16 %v167
    %v1188 = vunpack.c.h.b16 %v167
    %v1189 = vunpack.c.l.b16 %v168
    %v1190 = vunpack.c.h.b16 %v168
    %v1191 = vunpack.c.l.b16 %v169
    %v1192 = vunpack.c.h.b16 %v169
    %v1193 = vunpack.c.l.b16 %v170
    %v1194 = vunpack.c.h.b16 %v170
    %v1195 = vunpack.c.l.b16 %v171
    %v1196 = vunpack.c.h.b16 %v171
    %v1197 = vunpack.c.l.b16 %v172
    %v1198 = vunpack.c.h.b16 %v172
    %v1199 = vunpack.c.l.b16 %v173
    %v1200 = vunpack.c.h.b16 %v173
    %v1201 = vunpack.c.l.b16 %v174
    %v1202 = vunpack.c.h.b16 %v174
    %v1203 = vunpack.c.l.b16 %v175
    %v1204 = vunpack.c.h.b16 %v175
    %v1205 = vunpack.c.l.b16 %v176
    %v1206 = vunpack.c.h.b16 %v176
    %v1207 = vunpack.c.l.b16 %v177
    %v1208 = vunpack.c.h.b16 %v177
    %v1209 = vunpack.c.l.b16 %v178
    %v1210 = vunpack.c.h.b16 %v178
    %v1211 = vunpack.c.l.b16 %v179
    %v1212 = vunpack.c.h.b16 %v179
    %v1213 = vunpack.c.l.b16 %v180
    %v1214 = vunpack.c.h.b16 %v180
    %v1215 = vunpack.c.l.b16 %v181
    %v1216 = vunpack.c.h.b16 %v181
    %v1217 = vunpack.c.l.b16 %v182
    %v1218 = vunpack.c.h.b16 %v182
    %v1219 = vunpack.c.l.b16 %v183
    %v1220 = vunpack.c.h.b16 %v183
    %v1221 = vunpack.c.l.b16 %v184
    %v1222 = vunpack.c.h.b16 %v184
    %v1223 = vunpack.c.l.b16 %v185
    %v1224 = vunpack.c.h.b16 %v185
    %v1225 = vunpack.c.l.b16 %v186
    %v1226 = vunpack.c.h.b16 %v186
    %v1227 = vunpack.c.l.b16 %v187
    %v1228 = vunpack.c.h.b16 %v187
    %v1229 = vunpack.c.l.b16 %v188
    %v1230 = vunpack.c.h.b16 %v188
    %v1231 = vunpack.c.l.b16 %v189
    %v1232 = vunpack.c.h.b16 %v189
    %v1233 = vunpack.c.l.b16 %v190
    %v1234 = vunpack.c.h.b16 %v190
    %v1235 = vunpack.c.l.b16 %v191
    %v1236 = vunpack.c.h.b16 %v191
    %v1237 = vunpack.c.l.b16 %v192
    %v1238 = vunpack.c.h.b16 %v192
    %v1239 = vunpack.c.l.b16 %v193
    %v1240 = vunpack.c.h.b16 %v193
    %v1241 = vunpack.c.l.b16 %v194
    %v1242 = vunpack.c.h.b16 %v194
    %v1243 = vunpack.c.l.b16 %v195
    %v1244 = vunpack.c.h.b16 %v195
    %v1245 = vunpack.c.l.b16 %v196
    %v1246 = vunpack.c.h.b16 %v196
    %v1247 = vunpack.c.l.b16 %v197
    %v1248 = vunpack.c.h.b16 %v197
    %v1249 = vunpack.c.l.b16 %v198
    %v1250 = vunpack.c.h.b16 %v198
    %v1251 = vunpack.c.l.b16 %v199
    %v1252 = vunpack.c.h.b16 %v199
    %v1253 = vunpack.c.l.b16 %v200
    %v1254 = vunpack.c.h.b16 %v200
    %v1255 = vunpack.c.l.b16 %v201
    %v1256 = vunpack.c.h.b16 %v201
    %v1257 = vunpack.c.l.b16 %v202
    %v1258 = vunpack.c.h.b16 %v202
    %v1259 = vunpack.c.l.b16 %v203
    %v1260 = vunpack.c.h.b16 %v203
    %v1261 = vunpack.c.l.b16 %v204
    %v1262 = vunpack.c.h.b16 %v204
    %v1263 = vunpack.c.l.b16 %v205
    %v1264 = vunpack.c.h.b16 %v205
    %v1265 = vunpack.c.l.b16 %v206
    %v1266 = vunpack.c.h.b16 %v206
    %v1267 = vunpack.c.l.b16 %v207
    %v1268 = vunpack.c.h.b16 %v207
    %v1269 = vunpack.c.l.b16 %v208
    %v1270 = vunpack.c.h.b16 %v208
    %v1271 = vunpack.c.l.b16 %v209
    %v1272 = vunpack.c.h.b16 %v209
    %v1273 = vunpack.c.l.b16 %v210
    %v1274 = vunpack.c.h.b16 %v210
    %v1275 = vunpack.c.l.b16 %v211
    %v1276 = vunpack.c.h.b16 %v211
    %v1277 = vunpack.c.l.b16 %v212
    %v1278 = vunpack.c.h.b16 %v212
    %v1279 = vunpack.c.l.b16 %v213
    %v1280 = vunpack.c.h.b16 %v213
    %v1281 = vunpack.c.l.b16 %v214
    %v1282 = vunpack.c.h.b16 %v214
    %v1283 = vunpack.c.l.b16 %v215
    %v1284 = vunpack.c.h.b16 %v215
    %v1285 = vunpack.c.l.b16 %v216
    %v1286 = vunpack.c.h.b16 %v216
    %v1287 = vunpack.c.l.b16 %v217
    %v1288 = vunpack.c.h.b16 %v217
    %v1289 = vunpack.c.l.b16 %v218
    %v1290 = vunpack.c.h.b16 %v218
    %v1291 = vunpack.c.l.b16 %v219
    %v1292 = vunpack.c.h.b16 %v219
    %v1293 = vunpack.c.l.b16 %v220
    %v1294 = vunpack.c.h.b16 %v220
    %v1295 = vunpack.c.l.b16 %v221
    %v1296 = vunpack.c.h.b16 %v221
    %v1297 = vunpack.c.l.b16 %v222
    %v1298 = vunpack.c.h.b16 %v222
    %v1299 = vunpack.c.l.b16 %v223
    %v1300 = vunpack.c.h.b16 %v223
    %v1301 = vunpack.c.l.b16 %v224
    %v1302 = vunpack.c.h.b16 %v224
    %v1303 = vunpack.c.l.b16 %v225
    %v1304 = vunpack.c.h.b16 %v225
    %v1305 = vunpack.c.l.b16 %v226
    %v1306 = vunpack.c.h.b16 %v226
    %v1307 = vunpack.c.l.b16 %v227
    %v1308 = vunpack.c.h.b16 %v227
    %v1309 = vunpack.c.l.b16 %v228
    %v1310 = vunpack.c.h.b16 %v228
    %v1311 = vunpack.c.l.b16 %v229
    %v1312 = vunpack.c.h.b16 %v229
    %v1313 = vunpack.c.l.b16 %v230
    %v1314 = vunpack.c.h.b16 %v230
    %v1315 = vunpack.c.l.b16 %v231
    %v1316 = vunpack.c.h.b16 %v231
    %v1317 = vunpack.c.l.b16 %v232
    %v1318 = vunpack.c.h.b16 %v232
    %v1319 = vunpack.c.l.b16 %v233
    %v1320 = vunpack.c.h.b16 %v233
    %v1321 = vunpack.c.l.b16 %v234
    %v1322 = vunpack.c.h.b16 %v234
    %v1323 = vunpack.c.l.b16 %v235
    %v1324 = vunpack.c.h.b16 %v235
    %v1325 = vunpack.c.l.b16 %v236
    %v1326 = vunpack.c.h.b16 %v236
    %v1327 = vunpack.c.l.b16 %v237
    %v1328 = vunpack.c.h.b16 %v237
    %v1329 = vunpack.c.l.b16 %v238
    %v1330 = vunpack.c.h.b16 %v238
    %v1331 = vunpack.c.l.b16 %v239
    %v1332 = vunpack.c.h.b16 %v239
    %v1333 = vunpack.c.l.b16 %v240
    %v1334 = vunpack.c.h.b16 %v240
    %v1335 = vunpack.c.l.b16 %v241
    %v1336 = vunpack.c.h.b16 %v241
    %v1337 = vunpack.c.l.b16 %v242
    %v1338 = vunpack.c.h.b16 %v242
    %v1339 = vunpack.c.l.b16 %v243
    %v1340 = vunpack.c.h.b16 %v243
    %v1341 = vunpack.c.l.b16 %v244
    %v1342 = vunpack.c.h.b16 %v244
    %v1343 = vunpack.c.l.b16 %v245
    %v1344 = vunpack.c.h.b16 %v245
    %v1345 = vunpack.c.l.b16 %v246
    %v1346 = vunpack.c.h.b16 %v246
    %v1347 = vunpack.c.l.b16 %v247
    %v1348 = vunpack.c.h.b16 %v247
    %v1349 = vunpack.c.l.b16 %v248
    %v1350 = vunpack.c.h.b16 %v248
    %v1351 = vunpack.c.l.b16 %v249
    %v1352 = vunpack.c.h.b16 %v249
    %v1353 = vunpack.c.l.b16 %v250
    %v1354 = vunpack.c.h.b16 %v250
    %v1355 = vunpack.c.l.b16 %v251
    %v1356 = vunpack.c.h.b16 %v251
    %v1357 = vunpack.c.l.b16 %v252
    %v1358 = vunpack.c.h.b16 %v252
    %v1359 = vunpack.c.l.b16 %v253
    %v1360 = vunpack.c.h.b16 %v253
    %v1361 = vunpack.c.l.b16 %v254
    %v1362 = vunpack.c.h.b16 %v254
    %v1363 = vunpack.c.l.b16 %v255
    %v1364 = vunpack.c.h.b16 %v255
    %v1365 = vunpack.c.l.b16 %v256
    %v1366 = vunpack.c.h.b16 %v256
    %v1367 = vunpack.c.l.b16 %v257
    %v1368 = vunpack.c.h.b16 %v257
    %v1369 = vunpack.c.l.b16 %v258
    %v1370 = vunpack.c.h.b16 %v258
    %v1371 = vunpack.c.l.b16 %v259
    %v1372 = vunpack.c.h.b16 %v259
    %v1373 = vunpack.c.l.b16 %v260
    %v1374 = vunpack.c.h.b16 %v260
    %v1375 = vunpack.c.l.b16 %v261
    %v1376 = vunpack.c.h.b16 %v261
    %v1377 = vunpack.c.l.b16 %v262
    %v1378 = vunpack.c.h.b16 %v262
    %v1379 = vunpack.c.l.b16 %v263
    %v1380 = vunpack.c.h.b16 %v263
    %v1381 = vunpack.c.l.b16 %v264
    %v1382 = vunpack.c.h.b16 %v264
    %v1383 = vunpack.c.l.b16 %v265
    %v1384 = vunpack.c.h.b16 %v265
    %v1385 = vunpack.c.l.b16 %v266
    %v1386 = vunpack.c.h.b16 %v266
    %v1387 = vunpack.c.l.b16 %v267
    %v1388 = vunpack.c.h.b16 %v267
    %v1389 = vunpack.c.l.b16 %v268
    %v1390 = vunpack.c.h.b16 %v268
    %v1391 = vunpack.c.l.b16 %v269
    %v1392 = vunpack.c.h.b16 %v269
    %v1393 = vunpack.c.l.b16 %v270
    %v1394 = vunpack.c.h.b16 %v270
    %v1395 = vunpack.c.l.b16 %v271
    %v1396 = vunpack.c.h.b16 %v271
    %v1397 = vunpack.c.l.b16 %v272
    %v1398 = vunpack.c.h.b16 %v272
    %v1399 = vunpack.c.l.b16 %v273
    %v1400 = vunpack.c.h.b16 %v273
    %v1401 = vunpack.c.l.b16 %v274
    %v1402 = vunpack.c.h.b16 %v274
    %v1403 = vunpack.c.l.b16 %v275
    %v1404 = vunpack.c.h.b16 %v275
    %v1405 = vunpack.c.l.b16 %v276
    %v1406 = vunpack.c.h.b16 %v276
    %v1407 = vunpack.c.l.b16 %v277
    %v1408 = vunpack.c.h.b16 %v277
    %v1409 = vunpack.c.l.b16 %v278
    %v1410 = vunpack.c.h.b16 %v278
    %v1411 = vunpack.c.l.b16 %v279
    %v1412 = vunpack.c.h.b16 %v279
    %v1413 = vunpack.c.l.b16 %v280
    %v1414 = vunpack.c.h.b16 %v280
    %v1415 = vunpack.c.l.b16 %v281
    %v1416 = vunpack.c.h.b16 %v281
    %v1417 = vunpack.c.l.b16 %v282
    %v1418 = vunpack.c.h.b16 %v282
    %v1419 = vunpack.c.l.b16 %v283
    %v1420 = vunpack.c.h.b16 %v283
    %v1421 = vunpack.c.l.b16 %v284
    %v1422 = vunpack.c.h.b16 %v284
    %v1423 = vunpack.c.l.b16 %v285
    %v1424 = vunpack.c.h.b16 %v285
    %v1425 = vunpack.c.l.b16 %v286
    %v1426 = vunpack.c.h.b16 %v286
    %v1427 = vunpack.c.l.b16 %v287
    %v1428 = vunpack.c.h.b16 %v287
    %v1429 = vunpack.c.l.b16 %v288
    %v1430 = vunpack.c.h.b16 %v288
    %v1431 = vunpack.c.l.b16 %v289
    %v1432 = vunpack.c.h.b16 %v289
    %v1433 = vunpack.c.l.b16 %v290
    %v1434 = vunpack.c.h.b16 %v290
    %v1435 = vunpack.c.l.b16 %v291
    %v1436 = vunpack.c.h.b16 %v291
    %v1437 = vunpack.c.l.b16 %v292
    %v1438 = vunpack.c.h.b16 %v292
    %v1439 = vunpack.c.l.b16 %v293
    %v1440 = vunpack.c.h.b16 %v293
    %v1441 = vunpack.c.l.b16 %v294
    %v1442 = vunpack.c.h.b16 %v294
    %v1443 = vunpack.c.l.b16 %v295
    %v1444 = vunpack.c.h.b16 %v295
    %v1445 = vunpack.c.l.b16 %v296
    %v1446 = vunpack.c.h.b16 %v296
    %v1447 = vunpack.c.l.b16 %v297
    %v1448 = vunpack.c.h.b16 %v297
    %v1449 = vunpack.c.l.b16 %v298
    %v1450 = vunpack.c.h.b16 %v298
    %v1451 = vunpack.c.l.b16 %v299
    %v1452 = vunpack.c.h.b16 %v299
    %v1453 = vunpack.c.l.b16 %v300
    %v1454 = vunpack.c.h.b16 %v300
    %v1455 = vunpack.c.l.b16 %v301
    %v1456 = vunpack.c.h.b16 %v301
    %v1457 = vunpack.c.l.b16 %v302
    %v1458 = vunpack.c.h.b16 %v302
    %v1459 = vunpack.c.l.b16 %v303
    %v1460 = vunpack.c.h.b16 %v303
    %v1461 = vunpack.c.l.b16 %v304
    %v1462 = vunpack.c.h.b16 %v304
    %v1463 = vunpack.c.l.b16 %v305
    %v1464 = vunpack.c.h.b16 %v305
    %v1465 = vunpack.c.l.b16 %v306
    %v1466 = vunpack.c.h.b16 %v306
    %v1467 = vunpack.c.l.b16 %v307
    %v1468 = vunpack.c.h.b16 %v307
    %v1469 = vunpack.c.l.b16 %v308
    %v1470 = vunpack.c.h.b16 %v308
    %v1471 = vunpack.c.l.b16 %v309
    %v1472 = vunpack.c.h.b16 %v309
    %v1473 = vunpack.c.l.b16 %v310
    %v1474 = vunpack.c.h.b16 %v310
    %v1475 = vunpack.c.l.b16 %v311
    %v1476 = vunpack.c.h.b16 %v311
    %v1477 = vunpack.c.l.b16 %v312
    %v1478 = vunpack.c.h.b16 %v312
    %v1479 = vunpack.c.l.b16 %v313
    %v1480 = vunpack.c.h.b16 %v313
    %v1481 = vunpack.c.l.b16 %v314
    %v1482 = vunpack.c.h.b16 %v314
    %v1483 = vunpack.c.l.b16 %v315
    %v1484 = vunpack.c.h.b16 %v315
    %v1485 = vunpack.c.l.b16 %v316
    %v1486 = vunpack.c.h.b16 %v316
    %v1487 = vunpack.c.l.b16 %v317
    %v1488 = vunpack.c.h.b16 %v317
    %v1489 = vunpack.c.l.b16 %v318
    %v1490 = vunpack.c.h.b16 %v318
    %v1491 = vunpack.c.l.b16 %v319
    %v1492 = vunpack.c.h.b16 %v319
    %v1493 = vunpack.c.l.b16 %v320
    %v1494 = vunpack.c.h.b16 %v320
    %v1495 = vunpack.c.l.b16 %v321
    %v1496 = vunpack.c.h.b16 %v321
    %v1497 = vunpack.c.l.b16 %v322
    %v1498 = vunpack.c.h.b16 %v322
    %v1499 = vunpack.c.l.b16 %v323
    %v1500 = vunpack.c.h.b16 %v323
    %v1501 = vunpack.c.l.b16 %v324
    %v1502 = vunpack.c.h.b16 %v324
    %v1503 = vunpack.c.l.b16 %v325
    %v1504 = vunpack.c.h.b16 %v325
    %v1505 = vunpack.c.l.b16 %v326
    %v1506 = vunpack.c.h.b16 %v326
    %v1507 = vunpack.c.l.b16 %v327
    %v1508 = vunpack.c.h.b16 %v327
    %v1509 = vunpack.c.l.b16 %v328
    %v1510 = vunpack.c.h.b16 %v328
    %v1511 = vunpack.c.l.b16 %v329
    %v1512 = vunpack.c.h.b16 %v329
    %v1513 = vunpack.c.l.b16 %v330
    %v1514 = vunpack.c.h.b16 %v330
    %v1515 = vunpack.c.l.b16 %v331
    %v1516 = vunpack.c.h.b16 %v331
    %v1517 = vunpack.c.l.b16 %v332
    %v1518 = vunpack.c.h.b16 %v332
    %v1519 = vunpack.c.l.b16 %v333
    %v1520 = vunpack.c.h.b16 %v333
    %v1521 = vunpack.c.l.b16 %v334
    %v1522 = vunpack.c.h.b16 %v334
    %v1523 = vunpack.c.l.b16 %v335
    %v1524 = vunpack.c.h.b16 %v335
    %v1525 = vunpack.c.l.b16 %v336
    %v1526 = vunpack.c.h.b16 %v336
    %v1527 = vunpack.c.l.b16 %v337
    %v1528 = vunpack.c.h.b16 %v337
    %v1529 = vunpack.c.l.b16 %v338
    %v1530 = vunpack.c.h.b16 %v338
    %v1531 = vunpack.c.l.b16 %v339
    %v1532 = vunpack.c.h.b16 %v339
    %v1533 = vunpack.c.l.b16 %v340
    %v1534 = vunpack.c.h.b16 %v340
    %v1535 = vunpack.c.l.b16 %v341
    %v1536 = vunpack.c.h.b16 %v341
    %v1537 = vunpack.c.l.b16 %v342
    %v1538 = vunpack.c.h.b16 %v342
    %v1539 = vunpack.c.l.b16 %v343
    %v1540 = vunpack.c.h.b16 %v343
    %v1541 = vunpack.c.l.b16 %v344
    %v1542 = vunpack.c.h.b16 %v344
    %v1543 = vunpack.c.l.b16 %v345
    %v1544 = vunpack.c.h.b16 %v345
    %v1545 = vunpack.c.l.b16 %v346
    %v1546 = vunpack.c.h.b16 %v346
    %v1547 = vpack.c.b16 %v1117, %v1115
    %v1548 = vpack.c.b16 %v1118, %v1116
    %v1549 = vpack.c.b16 %v1121, %v1119
    %v1550 = vpack.c.b16 %v1122, %v1120
    %v1551 = vpack.c.b16 %v1125, %v1123
    %v1552 = vpack.c.b16 %v1126, %v1124
    %v1553 = vpack.c.b16 %v1129, %v1127
    %v1554 = vpack.c.b16 %v1130, %v1128
    %v1555 = vpack.c.b16 %v1133, %v1131
    %v1556 = vpack.c.b16 %v1134, %v1132
    %v1557 = vpack.c.b16 %v1137, %v1135
    %v1558 = vpack.c.b16 %v1138, %v1136
    %v1559 = vpack.c.b16 %v1141, %v1139
    %v1560 = vpack.c.b16 %v1142, %v1140
    %v1561 = vpack.c.b16 %v1145, %v1143
    %v1562 = vpack.c.b16 %v1146, %v1144
    %v1563 = vpack.c.b16 %v1149, %v1147
    %v1564 = vpack.c.b16 %v1150, %v1148
    %v1565 = vpack.c.b16 %v1153, %v1151
    %v1566 = vpack.c.b16 %v1154, %v1152
    %v1567 = vpack.c.b16 %v1157, %v1155
    %v1568 = vpack.c.b16 %v1158, %v1156
    %v1569 = vpack.c.b16 %v1161, %v1159
    %v1570 = vpack.c.b16 %v1162, %v1160
    %v1571 = vpack.c.b16 %v1165, %v1163
    %v1572 = vpack.c.b16 %v1166, %v1164
    %v1573 = vpack.c.b16 %v1169, %v1167
    %v1574 = vpack.c.b16 %v1170, %v1168
    %v1575 = vpack.c.b16 %v1173, %v1171
    %v1576 = vpack.c.b16 %v1174, %v1172
    %v1577 = vpack.c.b16 %v1177, %v1175
    %v1578 = vpack.c.b16 %v1178, %v1176
    %v1579 = vpack.c.b16 %v1181, %v1179
    %v1580 = vpack.c.b16 %v1182, %v1180
    %v1581 = vpack.c.b16 %v1185, %v1183
    %v1582 = vpack.c.b16 %v1186, %v1184
    %v1583 = vpack.c.b16 %v1189, %v1187
    %v1584 = vpack.c.b16 %v1190, %v1188
    %v1585 = vpack.c.b16 %v1193, %v1191
    %v1586 = vpack.c.b16 %v1194, %v1192
    %v1587 = vpack.c.b16 %v1197, %v1195
    %v1588 = vpack.c.b16 %v1198, %v1196
    %v1589 = vpack.c.b16 %v1201, %v1199
    %v1590 = vpack.c.b16 %v1202, %v1200
    %v1591 = vpack.c.b16 %v1205, %v1203
    %v1592 = vpack.c.b16 %v1206, %v1204
    %v1593 = vpack.c.b16 %v1209, %v1207
    %v1594 = vpack.c.b16 %v1210, %v1208
    %v1595 = vpack.c.b16 %v1213, %v1211
    %v1596 = vpack.c.b16 %v1214, %v1212
    %v1597 = vpack.c.b16 %v1217, %v1215
    %v1598 = vpack.c.b16 %v1218, %v1216
    %v1599 = vpack.c.b16 %v1221, %v1219
    %v1600 = vpack.c.b16 %v1222, %v1220
    %v1601 = vpack.c.b16 %v1225, %v1223
    %v1602 = vpack.c.b16 %v1226, %v1224
    %v1603 = vpack.c.b16 %v1229, %v1227
    %v1604 = vpack.c.b16 %v1230, %v1228
    %v1605 = vpack.c.b16 %v1233, %v1231
    %v1606 = vpack.c.b16 %v1234, %v1232
    %v1607 = vpack.c.b16 %v1237, %v1235
    %v1608 = vpack.c.b16 %v1238, %v1236
    %v1609 = vpack.c.b16 %v1241, %v1239
    %v1610 = vpack.c.b16 %v1242, %v1240
    %v1611 = vpack.c.b16 %v1245, %v1243
    %v1612 = vpack.c.b16 %v1246, %v1244
    %v1613 = vpack.c.b16 %v1249, %v1247
    %v1614 = vpack.c.b16 %v1250, %v1248
    %v1615 = vpack.c.b16 %v1253, %v1251
    %v1616 = vpack.c.b16 %v1254, %v1252
    %v1617 = vpack.c.b16 %v1257, %v1255
    %v1618 = vpack.c.b16 %v1258, %v1256
    %v1619 = vpack.c.b16 %v1261, %v1259
    %v1620 = vpack.c.b16 %v1262, %v1260
    %v1621 = vpack.c.b16 %v1265, %v1263
    %v1622 = vpack.c.b16 %v1266, %v1264
    %v1623 = vpack.c.b16 %v1269, %v1267
    %v1624 = vpack.c.b16 %v1270, %v1268
    %v1625 = vpack.c.b16 %v1273, %v1271
    %v1626 = vpack.c.b16 %v1274, %v1272
    %v1627 = vpack.c.b16 %v1277, %v1275
    %v1628 = vpack.c.b16 %v1278, %v1276
    %v1629 = vpack.c.b16 %v1281, %v1279
    %v1630 = vpack.c.b16 %v1282, %v1280
    %v1631 = vpack.c.b16 %v1285, %v1283
    %v1632 = vpack.c.b16 %v1286, %v1284
    %v1633 = vpack.c.b16 %v1289, %v1287
    %v1634 = vpack.c.b16 %v1290, %v1288
    %v1635 = vpack.c.b16 %v1293, %v1291
    %v1636 = vpack.c.b16 %v1294, %v1292
    %v1637 = vpack.c.b16 %v1297, %v1295
    %v1638 = vpack.c.b16 %v1298, %v1296
    %v1639 = vpack.c.b16 %v1301, %v1299
    %v1640 = vpack.c.b16 %v1302, %v1300
    %v1641 = vpack.c.b16 %v1305, %v1303
    %v1642 = vpack.c.b16 %v1306, %v1304
    %v1643 = vpack.c.b16 %v1309, %v1307
    %v1644 = vpack.c.b16 %v1310, %v1308
    %v1645 = vpack.c.b16 %v1313, %v1311
    %v1646 = vpack.c.b16 %v1314, %v1312
    %v1647 = vpack.c.b16 %v1317, %v1315
    %v1648 = vpack.c.b16 %v1318, %v1316
    %v1649 = vpack.c.b16 %v1321, %v1319
    %v1650 = vpack.c.b16 %v1322, %v1320
    %v1651 = vpack.c.b16 %v1325, %v1323
    %v1652 = vpack.c.b16 %v1326, %v1324
    %v1653 = vpack.c.b16 %v1329, %v1327
    %v1654 = vpack.c.b16 %v1330, %v1328
    %v1655 = vpack.c.b16 %v1333, %v1331
    %v1656 = vpack.c.b16 %v1334, %v1332
    %v1657 = vpack.c.b16 %v1337, %v1335
    %v1658 = vpack.c.b16 %v1338, %v1336
    %v1659 = vpack.c.b16 %v1341, %v1339
    %v1660 = vpack.c.b16 %v1342, %v1340
    %v1661 = vpack.c.b16 %v1345, %v1343
    %v1662 = vpack.c.b16 %v1346, %v1344
    %v1663 = vpack.c.b16 %v1349, %v1347
    %v1664 = vpack.c.b16 %v1350, %v1348
    %v1665 = vpack.c.b16 %v1353, %v1351
    %v1666 = vpack.c.b16 %v1354, %v1352
    %v1667 = vpack.c.b16 %v1357, %v1355
    %v1668 = vpack.c.b16 %v1358, %v1356
    %v1669 = vpack.c.b16 %v1361, %v1359
    %v1670 = vpack.c.b16 %v1362, %v1360
    %v1671 = vpack.c.b16 %v1365, %v1363
    %v1672 = vpack.c.b16 %v1366, %v1364
    %v1673 = vpack.c.b16 %v1369, %v1367
    %v1674 = vpack.c.b16 %v1370, %v1368
    %v1675 = vpack.c.b16 %v1373, %v1371
    %v1676 = vpack.c.b16 %v1374, %v1372
    %v1677 = vpack.c.b16 %v1377, %v1375
    %v1678 = vpack.c.b16 %v1378, %v1376
    %v1679 = vpack.c.b16 %v1381, %v1379
    %v1680 = vpack.c.b16 %v1382, %v1380
    %v1681 = vpack.c.b16 %v1385, %v1383
    %v1682 = vpack.c.b16 %v1386, %v1384
    %v1683 = vpack.c.b16 %v1389, %v1387
    %v1684 = vpack.c.b16 %v1390, %v1388
    %v1685 = vpack.c.b16 %v1393, %v1391
    %v1686 = vpack.c.b16 %v1394, %v1392
    %v1687 = vpack.c.b16 %v1397, %v1395
    %v1688 = vpack.c.b16 %v1398, %v1396
    %v1689 = vpack.c.b16 %v1401, %v1399
    %v1690 = vpack.c.b16 %v1402, %v1400
    %v1691 = vpack.c.b16 %v1405, %v1403
    %v1692 = vpack.c.b16 %v1406, %v1404
    %v1693 = vpack.c.b16 %v1409, %v1407
    %v1694 = vpack.c.b16 %v1410, %v1408
    %v1695 = vpack.c.b16 %v1413, %v1411
    %v1696 = vpack.c.b16 %v1414, %v1412
    %v1697 = vpack.c.b16 %v1417, %v1415
    %v1698 = vpack.c.b16 %v1418, %v1416
    %v1699 = vpack.c.b16 %v1421, %v1419
    %v1700 = vpack.c.b16 %v1422, %v1420
    %v1701 = vpack.c.b16 %v1425, %v1423
    %v1702 = vpack.c.b16 %v1426, %v1424
    %v1703 = vpack.c.b16 %v1429, %v1427
    %v1704 = vpack.c.b16 %v1430, %v1428
    %v1705 = vpack.c.b16 %v1433, %v1431
    %v1706 = vpack.c.b16 %v1434, %v1432
    %v1707 = vpack.c.b16 %v1437, %v1435
    %v1708 = vpack.c.b16 %v1438, %v1436
    %v1709 = vpack.c.b16 %v1441, %v1439
    %v1710 = vpack.c.b16 %v1442, %v1440
    %v1711 = vpack.c.b16 %v1445, %v1443
    %v1712 = vpack.c.b16 %v1446, %v1444
    %v1713 = vpack.c.b16 %v1449, %v1447
    %v1714 = vpack.c.b16 %v1450, %v1448
    %v1715 = vpack.c.b16 %v1453, %v1451
    %v1716 = vpack.c.b16 %v1454, %v1452
    %v1717 = vpack.c.b16 %v1457, %v1455
    %v1718 = vpack.c.b16 %v1458, %v1456
    %v1719 = vpack.c.b16 %v1461, %v1459
    %v1720 = vpack.c.b16 %v1462, %v1460
    %v1721 = vpack.c.b16 %v1465, %v1463
    %v1722 = vpack.c.b16 %v1466, %v1464
    %v1723 = vpack.c.b16 %v1469, %v1467
    %v1724 = vpack.c.b16 %v1470, %v1468
    %v1725 = vpack.c.b16 %v1473, %v1471
    %v1726 = vpack.c.b16 %v1474, %v1472
    %v1727 = vpack.c.b16 %v1477, %v1475
    %v1728 = vpack.c.b16 %v1478, %v1476
    %v1729 = vpack.c.b16 %v1481, %v1479
    %v1730 = vpack.c.b16 %v1482, %v1480
    %v1731 = vpack.c.b16 %v1485, %v1483
    %v1732 = vpack.c.b16 %v1486, %v1484
    %v1733 = vpack.c.b16 %v1489, %v1487
    %v1734 = vpack.c.b16 %v1490, %v1488
    %v1735 = vpack.c.b16 %v1493, %v1491
    %v1736 = vpack.c.b16 %v1494, %v1492
    %v1737 = vpack.c.b16 %v1497, %v1495
    %v1738 = vpack.c.b16 %v1498, %v1496
    %v1739 = vpack.c.b16 %v1501, %v1499
    %v1740 = vpack.c.b16 %v1502, %v1500
    %v1741 = vpack.c.b16 %v1505, %v1503
    %v1742 = vpack.c.b16 %v1506, %v1504
    %v1743 = vpack.c.b16 %v1509, %v1507
    %v1744 = vpack.c.b16 %v1510, %v1508
    %v1745 = vpack.c.b16 %v1513, %v1511
    %v1746 = vpack.c.b16 %v1514, %v1512
    %v1747 = vpack.c.b16 %v1517, %v1515
    %v1748 = vpack.c.b16 %v1518, %v1516
    %v1749 = vpack.c.b16 %v1521, %v1519
    %v1750 = vpack.c.b16 %v1522, %v1520
    %v1751 = vpack.c.b16 %v1525, %v1523
    %v1752 = vpack.c.b16 %v1526, %v1524
    %v1753 = vpack.c.b16 %v1529, %v1527
    %v1754 = vpack.c.b16 %v1530, %v1528
    %v1755 = vpack.c.b16 %v1533, %v1531
    %v1756 = vpack.c.b16 %v1534, %v1532
    %v1757 = vpack.c.b16 %v1537, %v1535
    %v1758 = vpack.c.b16 %v1538, %v1536
    %v1759 = vpack.c.b16 %v1541, %v1539
    %v1760 = vpack.c.b16 %v1542, %v1540
    %v1761 = vpack.c.b16 %v1545, %v1543
    %v1762 = vpack.c.b16 %v1546, %v1544
    %vm1979 = vcmask 523264
    %v1981 = vsel %vm1979, %v696, 0
    %v1984 = vsel %vm1979, %v710, 0
    %v1987 = vsel %vm1979, %v724, 0
    %v1990 = vsel %vm1979, %v738, 0
    %v1993 = vsel %vm1979, %v752, 0
    %v1996 = vsel %vm1979, %v766, 0
    %v1999 = vsel %vm1979, %v780, 0
    %v2002 = vsel %vm1979, %v794, 0
    %2004 = vmatpush.bf16.msra.mxu0 %v1561
    %2005 = vmatpush.bf16.msra.mxu0 %v1559
    %2006 = vmatpush.bf16.msra.mxu0 %v1557
    %2007 = vmatpush.bf16.msra.mxu0 %v1555
    %2008 = vmatpush.bf16.msra.mxu0 %v1553
    %2009 = vmatpush.bf16.msra.mxu0 %v1551
    %2010 = vmatpush.bf16.msra.mxu0 %v1549
    %2011 = vmatpush.bf16.msra.mxu0 %v1547
    %2012 = vmatmul.bf16.gmra.mxu0 %v683
    %v2013 = vpop.f32.mrf.mxu0
    %v2014 = vadd.f32 0.0, %v2013
    %v2015 = vpop.f32.mrf.mxu0
    %v2016 = vadd.f32 0.0, %v2015
    %2017 = vmatmul.bf16.gmra.mxu0 %v697
    %v2018 = vpop.f32.mrf.mxu0
    %v2019 = vadd.f32 0.0, %v2018
    %v2020 = vpop.f32.mrf.mxu0
    %v2021 = vadd.f32 0.0, %v2020
    %2022 = vmatmul.bf16.gmra.mxu0 %v711
    %v2023 = vpop.f32.mrf.mxu0
    %v2024 = vadd.f32 0.0, %v2023
    %v2025 = vpop.f32.mrf.mxu0
    %v2026 = vadd.f32 0.0, %v2025
    %2027 = vmatmul.bf16.gmra.mxu0 %v725
    %v2028 = vpop.f32.mrf.mxu0
    %v2029 = vadd.f32 0.0, %v2028
    %v2030 = vpop.f32.mrf.mxu0
    %v2031 = vadd.f32 0.0, %v2030
    %2032 = vmatmul.bf16.gmra.mxu0 %v739
    %v2033 = vpop.f32.mrf.mxu0
    %v2034 = vadd.f32 0.0, %v2033
    %v2035 = vpop.f32.mrf.mxu0
    %v2036 = vadd.f32 0.0, %v2035
    %2037 = vmatmul.bf16.gmra.mxu0 %v753
    %v2038 = vpop.f32.mrf.mxu0
    %v2039 = vadd.f32 0.0, %v2038
    %v2040 = vpop.f32.mrf.mxu0
    %v2041 = vadd.f32 0.0, %v2040
    %2042 = vmatmul.bf16.gmra.mxu0 %v767
    %v2043 = vpop.f32.mrf.mxu0
    %v2044 = vadd.f32 0.0, %v2043
    %v2045 = vpop.f32.mrf.mxu0
    %v2046 = vadd.f32 0.0, %v2045
    %2047 = vmatmul.bf16.gmra.mxu0 %v781
    %v2048 = vpop.f32.mrf.mxu0
    %v2049 = vadd.f32 0.0, %v2048
    %v2050 = vpop.f32.mrf.mxu0
    %v2051 = vadd.f32 0.0, %v2050
    %2052 = vdwg.mxu0
    %2053 = vmatpush.bf16.msra.mxu0 %v1577
    %2054 = vmatpush.bf16.msra.mxu0 %v1575
    %2055 = vmatpush.bf16.msra.mxu0 %v1573
    %2056 = vmatpush.bf16.msra.mxu0 %v1571
    %2057 = vmatpush.bf16.msra.mxu0 %v1569
    %2058 = vmatpush.bf16.msra.mxu0 %v1567
    %2059 = vmatpush.bf16.msra.mxu0 %v1565
    %2060 = vmatpush.bf16.msra.mxu0 %v1563
    %2061 = vmatmul.bf16.gmra.mxu0 %v684
    %v2062 = vpop.f32.mrf.mxu0
    %v2063 = vadd.f32 %v2014, %v2062
    %v2064 = vpop.f32.mrf.mxu0
    %v2065 = vadd.f32 %v2016, %v2064
    %2066 = vmatmul.bf16.gmra.mxu0 %v698
    %v2067 = vpop.f32.mrf.mxu0
    %v2068 = vadd.f32 %v2019, %v2067
    %v2069 = vpop.f32.mrf.mxu0
    %v2070 = vadd.f32 %v2021, %v2069
    %2071 = vmatmul.bf16.gmra.mxu0 %v712
    %v2072 = vpop.f32.mrf.mxu0
    %v2073 = vadd.f32 %v2024, %v2072
    %v2074 = vpop.f32.mrf.mxu0
    %v2075 = vadd.f32 %v2026, %v2074
    %2076 = vmatmul.bf16.gmra.mxu0 %v726
    %v2077 = vpop.f32.mrf.mxu0
    %v2078 = vadd.f32 %v2029, %v2077
    %v2079 = vpop.f32.mrf.mxu0
    %v2080 = vadd.f32 %v2031, %v2079
    %2081 = vmatmul.bf16.gmra.mxu0 %v740
    %v2082 = vpop.f32.mrf.mxu0
    %v2083 = vadd.f32 %v2034, %v2082
    %v2084 = vpop.f32.mrf.mxu0
    %v2085 = vadd.f32 %v2036, %v2084
    %2086 = vmatmul.bf16.gmra.mxu0 %v754
    %v2087 = vpop.f32.mrf.mxu0
    %v2088 = vadd.f32 %v2039, %v2087
    %v2089 = vpop.f32.mrf.mxu0
    %v2090 = vadd.f32 %v2041, %v2089
    %2091 = vmatmul.bf16.gmra.mxu0 %v768
    %v2092 = vpop.f32.mrf.mxu0
    %v2093 = vadd.f32 %v2044, %v2092
    %v2094 = vpop.f32.mrf.mxu0
    %v2095 = vadd.f32 %v2046, %v2094
    %2096 = vmatmul.bf16.gmra.mxu0 %v782
    %v2097 = vpop.f32.mrf.mxu0
    %v2098 = vadd.f32 %v2049, %v2097
    %v2099 = vpop.f32.mrf.mxu0
    %v2100 = vadd.f32 %v2051, %v2099
    %2101 = vdwg.mxu0
    %2102 = vmatpush.bf16.msra.mxu0 %v1593
    %2103 = vmatpush.bf16.msra.mxu0 %v1591
    %2104 = vmatpush.bf16.msra.mxu0 %v1589
    %2105 = vmatpush.bf16.msra.mxu0 %v1587
    %2106 = vmatpush.bf16.msra.mxu0 %v1585
    %2107 = vmatpush.bf16.msra.mxu0 %v1583
    %2108 = vmatpush.bf16.msra.mxu0 %v1581
    %2109 = vmatpush.bf16.msra.mxu0 %v1579
    %2110 = vmatmul.bf16.gmra.mxu0 %v685
    %v2111 = vpop.f32.mrf.mxu0
    %v2112 = vadd.f32 %v2063, %v2111
    %v2113 = vpop.f32.mrf.mxu0
    %v2114 = vadd.f32 %v2065, %v2113
    %2115 = vmatmul.bf16.gmra.mxu0 %v699
    %v2116 = vpop.f32.mrf.mxu0
    %v2117 = vadd.f32 %v2068, %v2116
    %v2118 = vpop.f32.mrf.mxu0
    %v2119 = vadd.f32 %v2070, %v2118
    %2120 = vmatmul.bf16.gmra.mxu0 %v713
    %v2121 = vpop.f32.mrf.mxu0
    %v2122 = vadd.f32 %v2073, %v2121
    %v2123 = vpop.f32.mrf.mxu0
    %v2124 = vadd.f32 %v2075, %v2123
    %2125 = vmatmul.bf16.gmra.mxu0 %v727
    %v2126 = vpop.f32.mrf.mxu0
    %v2127 = vadd.f32 %v2078, %v2126
    %v2128 = vpop.f32.mrf.mxu0
    %v2129 = vadd.f32 %v2080, %v2128
    %2130 = vmatmul.bf16.gmra.mxu0 %v741
    %v2131 = vpop.f32.mrf.mxu0
    %v2132 = vadd.f32 %v2083, %v2131
    %v2133 = vpop.f32.mrf.mxu0
    %v2134 = vadd.f32 %v2085, %v2133
    %2135 = vmatmul.bf16.gmra.mxu0 %v755
    %v2136 = vpop.f32.mrf.mxu0
    %v2137 = vadd.f32 %v2088, %v2136
    %v2138 = vpop.f32.mrf.mxu0
    %v2139 = vadd.f32 %v2090, %v2138
    %2140 = vmatmul.bf16.gmra.mxu0 %v769
    %v2141 = vpop.f32.mrf.mxu0
    %v2142 = vadd.f32 %v2093, %v2141
    %v2143 = vpop.f32.mrf.mxu0
    %v2144 = vadd.f32 %v2095, %v2143
    %2145 = vmatmul.bf16.gmra.mxu0 %v783
    %v2146 = vpop.f32.mrf.mxu0
    %v2147 = vadd.f32 %v2098, %v2146
    %v2148 = vpop.f32.mrf.mxu0
    %v2149 = vadd.f32 %v2100, %v2148
    %2150 = vdwg.mxu0
    %2151 = vmatpush.bf16.msra.mxu0 %v1609
    %2152 = vmatpush.bf16.msra.mxu0 %v1607
    %2153 = vmatpush.bf16.msra.mxu0 %v1605
    %2154 = vmatpush.bf16.msra.mxu0 %v1603
    %2155 = vmatpush.bf16.msra.mxu0 %v1601
    %2156 = vmatpush.bf16.msra.mxu0 %v1599
    %2157 = vmatpush.bf16.msra.mxu0 %v1597
    %2158 = vmatpush.bf16.msra.mxu0 %v1595
    %2159 = vmatmul.bf16.gmra.mxu0 %v686
    %v2160 = vpop.f32.mrf.mxu0
    %v2161 = vadd.f32 %v2112, %v2160
    %v2162 = vpop.f32.mrf.mxu0
    %v2163 = vadd.f32 %v2114, %v2162
    %2164 = vmatmul.bf16.gmra.mxu0 %v700
    %v2165 = vpop.f32.mrf.mxu0
    %v2166 = vadd.f32 %v2117, %v2165
    %v2167 = vpop.f32.mrf.mxu0
    %v2168 = vadd.f32 %v2119, %v2167
    %2169 = vmatmul.bf16.gmra.mxu0 %v714
    %v2170 = vpop.f32.mrf.mxu0
    %v2171 = vadd.f32 %v2122, %v2170
    %v2172 = vpop.f32.mrf.mxu0
    %v2173 = vadd.f32 %v2124, %v2172
    %2174 = vmatmul.bf16.gmra.mxu0 %v728
    %v2175 = vpop.f32.mrf.mxu0
    %v2176 = vadd.f32 %v2127, %v2175
    %v2177 = vpop.f32.mrf.mxu0
    %v2178 = vadd.f32 %v2129, %v2177
    %2179 = vmatmul.bf16.gmra.mxu0 %v742
    %v2180 = vpop.f32.mrf.mxu0
    %v2181 = vadd.f32 %v2132, %v2180
    %v2182 = vpop.f32.mrf.mxu0
    %v2183 = vadd.f32 %v2134, %v2182
    %2184 = vmatmul.bf16.gmra.mxu0 %v756
    %v2185 = vpop.f32.mrf.mxu0
    %v2186 = vadd.f32 %v2137, %v2185
    %v2187 = vpop.f32.mrf.mxu0
    %v2188 = vadd.f32 %v2139, %v2187
    %2189 = vmatmul.bf16.gmra.mxu0 %v770
    %v2190 = vpop.f32.mrf.mxu0
    %v2191 = vadd.f32 %v2142, %v2190
    %v2192 = vpop.f32.mrf.mxu0
    %v2193 = vadd.f32 %v2144, %v2192
    %2194 = vmatmul.bf16.gmra.mxu0 %v784
    %v2195 = vpop.f32.mrf.mxu0
    %v2196 = vadd.f32 %v2147, %v2195
    %v2197 = vpop.f32.mrf.mxu0
    %v2198 = vadd.f32 %v2149, %v2197
    %2199 = vdwg.mxu0
    %2200 = vmatpush.bf16.msra.mxu0 %v1625
    %2201 = vmatpush.bf16.msra.mxu0 %v1623
    %2202 = vmatpush.bf16.msra.mxu0 %v1621
    %2203 = vmatpush.bf16.msra.mxu0 %v1619
    %2204 = vmatpush.bf16.msra.mxu0 %v1617
    %2205 = vmatpush.bf16.msra.mxu0 %v1615
    %2206 = vmatpush.bf16.msra.mxu0 %v1613
    %2207 = vmatpush.bf16.msra.mxu0 %v1611
    %2208 = vmatmul.bf16.gmra.mxu0 %v687
    %v2209 = vpop.f32.mrf.mxu0
    %v2210 = vadd.f32 %v2161, %v2209
    %v2211 = vpop.f32.mrf.mxu0
    %v2212 = vadd.f32 %v2163, %v2211
    %2213 = vmatmul.bf16.gmra.mxu0 %v701
    %v2214 = vpop.f32.mrf.mxu0
    %v2215 = vadd.f32 %v2166, %v2214
    %v2216 = vpop.f32.mrf.mxu0
    %v2217 = vadd.f32 %v2168, %v2216
    %2218 = vmatmul.bf16.gmra.mxu0 %v715
    %v2219 = vpop.f32.mrf.mxu0
    %v2220 = vadd.f32 %v2171, %v2219
    %v2221 = vpop.f32.mrf.mxu0
    %v2222 = vadd.f32 %v2173, %v2221
    %2223 = vmatmul.bf16.gmra.mxu0 %v729
    %v2224 = vpop.f32.mrf.mxu0
    %v2225 = vadd.f32 %v2176, %v2224
    %v2226 = vpop.f32.mrf.mxu0
    %v2227 = vadd.f32 %v2178, %v2226
    %2228 = vmatmul.bf16.gmra.mxu0 %v743
    %v2229 = vpop.f32.mrf.mxu0
    %v2230 = vadd.f32 %v2181, %v2229
    %v2231 = vpop.f32.mrf.mxu0
    %v2232 = vadd.f32 %v2183, %v2231
    %2233 = vmatmul.bf16.gmra.mxu0 %v757
    %v2234 = vpop.f32.mrf.mxu0
    %v2235 = vadd.f32 %v2186, %v2234
    %v2236 = vpop.f32.mrf.mxu0
    %v2237 = vadd.f32 %v2188, %v2236
    %2238 = vmatmul.bf16.gmra.mxu0 %v771
    %v2239 = vpop.f32.mrf.mxu0
    %v2240 = vadd.f32 %v2191, %v2239
    %v2241 = vpop.f32.mrf.mxu0
    %v2242 = vadd.f32 %v2193, %v2241
    %2243 = vmatmul.bf16.gmra.mxu0 %v785
    %v2244 = vpop.f32.mrf.mxu0
    %v2245 = vadd.f32 %v2196, %v2244
    %v2246 = vpop.f32.mrf.mxu0
    %v2247 = vadd.f32 %v2198, %v2246
    %2248 = vdwg.mxu0
    %2249 = vmatpush.bf16.msra.mxu0 %v1641
    %2250 = vmatpush.bf16.msra.mxu0 %v1639
    %2251 = vmatpush.bf16.msra.mxu0 %v1637
    %2252 = vmatpush.bf16.msra.mxu0 %v1635
    %2253 = vmatpush.bf16.msra.mxu0 %v1633
    %2254 = vmatpush.bf16.msra.mxu0 %v1631
    %2255 = vmatpush.bf16.msra.mxu0 %v1629
    %2256 = vmatpush.bf16.msra.mxu0 %v1627
    %2257 = vmatmul.bf16.gmra.mxu0 %v688
    %v2258 = vpop.f32.mrf.mxu0
    %v2259 = vadd.f32 %v2210, %v2258
    %v2260 = vpop.f32.mrf.mxu0
    %v2261 = vadd.f32 %v2212, %v2260
    %2262 = vmatmul.bf16.gmra.mxu0 %v702
    %v2263 = vpop.f32.mrf.mxu0
    %v2264 = vadd.f32 %v2215, %v2263
    %v2265 = vpop.f32.mrf.mxu0
    %v2266 = vadd.f32 %v2217, %v2265
    %2267 = vmatmul.bf16.gmra.mxu0 %v716
    %v2268 = vpop.f32.mrf.mxu0
    %v2269 = vadd.f32 %v2220, %v2268
    %v2270 = vpop.f32.mrf.mxu0
    %v2271 = vadd.f32 %v2222, %v2270
    %2272 = vmatmul.bf16.gmra.mxu0 %v730
    %v2273 = vpop.f32.mrf.mxu0
    %v2274 = vadd.f32 %v2225, %v2273
    %v2275 = vpop.f32.mrf.mxu0
    %v2276 = vadd.f32 %v2227, %v2275
    %2277 = vmatmul.bf16.gmra.mxu0 %v744
    %v2278 = vpop.f32.mrf.mxu0
    %v2279 = vadd.f32 %v2230, %v2278
    %v2280 = vpop.f32.mrf.mxu0
    %v2281 = vadd.f32 %v2232, %v2280
    %2282 = vmatmul.bf16.gmra.mxu0 %v758
    %v2283 = vpop.f32.mrf.mxu0
    %v2284 = vadd.f32 %v2235, %v2283
    %v2285 = vpop.f32.mrf.mxu0
    %v2286 = vadd.f32 %v2237, %v2285
    %2287 = vmatmul.bf16.gmra.mxu0 %v772
    %v2288 = vpop.f32.mrf.mxu0
    %v2289 = vadd.f32 %v2240, %v2288
    %v2290 = vpop.f32.mrf.mxu0
    %v2291 = vadd.f32 %v2242, %v2290
    %2292 = vmatmul.bf16.gmra.mxu0 %v786
    %v2293 = vpop.f32.mrf.mxu0
    %v2294 = vadd.f32 %v2245, %v2293
    %v2295 = vpop.f32.mrf.mxu0
    %v2296 = vadd.f32 %v2247, %v2295
    %2297 = vdwg.mxu0
    %2298 = vmatpush.bf16.msra.mxu0 %v1657
    %2299 = vmatpush.bf16.msra.mxu0 %v1655
    %2300 = vmatpush.bf16.msra.mxu0 %v1653
    %2301 = vmatpush.bf16.msra.mxu0 %v1651
    %2302 = vmatpush.bf16.msra.mxu0 %v1649
    %2303 = vmatpush.bf16.msra.mxu0 %v1647
    %2304 = vmatpush.bf16.msra.mxu0 %v1645
    %2305 = vmatpush.bf16.msra.mxu0 %v1643
    %2306 = vmatmul.bf16.gmra.mxu0 %v689
    %v2307 = vpop.f32.mrf.mxu0
    %v2308 = vadd.f32 %v2259, %v2307
    %v2309 = vpop.f32.mrf.mxu0
    %v2310 = vadd.f32 %v2261, %v2309
    %2311 = vmatmul.bf16.gmra.mxu0 %v703
    %v2312 = vpop.f32.mrf.mxu0
    %v2313 = vadd.f32 %v2264, %v2312
    %v2314 = vpop.f32.mrf.mxu0
    %v2315 = vadd.f32 %v2266, %v2314
    %2316 = vmatmul.bf16.gmra.mxu0 %v717
    %v2317 = vpop.f32.mrf.mxu0
    %v2318 = vadd.f32 %v2269, %v2317
    %v2319 = vpop.f32.mrf.mxu0
    %v2320 = vadd.f32 %v2271, %v2319
    %2321 = vmatmul.bf16.gmra.mxu0 %v731
    %v2322 = vpop.f32.mrf.mxu0
    %v2323 = vadd.f32 %v2274, %v2322
    %v2324 = vpop.f32.mrf.mxu0
    %v2325 = vadd.f32 %v2276, %v2324
    %2326 = vmatmul.bf16.gmra.mxu0 %v745
    %v2327 = vpop.f32.mrf.mxu0
    %v2328 = vadd.f32 %v2279, %v2327
    %v2329 = vpop.f32.mrf.mxu0
    %v2330 = vadd.f32 %v2281, %v2329
    %2331 = vmatmul.bf16.gmra.mxu0 %v759
    %v2332 = vpop.f32.mrf.mxu0
    %v2333 = vadd.f32 %v2284, %v2332
    %v2334 = vpop.f32.mrf.mxu0
    %v2335 = vadd.f32 %v2286, %v2334
    %2336 = vmatmul.bf16.gmra.mxu0 %v773
    %v2337 = vpop.f32.mrf.mxu0
    %v2338 = vadd.f32 %v2289, %v2337
    %v2339 = vpop.f32.mrf.mxu0
    %v2340 = vadd.f32 %v2291, %v2339
    %2341 = vmatmul.bf16.gmra.mxu0 %v787
    %v2342 = vpop.f32.mrf.mxu0
    %v2343 = vadd.f32 %v2294, %v2342
    %v2344 = vpop.f32.mrf.mxu0
    %v2345 = vadd.f32 %v2296, %v2344
    %2346 = vdwg.mxu0
    %2347 = vmatpush.bf16.msra.mxu0 %v1673
    %2348 = vmatpush.bf16.msra.mxu0 %v1671
    %2349 = vmatpush.bf16.msra.mxu0 %v1669
    %2350 = vmatpush.bf16.msra.mxu0 %v1667
    %2351 = vmatpush.bf16.msra.mxu0 %v1665
    %2352 = vmatpush.bf16.msra.mxu0 %v1663
    %2353 = vmatpush.bf16.msra.mxu0 %v1661
    %2354 = vmatpush.bf16.msra.mxu0 %v1659
    %2355 = vmatmul.bf16.gmra.mxu0 %v690
    %v2356 = vpop.f32.mrf.mxu0
    %v2357 = vadd.f32 %v2308, %v2356
    %v2358 = vpop.f32.mrf.mxu0
    %v2359 = vadd.f32 %v2310, %v2358
    %2360 = vmatmul.bf16.gmra.mxu0 %v704
    %v2361 = vpop.f32.mrf.mxu0
    %v2362 = vadd.f32 %v2313, %v2361
    %v2363 = vpop.f32.mrf.mxu0
    %v2364 = vadd.f32 %v2315, %v2363
    %2365 = vmatmul.bf16.gmra.mxu0 %v718
    %v2366 = vpop.f32.mrf.mxu0
    %v2367 = vadd.f32 %v2318, %v2366
    %v2368 = vpop.f32.mrf.mxu0
    %v2369 = vadd.f32 %v2320, %v2368
    %2370 = vmatmul.bf16.gmra.mxu0 %v732
    %v2371 = vpop.f32.mrf.mxu0
    %v2372 = vadd.f32 %v2323, %v2371
    %v2373 = vpop.f32.mrf.mxu0
    %v2374 = vadd.f32 %v2325, %v2373
    %2375 = vmatmul.bf16.gmra.mxu0 %v746
    %v2376 = vpop.f32.mrf.mxu0
    %v2377 = vadd.f32 %v2328, %v2376
    %v2378 = vpop.f32.mrf.mxu0
    %v2379 = vadd.f32 %v2330, %v2378
    %2380 = vmatmul.bf16.gmra.mxu0 %v760
    %v2381 = vpop.f32.mrf.mxu0
    %v2382 = vadd.f32 %v2333, %v2381
    %v2383 = vpop.f32.mrf.mxu0
    %v2384 = vadd.f32 %v2335, %v2383
    %2385 = vmatmul.bf16.gmra.mxu0 %v774
    %v2386 = vpop.f32.mrf.mxu0
    %v2387 = vadd.f32 %v2338, %v2386
    %v2388 = vpop.f32.mrf.mxu0
    %v2389 = vadd.f32 %v2340, %v2388
    %2390 = vmatmul.bf16.gmra.mxu0 %v788
    %v2391 = vpop.f32.mrf.mxu0
    %v2392 = vadd.f32 %v2343, %v2391
    %v2393 = vpop.f32.mrf.mxu0
    %v2394 = vadd.f32 %v2345, %v2393
    %2395 = vdwg.mxu0
    %2396 = vmatpush.bf16.msra.mxu0 %v1689
    %2397 = vmatpush.bf16.msra.mxu0 %v1687
    %2398 = vmatpush.bf16.msra.mxu0 %v1685
    %2399 = vmatpush.bf16.msra.mxu0 %v1683
    %2400 = vmatpush.bf16.msra.mxu0 %v1681
    %2401 = vmatpush.bf16.msra.mxu0 %v1679
    %2402 = vmatpush.bf16.msra.mxu0 %v1677
    %2403 = vmatpush.bf16.msra.mxu0 %v1675
    %2404 = vmatmul.bf16.gmra.mxu0 %v691
    %v2405 = vpop.f32.mrf.mxu0
    %v2406 = vadd.f32 %v2357, %v2405
    %v2407 = vpop.f32.mrf.mxu0
    %v2408 = vadd.f32 %v2359, %v2407
    %2409 = vmatmul.bf16.gmra.mxu0 %v705
    %v2410 = vpop.f32.mrf.mxu0
    %v2411 = vadd.f32 %v2362, %v2410
    %v2412 = vpop.f32.mrf.mxu0
    %v2413 = vadd.f32 %v2364, %v2412
    %2414 = vmatmul.bf16.gmra.mxu0 %v719
    %v2415 = vpop.f32.mrf.mxu0
    %v2416 = vadd.f32 %v2367, %v2415
    %v2417 = vpop.f32.mrf.mxu0
    %v2418 = vadd.f32 %v2369, %v2417
    %2419 = vmatmul.bf16.gmra.mxu0 %v733
    %v2420 = vpop.f32.mrf.mxu0
    %v2421 = vadd.f32 %v2372, %v2420
    %v2422 = vpop.f32.mrf.mxu0
    %v2423 = vadd.f32 %v2374, %v2422
    %2424 = vmatmul.bf16.gmra.mxu0 %v747
    %v2425 = vpop.f32.mrf.mxu0
    %v2426 = vadd.f32 %v2377, %v2425
    %v2427 = vpop.f32.mrf.mxu0
    %v2428 = vadd.f32 %v2379, %v2427
    %2429 = vmatmul.bf16.gmra.mxu0 %v761
    %v2430 = vpop.f32.mrf.mxu0
    %v2431 = vadd.f32 %v2382, %v2430
    %v2432 = vpop.f32.mrf.mxu0
    %v2433 = vadd.f32 %v2384, %v2432
    %2434 = vmatmul.bf16.gmra.mxu0 %v775
    %v2435 = vpop.f32.mrf.mxu0
    %v2436 = vadd.f32 %v2387, %v2435
    %v2437 = vpop.f32.mrf.mxu0
    %v2438 = vadd.f32 %v2389, %v2437
    %2439 = vmatmul.bf16.gmra.mxu0 %v789
    %v2440 = vpop.f32.mrf.mxu0
    %v2441 = vadd.f32 %v2392, %v2440
    %v2442 = vpop.f32.mrf.mxu0
    %v2443 = vadd.f32 %v2394, %v2442
    %2444 = vdwg.mxu0
    %2445 = vmatpush.bf16.msra.mxu0 %v1705
    %2446 = vmatpush.bf16.msra.mxu0 %v1703
    %2447 = vmatpush.bf16.msra.mxu0 %v1701
    %2448 = vmatpush.bf16.msra.mxu0 %v1699
    %2449 = vmatpush.bf16.msra.mxu0 %v1697
    %2450 = vmatpush.bf16.msra.mxu0 %v1695
    %2451 = vmatpush.bf16.msra.mxu0 %v1693
    %2452 = vmatpush.bf16.msra.mxu0 %v1691
    %2453 = vmatmul.bf16.gmra.mxu0 %v692
    %v2454 = vpop.f32.mrf.mxu0
    %v2455 = vadd.f32 %v2406, %v2454
    %v2456 = vpop.f32.mrf.mxu0
    %v2457 = vadd.f32 %v2408, %v2456
    %2458 = vmatmul.bf16.gmra.mxu0 %v706
    %v2459 = vpop.f32.mrf.mxu0
    %v2460 = vadd.f32 %v2411, %v2459
    %v2461 = vpop.f32.mrf.mxu0
    %v2462 = vadd.f32 %v2413, %v2461
    %2463 = vmatmul.bf16.gmra.mxu0 %v720
    %v2464 = vpop.f32.mrf.mxu0
    %v2465 = vadd.f32 %v2416, %v2464
    %v2466 = vpop.f32.mrf.mxu0
    %v2467 = vadd.f32 %v2418, %v2466
    %2468 = vmatmul.bf16.gmra.mxu0 %v734
    %v2469 = vpop.f32.mrf.mxu0
    %v2470 = vadd.f32 %v2421, %v2469
    %v2471 = vpop.f32.mrf.mxu0
    %v2472 = vadd.f32 %v2423, %v2471
    %2473 = vmatmul.bf16.gmra.mxu0 %v748
    %v2474 = vpop.f32.mrf.mxu0
    %v2475 = vadd.f32 %v2426, %v2474
    %v2476 = vpop.f32.mrf.mxu0
    %v2477 = vadd.f32 %v2428, %v2476
    %2478 = vmatmul.bf16.gmra.mxu0 %v762
    %v2479 = vpop.f32.mrf.mxu0
    %v2480 = vadd.f32 %v2431, %v2479
    %v2481 = vpop.f32.mrf.mxu0
    %v2482 = vadd.f32 %v2433, %v2481
    %2483 = vmatmul.bf16.gmra.mxu0 %v776
    %v2484 = vpop.f32.mrf.mxu0
    %v2485 = vadd.f32 %v2436, %v2484
    %v2486 = vpop.f32.mrf.mxu0
    %v2487 = vadd.f32 %v2438, %v2486
    %2488 = vmatmul.bf16.gmra.mxu0 %v790
    %v2489 = vpop.f32.mrf.mxu0
    %v2490 = vadd.f32 %v2441, %v2489
    %v2491 = vpop.f32.mrf.mxu0
    %v2492 = vadd.f32 %v2443, %v2491
    %2493 = vdwg.mxu0
    %2494 = vmatpush.bf16.msra.mxu0 %v1721
    %2495 = vmatpush.bf16.msra.mxu0 %v1719
    %2496 = vmatpush.bf16.msra.mxu0 %v1717
    %2497 = vmatpush.bf16.msra.mxu0 %v1715
    %2498 = vmatpush.bf16.msra.mxu0 %v1713
    %2499 = vmatpush.bf16.msra.mxu0 %v1711
    %2500 = vmatpush.bf16.msra.mxu0 %v1709
    %2501 = vmatpush.bf16.msra.mxu0 %v1707
    %2502 = vmatmul.bf16.gmra.mxu0 %v693
    %v2503 = vpop.f32.mrf.mxu0
    %v2504 = vadd.f32 %v2455, %v2503
    %v2505 = vpop.f32.mrf.mxu0
    %v2506 = vadd.f32 %v2457, %v2505
    %2507 = vmatmul.bf16.gmra.mxu0 %v707
    %v2508 = vpop.f32.mrf.mxu0
    %v2509 = vadd.f32 %v2460, %v2508
    %v2510 = vpop.f32.mrf.mxu0
    %v2511 = vadd.f32 %v2462, %v2510
    %2512 = vmatmul.bf16.gmra.mxu0 %v721
    %v2513 = vpop.f32.mrf.mxu0
    %v2514 = vadd.f32 %v2465, %v2513
    %v2515 = vpop.f32.mrf.mxu0
    %v2516 = vadd.f32 %v2467, %v2515
    %2517 = vmatmul.bf16.gmra.mxu0 %v735
    %v2518 = vpop.f32.mrf.mxu0
    %v2519 = vadd.f32 %v2470, %v2518
    %v2520 = vpop.f32.mrf.mxu0
    %v2521 = vadd.f32 %v2472, %v2520
    %2522 = vmatmul.bf16.gmra.mxu0 %v749
    %v2523 = vpop.f32.mrf.mxu0
    %v2524 = vadd.f32 %v2475, %v2523
    %v2525 = vpop.f32.mrf.mxu0
    %v2526 = vadd.f32 %v2477, %v2525
    %2527 = vmatmul.bf16.gmra.mxu0 %v763
    %v2528 = vpop.f32.mrf.mxu0
    %v2529 = vadd.f32 %v2480, %v2528
    %v2530 = vpop.f32.mrf.mxu0
    %v2531 = vadd.f32 %v2482, %v2530
    %2532 = vmatmul.bf16.gmra.mxu0 %v777
    %v2533 = vpop.f32.mrf.mxu0
    %v2534 = vadd.f32 %v2485, %v2533
    %v2535 = vpop.f32.mrf.mxu0
    %v2536 = vadd.f32 %v2487, %v2535
    %2537 = vmatmul.bf16.gmra.mxu0 %v791
    %v2538 = vpop.f32.mrf.mxu0
    %v2539 = vadd.f32 %v2490, %v2538
    %v2540 = vpop.f32.mrf.mxu0
    %v2541 = vadd.f32 %v2492, %v2540
    %2542 = vdwg.mxu0
    %2543 = vmatpush.bf16.msra.mxu0 %v1737
    %2544 = vmatpush.bf16.msra.mxu0 %v1735
    %2545 = vmatpush.bf16.msra.mxu0 %v1733
    %2546 = vmatpush.bf16.msra.mxu0 %v1731
    %2547 = vmatpush.bf16.msra.mxu0 %v1729
    %2548 = vmatpush.bf16.msra.mxu0 %v1727
    %2549 = vmatpush.bf16.msra.mxu0 %v1725
    %2550 = vmatpush.bf16.msra.mxu0 %v1723
    %2551 = vmatmul.bf16.gmra.mxu0 %v694
    %v2552 = vpop.f32.mrf.mxu0
    %v2553 = vadd.f32 %v2504, %v2552
    %v2554 = vpop.f32.mrf.mxu0
    %v2555 = vadd.f32 %v2506, %v2554
    %2556 = vmatmul.bf16.gmra.mxu0 %v708
    %v2557 = vpop.f32.mrf.mxu0
    %v2558 = vadd.f32 %v2509, %v2557
    %v2559 = vpop.f32.mrf.mxu0
    %v2560 = vadd.f32 %v2511, %v2559
    %2561 = vmatmul.bf16.gmra.mxu0 %v722
    %v2562 = vpop.f32.mrf.mxu0
    %v2563 = vadd.f32 %v2514, %v2562
    %v2564 = vpop.f32.mrf.mxu0
    %v2565 = vadd.f32 %v2516, %v2564
    %2566 = vmatmul.bf16.gmra.mxu0 %v736
    %v2567 = vpop.f32.mrf.mxu0
    %v2568 = vadd.f32 %v2519, %v2567
    %v2569 = vpop.f32.mrf.mxu0
    %v2570 = vadd.f32 %v2521, %v2569
    %2571 = vmatmul.bf16.gmra.mxu0 %v750
    %v2572 = vpop.f32.mrf.mxu0
    %v2573 = vadd.f32 %v2524, %v2572
    %v2574 = vpop.f32.mrf.mxu0
    %v2575 = vadd.f32 %v2526, %v2574
    %2576 = vmatmul.bf16.gmra.mxu0 %v764
    %v2577 = vpop.f32.mrf.mxu0
    %v2578 = vadd.f32 %v2529, %v2577
    %v2579 = vpop.f32.mrf.mxu0
    %v2580 = vadd.f32 %v2531, %v2579
    %2581 = vmatmul.bf16.gmra.mxu0 %v778
    %v2582 = vpop.f32.mrf.mxu0
    %v2583 = vadd.f32 %v2534, %v2582
    %v2584 = vpop.f32.mrf.mxu0
    %v2585 = vadd.f32 %v2536, %v2584
    %2586 = vmatmul.bf16.gmra.mxu0 %v792
    %v2587 = vpop.f32.mrf.mxu0
    %v2588 = vadd.f32 %v2539, %v2587
    %v2589 = vpop.f32.mrf.mxu0
    %v2590 = vadd.f32 %v2541, %v2589
    %2591 = vdwg.mxu0
    %2592 = vmatpush.bf16.msra.mxu0 %v1753
    %2593 = vmatpush.bf16.msra.mxu0 %v1751
    %2594 = vmatpush.bf16.msra.mxu0 %v1749
    %2595 = vmatpush.bf16.msra.mxu0 %v1747
    %2596 = vmatpush.bf16.msra.mxu0 %v1745
    %2597 = vmatpush.bf16.msra.mxu0 %v1743
    %2598 = vmatpush.bf16.msra.mxu0 %v1741
    %2599 = vmatpush.bf16.msra.mxu0 %v1739
    %2600 = vmatmul.bf16.gmra.mxu0 %v695
    %v2601 = vpop.f32.mrf.mxu0
    %v2602 = vadd.f32 %v2553, %v2601
    %v2603 = vpop.f32.mrf.mxu0
    %v2604 = vadd.f32 %v2555, %v2603
    %2605 = vmatmul.bf16.gmra.mxu0 %v709
    %v2606 = vpop.f32.mrf.mxu0
    %v2607 = vadd.f32 %v2558, %v2606
    %v2608 = vpop.f32.mrf.mxu0
    %v2609 = vadd.f32 %v2560, %v2608
    %2610 = vmatmul.bf16.gmra.mxu0 %v723
    %v2611 = vpop.f32.mrf.mxu0
    %v2612 = vadd.f32 %v2563, %v2611
    %v2613 = vpop.f32.mrf.mxu0
    %v2614 = vadd.f32 %v2565, %v2613
    %2615 = vmatmul.bf16.gmra.mxu0 %v737
    %v2616 = vpop.f32.mrf.mxu0
    %v2617 = vadd.f32 %v2568, %v2616
    %v2618 = vpop.f32.mrf.mxu0
    %v2619 = vadd.f32 %v2570, %v2618
    %2620 = vmatmul.bf16.gmra.mxu0 %v751
    %v2621 = vpop.f32.mrf.mxu0
    %v2622 = vadd.f32 %v2573, %v2621
    %v2623 = vpop.f32.mrf.mxu0
    %v2624 = vadd.f32 %v2575, %v2623
    %2625 = vmatmul.bf16.gmra.mxu0 %v765
    %v2626 = vpop.f32.mrf.mxu0
    %v2627 = vadd.f32 %v2578, %v2626
    %v2628 = vpop.f32.mrf.mxu0
    %v2629 = vadd.f32 %v2580, %v2628
    %2630 = vmatmul.bf16.gmra.mxu0 %v779
    %v2631 = vpop.f32.mrf.mxu0
    %v2632 = vadd.f32 %v2583, %v2631
    %v2633 = vpop.f32.mrf.mxu0
    %v2634 = vadd.f32 %v2585, %v2633
    %2635 = vmatmul.bf16.gmra.mxu0 %v793
    %v2636 = vpop.f32.mrf.mxu0
    %v2637 = vadd.f32 %v2588, %v2636
    %v2638 = vpop.f32.mrf.mxu0
    %v2639 = vadd.f32 %v2590, %v2638
    %2640 = vdwg.mxu0
    %2641 = vmatpush.bf16.msra.mxu0 0
    %2642 = vmatpush.bf16.msra.mxu0 0
    %2643 = vmatpush.bf16.msra.mxu0 0
    %2644 = vmatpush.bf16.msra.mxu0 0
    %2645 = vmatpush.bf16.msra.mxu0 %v1761
    %2646 = vmatpush.bf16.msra.mxu0 %v1759
    %2647 = vmatpush.bf16.msra.mxu0 %v1757
    %2648 = vmatpush.bf16.msra.mxu0 %v1755
    %2649 = vmatmul.bf16.gmra.mxu0 %v1981
    %v2650 = vpop.f32.mrf.mxu0
    %v2651 = vadd.f32 %v2602, %v2650
    %v2652 = vpop.f32.mrf.mxu0
    %v2653 = vadd.f32 %v2604, %v2652
    %2654 = vmatmul.bf16.gmra.mxu0 %v1984
    %v2655 = vpop.f32.mrf.mxu0
    %v2656 = vadd.f32 %v2607, %v2655
    %v2657 = vpop.f32.mrf.mxu0
    %v2658 = vadd.f32 %v2609, %v2657
    %2659 = vmatmul.bf16.gmra.mxu0 %v1987
    %v2660 = vpop.f32.mrf.mxu0
    %v2661 = vadd.f32 %v2612, %v2660
    %v2662 = vpop.f32.mrf.mxu0
    %v2663 = vadd.f32 %v2614, %v2662
    %2664 = vmatmul.bf16.gmra.mxu0 %v1990
    %v2665 = vpop.f32.mrf.mxu0
    %v2666 = vadd.f32 %v2617, %v2665
    %v2667 = vpop.f32.mrf.mxu0
    %v2668 = vadd.f32 %v2619, %v2667
    %2669 = vmatmul.bf16.gmra.mxu0 %v1993
    %v2670 = vpop.f32.mrf.mxu0
    %v2671 = vadd.f32 %v2622, %v2670
    %v2672 = vpop.f32.mrf.mxu0
    %v2673 = vadd.f32 %v2624, %v2672
    %2674 = vmatmul.bf16.gmra.mxu0 %v1996
    %v2675 = vpop.f32.mrf.mxu0
    %v2676 = vadd.f32 %v2627, %v2675
    %v2677 = vpop.f32.mrf.mxu0
    %v2678 = vadd.f32 %v2629, %v2677
    %2679 = vmatmul.bf16.gmra.mxu0 %v1999
    %v2680 = vpop.f32.mrf.mxu0
    %v2681 = vadd.f32 %v2632, %v2680
    %v2682 = vpop.f32.mrf.mxu0
    %v2683 = vadd.f32 %v2634, %v2682
    %2684 = vmatmul.bf16.gmra.mxu0 %v2002
    %v2685 = vpop.f32.mrf.mxu0
    %v2686 = vadd.f32 %v2637, %v2685
    %v2687 = vpop.f32.mrf.mxu0
    %v2688 = vadd.f32 %v2639, %v2687
    %2689 = vdwg.mxu0
    %2690 = vmatpush.bf16.msra.mxu0 %v1562
    %2691 = vmatpush.bf16.msra.mxu0 %v1560
    %2692 = vmatpush.bf16.msra.mxu0 %v1558
    %2693 = vmatpush.bf16.msra.mxu0 %v1556
    %2694 = vmatpush.bf16.msra.mxu0 %v1554
    %2695 = vmatpush.bf16.msra.mxu0 %v1552
    %2696 = vmatpush.bf16.msra.mxu0 %v1550
    %2697 = vmatpush.bf16.msra.mxu0 %v1548
    %2698 = vmatmul.bf16.gmra.mxu0 %v683
    %v2699 = vpop.f32.mrf.mxu0
    %v2700 = vadd.f32 0.0, %v2699
    %v2701 = vpop.f32.mrf.mxu0
    %v2702 = vadd.f32 0.0, %v2701
    %2703 = vmatmul.bf16.gmra.mxu0 %v697
    %v2704 = vpop.f32.mrf.mxu0
    %v2705 = vadd.f32 0.0, %v2704
    %v2706 = vpop.f32.mrf.mxu0
    %v2707 = vadd.f32 0.0, %v2706
    %2708 = vmatmul.bf16.gmra.mxu0 %v711
    %v2709 = vpop.f32.mrf.mxu0
    %v2710 = vadd.f32 0.0, %v2709
    %v2711 = vpop.f32.mrf.mxu0
    %v2712 = vadd.f32 0.0, %v2711
    %2713 = vmatmul.bf16.gmra.mxu0 %v725
    %v2714 = vpop.f32.mrf.mxu0
    %v2715 = vadd.f32 0.0, %v2714
    %v2716 = vpop.f32.mrf.mxu0
    %v2717 = vadd.f32 0.0, %v2716
    %2718 = vmatmul.bf16.gmra.mxu0 %v739
    %v2719 = vpop.f32.mrf.mxu0
    %v2720 = vadd.f32 0.0, %v2719
    %v2721 = vpop.f32.mrf.mxu0
    %v2722 = vadd.f32 0.0, %v2721
    %2723 = vmatmul.bf16.gmra.mxu0 %v753
    %v2724 = vpop.f32.mrf.mxu0
    %v2725 = vadd.f32 0.0, %v2724
    %v2726 = vpop.f32.mrf.mxu0
    %v2727 = vadd.f32 0.0, %v2726
    %2728 = vmatmul.bf16.gmra.mxu0 %v767
    %v2729 = vpop.f32.mrf.mxu0
    %v2730 = vadd.f32 0.0, %v2729
    %v2731 = vpop.f32.mrf.mxu0
    %v2732 = vadd.f32 0.0, %v2731
    %2733 = vmatmul.bf16.gmra.mxu0 %v781
    %v2734 = vpop.f32.mrf.mxu0
    %v2735 = vadd.f32 0.0, %v2734
    %v2736 = vpop.f32.mrf.mxu0
    %v2737 = vadd.f32 0.0, %v2736
    %2738 = vdwg.mxu0
    %2739 = vmatpush.bf16.msra.mxu0 %v1578
    %2740 = vmatpush.bf16.msra.mxu0 %v1576
    %2741 = vmatpush.bf16.msra.mxu0 %v1574
    %2742 = vmatpush.bf16.msra.mxu0 %v1572
    %2743 = vmatpush.bf16.msra.mxu0 %v1570
    %2744 = vmatpush.bf16.msra.mxu0 %v1568
    %2745 = vmatpush.bf16.msra.mxu0 %v1566
    %2746 = vmatpush.bf16.msra.mxu0 %v1564
    %2747 = vmatmul.bf16.gmra.mxu0 %v684
    %v2748 = vpop.f32.mrf.mxu0
    %v2749 = vadd.f32 %v2700, %v2748
    %v2750 = vpop.f32.mrf.mxu0
    %v2751 = vadd.f32 %v2702, %v2750
    %2752 = vmatmul.bf16.gmra.mxu0 %v698
    %v2753 = vpop.f32.mrf.mxu0
    %v2754 = vadd.f32 %v2705, %v2753
    %v2755 = vpop.f32.mrf.mxu0
    %v2756 = vadd.f32 %v2707, %v2755
    %2757 = vmatmul.bf16.gmra.mxu0 %v712
    %v2758 = vpop.f32.mrf.mxu0
    %v2759 = vadd.f32 %v2710, %v2758
    %v2760 = vpop.f32.mrf.mxu0
    %v2761 = vadd.f32 %v2712, %v2760
    %2762 = vmatmul.bf16.gmra.mxu0 %v726
    %v2763 = vpop.f32.mrf.mxu0
    %v2764 = vadd.f32 %v2715, %v2763
    %v2765 = vpop.f32.mrf.mxu0
    %v2766 = vadd.f32 %v2717, %v2765
    %2767 = vmatmul.bf16.gmra.mxu0 %v740
    %v2768 = vpop.f32.mrf.mxu0
    %v2769 = vadd.f32 %v2720, %v2768
    %v2770 = vpop.f32.mrf.mxu0
    %v2771 = vadd.f32 %v2722, %v2770
    %2772 = vmatmul.bf16.gmra.mxu0 %v754
    %v2773 = vpop.f32.mrf.mxu0
    %v2774 = vadd.f32 %v2725, %v2773
    %v2775 = vpop.f32.mrf.mxu0
    %v2776 = vadd.f32 %v2727, %v2775
    %2777 = vmatmul.bf16.gmra.mxu0 %v768
    %v2778 = vpop.f32.mrf.mxu0
    %v2779 = vadd.f32 %v2730, %v2778
    %v2780 = vpop.f32.mrf.mxu0
    %v2781 = vadd.f32 %v2732, %v2780
    %2782 = vmatmul.bf16.gmra.mxu0 %v782
    %v2783 = vpop.f32.mrf.mxu0
    %v2784 = vadd.f32 %v2735, %v2783
    %v2785 = vpop.f32.mrf.mxu0
    %v2786 = vadd.f32 %v2737, %v2785
    %2787 = vdwg.mxu0
    %2788 = vmatpush.bf16.msra.mxu0 %v1594
    %2789 = vmatpush.bf16.msra.mxu0 %v1592
    %2790 = vmatpush.bf16.msra.mxu0 %v1590
    %2791 = vmatpush.bf16.msra.mxu0 %v1588
    %2792 = vmatpush.bf16.msra.mxu0 %v1586
    %2793 = vmatpush.bf16.msra.mxu0 %v1584
    %2794 = vmatpush.bf16.msra.mxu0 %v1582
    %2795 = vmatpush.bf16.msra.mxu0 %v1580
    %2796 = vmatmul.bf16.gmra.mxu0 %v685
    %v2797 = vpop.f32.mrf.mxu0
    %v2798 = vadd.f32 %v2749, %v2797
    %v2799 = vpop.f32.mrf.mxu0
    %v2800 = vadd.f32 %v2751, %v2799
    %2801 = vmatmul.bf16.gmra.mxu0 %v699
    %v2802 = vpop.f32.mrf.mxu0
    %v2803 = vadd.f32 %v2754, %v2802
    %v2804 = vpop.f32.mrf.mxu0
    %v2805 = vadd.f32 %v2756, %v2804
    %2806 = vmatmul.bf16.gmra.mxu0 %v713
    %v2807 = vpop.f32.mrf.mxu0
    %v2808 = vadd.f32 %v2759, %v2807
    %v2809 = vpop.f32.mrf.mxu0
    %v2810 = vadd.f32 %v2761, %v2809
    %2811 = vmatmul.bf16.gmra.mxu0 %v727
    %v2812 = vpop.f32.mrf.mxu0
    %v2813 = vadd.f32 %v2764, %v2812
    %v2814 = vpop.f32.mrf.mxu0
    %v2815 = vadd.f32 %v2766, %v2814
    %2816 = vmatmul.bf16.gmra.mxu0 %v741
    %v2817 = vpop.f32.mrf.mxu0
    %v2818 = vadd.f32 %v2769, %v2817
    %v2819 = vpop.f32.mrf.mxu0
    %v2820 = vadd.f32 %v2771, %v2819
    %2821 = vmatmul.bf16.gmra.mxu0 %v755
    %v2822 = vpop.f32.mrf.mxu0
    %v2823 = vadd.f32 %v2774, %v2822
    %v2824 = vpop.f32.mrf.mxu0
    %v2825 = vadd.f32 %v2776, %v2824
    %2826 = vmatmul.bf16.gmra.mxu0 %v769
    %v2827 = vpop.f32.mrf.mxu0
    %v2828 = vadd.f32 %v2779, %v2827
    %v2829 = vpop.f32.mrf.mxu0
    %v2830 = vadd.f32 %v2781, %v2829
    %2831 = vmatmul.bf16.gmra.mxu0 %v783
    %v2832 = vpop.f32.mrf.mxu0
    %v2833 = vadd.f32 %v2784, %v2832
    %v2834 = vpop.f32.mrf.mxu0
    %v2835 = vadd.f32 %v2786, %v2834
    %2836 = vdwg.mxu0
    %2837 = vmatpush.bf16.msra.mxu0 %v1610
    %2838 = vmatpush.bf16.msra.mxu0 %v1608
    %2839 = vmatpush.bf16.msra.mxu0 %v1606
    %2840 = vmatpush.bf16.msra.mxu0 %v1604
    %2841 = vmatpush.bf16.msra.mxu0 %v1602
    %2842 = vmatpush.bf16.msra.mxu0 %v1600
    %2843 = vmatpush.bf16.msra.mxu0 %v1598
    %2844 = vmatpush.bf16.msra.mxu0 %v1596
    %2845 = vmatmul.bf16.gmra.mxu0 %v686
    %v2846 = vpop.f32.mrf.mxu0
    %v2847 = vadd.f32 %v2798, %v2846
    %v2848 = vpop.f32.mrf.mxu0
    %v2849 = vadd.f32 %v2800, %v2848
    %2850 = vmatmul.bf16.gmra.mxu0 %v700
    %v2851 = vpop.f32.mrf.mxu0
    %v2852 = vadd.f32 %v2803, %v2851
    %v2853 = vpop.f32.mrf.mxu0
    %v2854 = vadd.f32 %v2805, %v2853
    %2855 = vmatmul.bf16.gmra.mxu0 %v714
    %v2856 = vpop.f32.mrf.mxu0
    %v2857 = vadd.f32 %v2808, %v2856
    %v2858 = vpop.f32.mrf.mxu0
    %v2859 = vadd.f32 %v2810, %v2858
    %2860 = vmatmul.bf16.gmra.mxu0 %v728
    %v2861 = vpop.f32.mrf.mxu0
    %v2862 = vadd.f32 %v2813, %v2861
    %v2863 = vpop.f32.mrf.mxu0
    %v2864 = vadd.f32 %v2815, %v2863
    %2865 = vmatmul.bf16.gmra.mxu0 %v742
    %v2866 = vpop.f32.mrf.mxu0
    %v2867 = vadd.f32 %v2818, %v2866
    %v2868 = vpop.f32.mrf.mxu0
    %v2869 = vadd.f32 %v2820, %v2868
    %2870 = vmatmul.bf16.gmra.mxu0 %v756
    %v2871 = vpop.f32.mrf.mxu0
    %v2872 = vadd.f32 %v2823, %v2871
    %v2873 = vpop.f32.mrf.mxu0
    %v2874 = vadd.f32 %v2825, %v2873
    %2875 = vmatmul.bf16.gmra.mxu0 %v770
    %v2876 = vpop.f32.mrf.mxu0
    %v2877 = vadd.f32 %v2828, %v2876
    %v2878 = vpop.f32.mrf.mxu0
    %v2879 = vadd.f32 %v2830, %v2878
    %2880 = vmatmul.bf16.gmra.mxu0 %v784
    %v2881 = vpop.f32.mrf.mxu0
    %v2882 = vadd.f32 %v2833, %v2881
    %v2883 = vpop.f32.mrf.mxu0
    %v2884 = vadd.f32 %v2835, %v2883
    %2885 = vdwg.mxu0
    %2886 = vmatpush.bf16.msra.mxu0 %v1626
    %2887 = vmatpush.bf16.msra.mxu0 %v1624
    %2888 = vmatpush.bf16.msra.mxu0 %v1622
    %2889 = vmatpush.bf16.msra.mxu0 %v1620
    %2890 = vmatpush.bf16.msra.mxu0 %v1618
    %2891 = vmatpush.bf16.msra.mxu0 %v1616
    %2892 = vmatpush.bf16.msra.mxu0 %v1614
    %2893 = vmatpush.bf16.msra.mxu0 %v1612
    %2894 = vmatmul.bf16.gmra.mxu0 %v687
    %v2895 = vpop.f32.mrf.mxu0
    %v2896 = vadd.f32 %v2847, %v2895
    %v2897 = vpop.f32.mrf.mxu0
    %v2898 = vadd.f32 %v2849, %v2897
    %2899 = vmatmul.bf16.gmra.mxu0 %v701
    %v2900 = vpop.f32.mrf.mxu0
    %v2901 = vadd.f32 %v2852, %v2900
    %v2902 = vpop.f32.mrf.mxu0
    %v2903 = vadd.f32 %v2854, %v2902
    %2904 = vmatmul.bf16.gmra.mxu0 %v715
    %v2905 = vpop.f32.mrf.mxu0
    %v2906 = vadd.f32 %v2857, %v2905
    %v2907 = vpop.f32.mrf.mxu0
    %v2908 = vadd.f32 %v2859, %v2907
    %2909 = vmatmul.bf16.gmra.mxu0 %v729
    %v2910 = vpop.f32.mrf.mxu0
    %v2911 = vadd.f32 %v2862, %v2910
    %v2912 = vpop.f32.mrf.mxu0
    %v2913 = vadd.f32 %v2864, %v2912
    %2914 = vmatmul.bf16.gmra.mxu0 %v743
    %v2915 = vpop.f32.mrf.mxu0
    %v2916 = vadd.f32 %v2867, %v2915
    %v2917 = vpop.f32.mrf.mxu0
    %v2918 = vadd.f32 %v2869, %v2917
    %2919 = vmatmul.bf16.gmra.mxu0 %v757
    %v2920 = vpop.f32.mrf.mxu0
    %v2921 = vadd.f32 %v2872, %v2920
    %v2922 = vpop.f32.mrf.mxu0
    %v2923 = vadd.f32 %v2874, %v2922
    %2924 = vmatmul.bf16.gmra.mxu0 %v771
    %v2925 = vpop.f32.mrf.mxu0
    %v2926 = vadd.f32 %v2877, %v2925
    %v2927 = vpop.f32.mrf.mxu0
    %v2928 = vadd.f32 %v2879, %v2927
    %2929 = vmatmul.bf16.gmra.mxu0 %v785
    %v2930 = vpop.f32.mrf.mxu0
    %v2931 = vadd.f32 %v2882, %v2930
    %v2932 = vpop.f32.mrf.mxu0
    %v2933 = vadd.f32 %v2884, %v2932
    %2934 = vdwg.mxu0
    %2935 = vmatpush.bf16.msra.mxu0 %v1642
    %2936 = vmatpush.bf16.msra.mxu0 %v1640
    %2937 = vmatpush.bf16.msra.mxu0 %v1638
    %2938 = vmatpush.bf16.msra.mxu0 %v1636
    %2939 = vmatpush.bf16.msra.mxu0 %v1634
    %2940 = vmatpush.bf16.msra.mxu0 %v1632
    %2941 = vmatpush.bf16.msra.mxu0 %v1630
    %2942 = vmatpush.bf16.msra.mxu0 %v1628
    %2943 = vmatmul.bf16.gmra.mxu0 %v688
    %v2944 = vpop.f32.mrf.mxu0
    %v2945 = vadd.f32 %v2896, %v2944
    %v2946 = vpop.f32.mrf.mxu0
    %v2947 = vadd.f32 %v2898, %v2946
    %2948 = vmatmul.bf16.gmra.mxu0 %v702
    %v2949 = vpop.f32.mrf.mxu0
    %v2950 = vadd.f32 %v2901, %v2949
    %v2951 = vpop.f32.mrf.mxu0
    %v2952 = vadd.f32 %v2903, %v2951
    %2953 = vmatmul.bf16.gmra.mxu0 %v716
    %v2954 = vpop.f32.mrf.mxu0
    %v2955 = vadd.f32 %v2906, %v2954
    %v2956 = vpop.f32.mrf.mxu0
    %v2957 = vadd.f32 %v2908, %v2956
    %2958 = vmatmul.bf16.gmra.mxu0 %v730
    %v2959 = vpop.f32.mrf.mxu0
    %v2960 = vadd.f32 %v2911, %v2959
    %v2961 = vpop.f32.mrf.mxu0
    %v2962 = vadd.f32 %v2913, %v2961
    %2963 = vmatmul.bf16.gmra.mxu0 %v744
    %v2964 = vpop.f32.mrf.mxu0
    %v2965 = vadd.f32 %v2916, %v2964
    %v2966 = vpop.f32.mrf.mxu0
    %v2967 = vadd.f32 %v2918, %v2966
    %2968 = vmatmul.bf16.gmra.mxu0 %v758
    %v2969 = vpop.f32.mrf.mxu0
    %v2970 = vadd.f32 %v2921, %v2969
    %v2971 = vpop.f32.mrf.mxu0
    %v2972 = vadd.f32 %v2923, %v2971
    %2973 = vmatmul.bf16.gmra.mxu0 %v772
    %v2974 = vpop.f32.mrf.mxu0
    %v2975 = vadd.f32 %v2926, %v2974
    %v2976 = vpop.f32.mrf.mxu0
    %v2977 = vadd.f32 %v2928, %v2976
    %2978 = vmatmul.bf16.gmra.mxu0 %v786
    %v2979 = vpop.f32.mrf.mxu0
    %v2980 = vadd.f32 %v2931, %v2979
    %v2981 = vpop.f32.mrf.mxu0
    %v2982 = vadd.f32 %v2933, %v2981
    %2983 = vdwg.mxu0
    %2984 = vmatpush.bf16.msra.mxu0 %v1658
    %2985 = vmatpush.bf16.msra.mxu0 %v1656
    %2986 = vmatpush.bf16.msra.mxu0 %v1654
    %2987 = vmatpush.bf16.msra.mxu0 %v1652
    %2988 = vmatpush.bf16.msra.mxu0 %v1650
    %2989 = vmatpush.bf16.msra.mxu0 %v1648
    %2990 = vmatpush.bf16.msra.mxu0 %v1646
    %2991 = vmatpush.bf16.msra.mxu0 %v1644
    %2992 = vmatmul.bf16.gmra.mxu0 %v689
    %v2993 = vpop.f32.mrf.mxu0
    %v2994 = vadd.f32 %v2945, %v2993
    %v2995 = vpop.f32.mrf.mxu0
    %v2996 = vadd.f32 %v2947, %v2995
    %2997 = vmatmul.bf16.gmra.mxu0 %v703
    %v2998 = vpop.f32.mrf.mxu0
    %v2999 = vadd.f32 %v2950, %v2998
    %v3000 = vpop.f32.mrf.mxu0
    %v3001 = vadd.f32 %v2952, %v3000
    %3002 = vmatmul.bf16.gmra.mxu0 %v717
    %v3003 = vpop.f32.mrf.mxu0
    %v3004 = vadd.f32 %v2955, %v3003
    %v3005 = vpop.f32.mrf.mxu0
    %v3006 = vadd.f32 %v2957, %v3005
    %3007 = vmatmul.bf16.gmra.mxu0 %v731
    %v3008 = vpop.f32.mrf.mxu0
    %v3009 = vadd.f32 %v2960, %v3008
    %v3010 = vpop.f32.mrf.mxu0
    %v3011 = vadd.f32 %v2962, %v3010
    %3012 = vmatmul.bf16.gmra.mxu0 %v745
    %v3013 = vpop.f32.mrf.mxu0
    %v3014 = vadd.f32 %v2965, %v3013
    %v3015 = vpop.f32.mrf.mxu0
    %v3016 = vadd.f32 %v2967, %v3015
    %3017 = vmatmul.bf16.gmra.mxu0 %v759
    %v3018 = vpop.f32.mrf.mxu0
    %v3019 = vadd.f32 %v2970, %v3018
    %v3020 = vpop.f32.mrf.mxu0
    %v3021 = vadd.f32 %v2972, %v3020
    %3022 = vmatmul.bf16.gmra.mxu0 %v773
    %v3023 = vpop.f32.mrf.mxu0
    %v3024 = vadd.f32 %v2975, %v3023
    %v3025 = vpop.f32.mrf.mxu0
    %v3026 = vadd.f32 %v2977, %v3025
    %3027 = vmatmul.bf16.gmra.mxu0 %v787
    %v3028 = vpop.f32.mrf.mxu0
    %v3029 = vadd.f32 %v2980, %v3028
    %v3030 = vpop.f32.mrf.mxu0
    %v3031 = vadd.f32 %v2982, %v3030
    %3032 = vdwg.mxu0
    %3033 = vmatpush.bf16.msra.mxu0 %v1674
    %3034 = vmatpush.bf16.msra.mxu0 %v1672
    %3035 = vmatpush.bf16.msra.mxu0 %v1670
    %3036 = vmatpush.bf16.msra.mxu0 %v1668
    %3037 = vmatpush.bf16.msra.mxu0 %v1666
    %3038 = vmatpush.bf16.msra.mxu0 %v1664
    %3039 = vmatpush.bf16.msra.mxu0 %v1662
    %3040 = vmatpush.bf16.msra.mxu0 %v1660
    %3041 = vmatmul.bf16.gmra.mxu0 %v690
    %v3042 = vpop.f32.mrf.mxu0
    %v3043 = vadd.f32 %v2994, %v3042
    %v3044 = vpop.f32.mrf.mxu0
    %v3045 = vadd.f32 %v2996, %v3044
    %3046 = vmatmul.bf16.gmra.mxu0 %v704
    %v3047 = vpop.f32.mrf.mxu0
    %v3048 = vadd.f32 %v2999, %v3047
    %v3049 = vpop.f32.mrf.mxu0
    %v3050 = vadd.f32 %v3001, %v3049
    %3051 = vmatmul.bf16.gmra.mxu0 %v718
    %v3052 = vpop.f32.mrf.mxu0
    %v3053 = vadd.f32 %v3004, %v3052
    %v3054 = vpop.f32.mrf.mxu0
    %v3055 = vadd.f32 %v3006, %v3054
    %3056 = vmatmul.bf16.gmra.mxu0 %v732
    %v3057 = vpop.f32.mrf.mxu0
    %v3058 = vadd.f32 %v3009, %v3057
    %v3059 = vpop.f32.mrf.mxu0
    %v3060 = vadd.f32 %v3011, %v3059
    %3061 = vmatmul.bf16.gmra.mxu0 %v746
    %v3062 = vpop.f32.mrf.mxu0
    %v3063 = vadd.f32 %v3014, %v3062
    %v3064 = vpop.f32.mrf.mxu0
    %v3065 = vadd.f32 %v3016, %v3064
    %3066 = vmatmul.bf16.gmra.mxu0 %v760
    %v3067 = vpop.f32.mrf.mxu0
    %v3068 = vadd.f32 %v3019, %v3067
    %v3069 = vpop.f32.mrf.mxu0
    %v3070 = vadd.f32 %v3021, %v3069
    %3071 = vmatmul.bf16.gmra.mxu0 %v774
    %v3072 = vpop.f32.mrf.mxu0
    %v3073 = vadd.f32 %v3024, %v3072
    %v3074 = vpop.f32.mrf.mxu0
    %v3075 = vadd.f32 %v3026, %v3074
    %3076 = vmatmul.bf16.gmra.mxu0 %v788
    %v3077 = vpop.f32.mrf.mxu0
    %v3078 = vadd.f32 %v3029, %v3077
    %v3079 = vpop.f32.mrf.mxu0
    %v3080 = vadd.f32 %v3031, %v3079
    %3081 = vdwg.mxu0
    %3082 = vmatpush.bf16.msra.mxu0 %v1690
    %3083 = vmatpush.bf16.msra.mxu0 %v1688
    %3084 = vmatpush.bf16.msra.mxu0 %v1686
    %3085 = vmatpush.bf16.msra.mxu0 %v1684
    %3086 = vmatpush.bf16.msra.mxu0 %v1682
    %3087 = vmatpush.bf16.msra.mxu0 %v1680
    %3088 = vmatpush.bf16.msra.mxu0 %v1678
    %3089 = vmatpush.bf16.msra.mxu0 %v1676
    %3090 = vmatmul.bf16.gmra.mxu0 %v691
    %v3091 = vpop.f32.mrf.mxu0
    %v3092 = vadd.f32 %v3043, %v3091
    %v3093 = vpop.f32.mrf.mxu0
    %v3094 = vadd.f32 %v3045, %v3093
    %3095 = vmatmul.bf16.gmra.mxu0 %v705
    %v3096 = vpop.f32.mrf.mxu0
    %v3097 = vadd.f32 %v3048, %v3096
    %v3098 = vpop.f32.mrf.mxu0
    %v3099 = vadd.f32 %v3050, %v3098
    %3100 = vmatmul.bf16.gmra.mxu0 %v719
    %v3101 = vpop.f32.mrf.mxu0
    %v3102 = vadd.f32 %v3053, %v3101
    %v3103 = vpop.f32.mrf.mxu0
    %v3104 = vadd.f32 %v3055, %v3103
    %3105 = vmatmul.bf16.gmra.mxu0 %v733
    %v3106 = vpop.f32.mrf.mxu0
    %v3107 = vadd.f32 %v3058, %v3106
    %v3108 = vpop.f32.mrf.mxu0
    %v3109 = vadd.f32 %v3060, %v3108
    %3110 = vmatmul.bf16.gmra.mxu0 %v747
    %v3111 = vpop.f32.mrf.mxu0
    %v3112 = vadd.f32 %v3063, %v3111
    %v3113 = vpop.f32.mrf.mxu0
    %v3114 = vadd.f32 %v3065, %v3113
    %3115 = vmatmul.bf16.gmra.mxu0 %v761
    %v3116 = vpop.f32.mrf.mxu0
    %v3117 = vadd.f32 %v3068, %v3116
    %v3118 = vpop.f32.mrf.mxu0
    %v3119 = vadd.f32 %v3070, %v3118
    %3120 = vmatmul.bf16.gmra.mxu0 %v775
    %v3121 = vpop.f32.mrf.mxu0
    %v3122 = vadd.f32 %v3073, %v3121
    %v3123 = vpop.f32.mrf.mxu0
    %v3124 = vadd.f32 %v3075, %v3123
    %3125 = vmatmul.bf16.gmra.mxu0 %v789
    %v3126 = vpop.f32.mrf.mxu0
    %v3127 = vadd.f32 %v3078, %v3126
    %v3128 = vpop.f32.mrf.mxu0
    %v3129 = vadd.f32 %v3080, %v3128
    %3130 = vdwg.mxu0
    %3131 = vmatpush.bf16.msra.mxu0 %v1706
    %3132 = vmatpush.bf16.msra.mxu0 %v1704
    %3133 = vmatpush.bf16.msra.mxu0 %v1702
    %3134 = vmatpush.bf16.msra.mxu0 %v1700
    %3135 = vmatpush.bf16.msra.mxu0 %v1698
    %3136 = vmatpush.bf16.msra.mxu0 %v1696
    %3137 = vmatpush.bf16.msra.mxu0 %v1694
    %3138 = vmatpush.bf16.msra.mxu0 %v1692
    %3139 = vmatmul.bf16.gmra.mxu0 %v692
    %v3140 = vpop.f32.mrf.mxu0
    %v3141 = vadd.f32 %v3092, %v3140
    %v3142 = vpop.f32.mrf.mxu0
    %v3143 = vadd.f32 %v3094, %v3142
    %3144 = vmatmul.bf16.gmra.mxu0 %v706
    %v3145 = vpop.f32.mrf.mxu0
    %v3146 = vadd.f32 %v3097, %v3145
    %v3147 = vpop.f32.mrf.mxu0
    %v3148 = vadd.f32 %v3099, %v3147
    %3149 = vmatmul.bf16.gmra.mxu0 %v720
    %v3150 = vpop.f32.mrf.mxu0
    %v3151 = vadd.f32 %v3102, %v3150
    %v3152 = vpop.f32.mrf.mxu0
    %v3153 = vadd.f32 %v3104, %v3152
    %3154 = vmatmul.bf16.gmra.mxu0 %v734
    %v3155 = vpop.f32.mrf.mxu0
    %v3156 = vadd.f32 %v3107, %v3155
    %v3157 = vpop.f32.mrf.mxu0
    %v3158 = vadd.f32 %v3109, %v3157
    %3159 = vmatmul.bf16.gmra.mxu0 %v748
    %v3160 = vpop.f32.mrf.mxu0
    %v3161 = vadd.f32 %v3112, %v3160
    %v3162 = vpop.f32.mrf.mxu0
    %v3163 = vadd.f32 %v3114, %v3162
    %3164 = vmatmul.bf16.gmra.mxu0 %v762
    %v3165 = vpop.f32.mrf.mxu0
    %v3166 = vadd.f32 %v3117, %v3165
    %v3167 = vpop.f32.mrf.mxu0
    %v3168 = vadd.f32 %v3119, %v3167
    %3169 = vmatmul.bf16.gmra.mxu0 %v776
    %v3170 = vpop.f32.mrf.mxu0
    %v3171 = vadd.f32 %v3122, %v3170
    %v3172 = vpop.f32.mrf.mxu0
    %v3173 = vadd.f32 %v3124, %v3172
    %3174 = vmatmul.bf16.gmra.mxu0 %v790
    %v3175 = vpop.f32.mrf.mxu0
    %v3176 = vadd.f32 %v3127, %v3175
    %v3177 = vpop.f32.mrf.mxu0
    %v3178 = vadd.f32 %v3129, %v3177
    %3179 = vdwg.mxu0
    %3180 = vmatpush.bf16.msra.mxu0 %v1722
    %3181 = vmatpush.bf16.msra.mxu0 %v1720
    %3182 = vmatpush.bf16.msra.mxu0 %v1718
    %3183 = vmatpush.bf16.msra.mxu0 %v1716
    %3184 = vmatpush.bf16.msra.mxu0 %v1714
    %3185 = vmatpush.bf16.msra.mxu0 %v1712
    %3186 = vmatpush.bf16.msra.mxu0 %v1710
    %3187 = vmatpush.bf16.msra.mxu0 %v1708
    %3188 = vmatmul.bf16.gmra.mxu0 %v693
    %v3189 = vpop.f32.mrf.mxu0
    %v3190 = vadd.f32 %v3141, %v3189
    %v3191 = vpop.f32.mrf.mxu0
    %v3192 = vadd.f32 %v3143, %v3191
    %3193 = vmatmul.bf16.gmra.mxu0 %v707
    %v3194 = vpop.f32.mrf.mxu0
    %v3195 = vadd.f32 %v3146, %v3194
    %v3196 = vpop.f32.mrf.mxu0
    %v3197 = vadd.f32 %v3148, %v3196
    %3198 = vmatmul.bf16.gmra.mxu0 %v721
    %v3199 = vpop.f32.mrf.mxu0
    %v3200 = vadd.f32 %v3151, %v3199
    %v3201 = vpop.f32.mrf.mxu0
    %v3202 = vadd.f32 %v3153, %v3201
    %3203 = vmatmul.bf16.gmra.mxu0 %v735
    %v3204 = vpop.f32.mrf.mxu0
    %v3205 = vadd.f32 %v3156, %v3204
    %v3206 = vpop.f32.mrf.mxu0
    %v3207 = vadd.f32 %v3158, %v3206
    %3208 = vmatmul.bf16.gmra.mxu0 %v749
    %v3209 = vpop.f32.mrf.mxu0
    %v3210 = vadd.f32 %v3161, %v3209
    %v3211 = vpop.f32.mrf.mxu0
    %v3212 = vadd.f32 %v3163, %v3211
    %3213 = vmatmul.bf16.gmra.mxu0 %v763
    %v3214 = vpop.f32.mrf.mxu0
    %v3215 = vadd.f32 %v3166, %v3214
    %v3216 = vpop.f32.mrf.mxu0
    %v3217 = vadd.f32 %v3168, %v3216
    %3218 = vmatmul.bf16.gmra.mxu0 %v777
    %v3219 = vpop.f32.mrf.mxu0
    %v3220 = vadd.f32 %v3171, %v3219
    %v3221 = vpop.f32.mrf.mxu0
    %v3222 = vadd.f32 %v3173, %v3221
    %3223 = vmatmul.bf16.gmra.mxu0 %v791
    %v3224 = vpop.f32.mrf.mxu0
    %v3225 = vadd.f32 %v3176, %v3224
    %v3226 = vpop.f32.mrf.mxu0
    %v3227 = vadd.f32 %v3178, %v3226
    %3228 = vdwg.mxu0
    %3229 = vmatpush.bf16.msra.mxu0 %v1738
    %3230 = vmatpush.bf16.msra.mxu0 %v1736
    %3231 = vmatpush.bf16.msra.mxu0 %v1734
    %3232 = vmatpush.bf16.msra.mxu0 %v1732
    %3233 = vmatpush.bf16.msra.mxu0 %v1730
    %3234 = vmatpush.bf16.msra.mxu0 %v1728
    %3235 = vmatpush.bf16.msra.mxu0 %v1726
    %3236 = vmatpush.bf16.msra.mxu0 %v1724
    %3237 = vmatmul.bf16.gmra.mxu0 %v694
    %v3238 = vpop.f32.mrf.mxu0
    %v3239 = vadd.f32 %v3190, %v3238
    %v3240 = vpop.f32.mrf.mxu0
    %v3241 = vadd.f32 %v3192, %v3240
    %3242 = vmatmul.bf16.gmra.mxu0 %v708
    %v3243 = vpop.f32.mrf.mxu0
    %v3244 = vadd.f32 %v3195, %v3243
    %v3245 = vpop.f32.mrf.mxu0
    %v3246 = vadd.f32 %v3197, %v3245
    %3247 = vmatmul.bf16.gmra.mxu0 %v722
    %v3248 = vpop.f32.mrf.mxu0
    %v3249 = vadd.f32 %v3200, %v3248
    %v3250 = vpop.f32.mrf.mxu0
    %v3251 = vadd.f32 %v3202, %v3250
    %3252 = vmatmul.bf16.gmra.mxu0 %v736
    %v3253 = vpop.f32.mrf.mxu0
    %v3254 = vadd.f32 %v3205, %v3253
    %v3255 = vpop.f32.mrf.mxu0
    %v3256 = vadd.f32 %v3207, %v3255
    %3257 = vmatmul.bf16.gmra.mxu0 %v750
    %v3258 = vpop.f32.mrf.mxu0
    %v3259 = vadd.f32 %v3210, %v3258
    %v3260 = vpop.f32.mrf.mxu0
    %v3261 = vadd.f32 %v3212, %v3260
    %3262 = vmatmul.bf16.gmra.mxu0 %v764
    %v3263 = vpop.f32.mrf.mxu0
    %v3264 = vadd.f32 %v3215, %v3263
    %v3265 = vpop.f32.mrf.mxu0
    %v3266 = vadd.f32 %v3217, %v3265
    %3267 = vmatmul.bf16.gmra.mxu0 %v778
    %v3268 = vpop.f32.mrf.mxu0
    %v3269 = vadd.f32 %v3220, %v3268
    %v3270 = vpop.f32.mrf.mxu0
    %v3271 = vadd.f32 %v3222, %v3270
    %3272 = vmatmul.bf16.gmra.mxu0 %v792
    %v3273 = vpop.f32.mrf.mxu0
    %v3274 = vadd.f32 %v3225, %v3273
    %v3275 = vpop.f32.mrf.mxu0
    %v3276 = vadd.f32 %v3227, %v3275
    %3277 = vdwg.mxu0
    %3278 = vmatpush.bf16.msra.mxu0 %v1754
    %3279 = vmatpush.bf16.msra.mxu0 %v1752
    %3280 = vmatpush.bf16.msra.mxu0 %v1750
    %3281 = vmatpush.bf16.msra.mxu0 %v1748
    %3282 = vmatpush.bf16.msra.mxu0 %v1746
    %3283 = vmatpush.bf16.msra.mxu0 %v1744
    %3284 = vmatpush.bf16.msra.mxu0 %v1742
    %3285 = vmatpush.bf16.msra.mxu0 %v1740
    %3286 = vmatmul.bf16.gmra.mxu0 %v695
    %v3287 = vpop.f32.mrf.mxu0
    %v3288 = vadd.f32 %v3239, %v3287
    %v3289 = vpop.f32.mrf.mxu0
    %v3290 = vadd.f32 %v3241, %v3289
    %3291 = vmatmul.bf16.gmra.mxu0 %v709
    %v3292 = vpop.f32.mrf.mxu0
    %v3293 = vadd.f32 %v3244, %v3292
    %v3294 = vpop.f32.mrf.mxu0
    %v3295 = vadd.f32 %v3246, %v3294
    %3296 = vmatmul.bf16.gmra.mxu0 %v723
    %v3297 = vpop.f32.mrf.mxu0
    %v3298 = vadd.f32 %v3249, %v3297
    %v3299 = vpop.f32.mrf.mxu0
    %v3300 = vadd.f32 %v3251, %v3299
    %3301 = vmatmul.bf16.gmra.mxu0 %v737
    %v3302 = vpop.f32.mrf.mxu0
    %v3303 = vadd.f32 %v3254, %v3302
    %v3304 = vpop.f32.mrf.mxu0
    %v3305 = vadd.f32 %v3256, %v3304
    %3306 = vmatmul.bf16.gmra.mxu0 %v751
    %v3307 = vpop.f32.mrf.mxu0
    %v3308 = vadd.f32 %v3259, %v3307
    %v3309 = vpop.f32.mrf.mxu0
    %v3310 = vadd.f32 %v3261, %v3309
    %3311 = vmatmul.bf16.gmra.mxu0 %v765
    %v3312 = vpop.f32.mrf.mxu0
    %v3313 = vadd.f32 %v3264, %v3312
    %v3314 = vpop.f32.mrf.mxu0
    %v3315 = vadd.f32 %v3266, %v3314
    %3316 = vmatmul.bf16.gmra.mxu0 %v779
    %v3317 = vpop.f32.mrf.mxu0
    %v3318 = vadd.f32 %v3269, %v3317
    %v3319 = vpop.f32.mrf.mxu0
    %v3320 = vadd.f32 %v3271, %v3319
    %3321 = vmatmul.bf16.gmra.mxu0 %v793
    %v3322 = vpop.f32.mrf.mxu0
    %v3323 = vadd.f32 %v3274, %v3322
    %v3324 = vpop.f32.mrf.mxu0
    %v3325 = vadd.f32 %v3276, %v3324
    %3326 = vdwg.mxu0
    %3327 = vmatpush.bf16.msra.mxu0 0
    %3328 = vmatpush.bf16.msra.mxu0 0
    %3329 = vmatpush.bf16.msra.mxu0 0
    %3330 = vmatpush.bf16.msra.mxu0 0
    %3331 = vmatpush.bf16.msra.mxu0 %v1762
    %3332 = vmatpush.bf16.msra.mxu0 %v1760
    %3333 = vmatpush.bf16.msra.mxu0 %v1758
    %3334 = vmatpush.bf16.msra.mxu0 %v1756
    %3335 = vmatmul.bf16.gmra.mxu0 %v1981
    %v3336 = vpop.f32.mrf.mxu0
    %v3337 = vadd.f32 %v3288, %v3336
    %v3338 = vpop.f32.mrf.mxu0
    %v3339 = vadd.f32 %v3290, %v3338
    %3340 = vmatmul.bf16.gmra.mxu0 %v1984
    %v3341 = vpop.f32.mrf.mxu0
    %v3342 = vadd.f32 %v3293, %v3341
    %v3343 = vpop.f32.mrf.mxu0
    %v3344 = vadd.f32 %v3295, %v3343
    %3345 = vmatmul.bf16.gmra.mxu0 %v1987
    %v3346 = vpop.f32.mrf.mxu0
    %v3347 = vadd.f32 %v3298, %v3346
    %v3348 = vpop.f32.mrf.mxu0
    %v3349 = vadd.f32 %v3300, %v3348
    %3350 = vmatmul.bf16.gmra.mxu0 %v1990
    %v3351 = vpop.f32.mrf.mxu0
    %v3352 = vadd.f32 %v3303, %v3351
    %v3353 = vpop.f32.mrf.mxu0
    %v3354 = vadd.f32 %v3305, %v3353
    %3355 = vmatmul.bf16.gmra.mxu0 %v1993
    %v3356 = vpop.f32.mrf.mxu0
    %v3357 = vadd.f32 %v3308, %v3356
    %v3358 = vpop.f32.mrf.mxu0
    %v3359 = vadd.f32 %v3310, %v3358
    %3360 = vmatmul.bf16.gmra.mxu0 %v1996
    %v3361 = vpop.f32.mrf.mxu0
    %v3362 = vadd.f32 %v3313, %v3361
    %v3363 = vpop.f32.mrf.mxu0
    %v3364 = vadd.f32 %v3315, %v3363
    %3365 = vmatmul.bf16.gmra.mxu0 %v1999
    %v3366 = vpop.f32.mrf.mxu0
    %v3367 = vadd.f32 %v3318, %v3366
    %v3368 = vpop.f32.mrf.mxu0
    %v3369 = vadd.f32 %v3320, %v3368
    %3370 = vmatmul.bf16.gmra.mxu0 %v2002
    %v3371 = vpop.f32.mrf.mxu0
    %v3372 = vadd.f32 %v3323, %v3371
    %v3373 = vpop.f32.mrf.mxu0
    %v3374 = vadd.f32 %v3325, %v3373
    %3375 = vdwg.mxu0
    %v3376 = vld [vmem:[%s2] sm:$0x3]
    %v3378 = vperm.slane %v3376, 0
    %v3379 = vperm.slane %v3376, 1
    %v3382 = vmul.f32 %v2651, %v3378
    %v3383 = vmul.f32 %v3337, %v3379
    %v3384 = vmul.f32 %v2653, %v3378
    %v3385 = vmul.f32 %v3339, %v3379
    %v3386 = vmul.f32 %v2656, %v3378
    %v3387 = vmul.f32 %v3342, %v3379
    %v3388 = vmul.f32 %v2658, %v3378
    %v3389 = vmul.f32 %v3344, %v3379
    %v3390 = vmul.f32 %v2661, %v3378
    %v3391 = vmul.f32 %v3347, %v3379
    %v3392 = vmul.f32 %v2663, %v3378
    %v3393 = vmul.f32 %v3349, %v3379
    %v3394 = vmul.f32 %v2666, %v3378
    %v3395 = vmul.f32 %v3352, %v3379
    %v3396 = vmul.f32 %v2668, %v3378
    %v3397 = vmul.f32 %v3354, %v3379
    %v3398 = vmul.f32 %v2671, %v3378
    %v3399 = vmul.f32 %v3357, %v3379
    %v3400 = vmul.f32 %v2673, %v3378
    %v3401 = vmul.f32 %v3359, %v3379
    %v3402 = vmul.f32 %v2676, %v3378
    %v3403 = vmul.f32 %v3362, %v3379
    %v3404 = vmul.f32 %v2678, %v3378
    %v3405 = vmul.f32 %v3364, %v3379
    %v3406 = vmul.f32 %v2681, %v3378
    %v3407 = vmul.f32 %v3367, %v3379
    %v3408 = vmul.f32 %v2683, %v3378
    %v3409 = vmul.f32 %v3369, %v3379
    %v3410 = vmul.f32 %v2686, %v3378
    %v3411 = vmul.f32 %v3372, %v3379
    %v3412 = vmul.f32 %v2688, %v3378
    %v3413 = vmul.f32 %v3374, %v3379
    %v3414 = vld [vmem:[%s3] sm:$0x3]
    %v3416 = vperm.slane %v3414, 0
    %v3417 = vperm.slane %v3414, 1
    %v3420 = vadd.f32 %v3382, %v3416
    %v3421 = vadd.f32 %v3383, %v3417
    %v3422 = vadd.f32 %v3384, %v3416
    %v3423 = vadd.f32 %v3385, %v3417
    %v3424 = vadd.f32 %v3386, %v3416
    %v3425 = vadd.f32 %v3387, %v3417
    %v3426 = vadd.f32 %v3388, %v3416
    %v3427 = vadd.f32 %v3389, %v3417
    %v3428 = vadd.f32 %v3390, %v3416
    %v3429 = vadd.f32 %v3391, %v3417
    %v3430 = vadd.f32 %v3392, %v3416
    %v3431 = vadd.f32 %v3393, %v3417
    %v3432 = vadd.f32 %v3394, %v3416
    %v3433 = vadd.f32 %v3395, %v3417
    %v3434 = vadd.f32 %v3396, %v3416
    %v3435 = vadd.f32 %v3397, %v3417
    %v3436 = vadd.f32 %v3398, %v3416
    %v3437 = vadd.f32 %v3399, %v3417
    %v3438 = vadd.f32 %v3400, %v3416
    %v3439 = vadd.f32 %v3401, %v3417
    %v3440 = vadd.f32 %v3402, %v3416
    %v3441 = vadd.f32 %v3403, %v3417
    %v3442 = vadd.f32 %v3404, %v3416
    %v3443 = vadd.f32 %v3405, %v3417
    %v3444 = vadd.f32 %v3406, %v3416
    %v3445 = vadd.f32 %v3407, %v3417
    %v3446 = vadd.f32 %v3408, %v3416
    %v3447 = vadd.f32 %v3409, %v3417
    %v3448 = vadd.f32 %v3410, %v3416
    %v3449 = vadd.f32 %v3411, %v3417
    %v3450 = vadd.f32 %v3412, %v3416
    %v3451 = vadd.f32 %v3413, %v3417
    %v3452 = vmax.f32 %v3420, 0.0
    %v3453 = vmax.f32 %v3421, 0.0
    %v3454 = vmax.f32 %v3422, 0.0
    %v3455 = vmax.f32 %v3423, 0.0
    %v3456 = vmax.f32 %v3424, 0.0
    %v3457 = vmax.f32 %v3425, 0.0
    %v3458 = vmax.f32 %v3426, 0.0
    %v3459 = vmax.f32 %v3427, 0.0
    %v3460 = vmax.f32 %v3428, 0.0
    %v3461 = vmax.f32 %v3429, 0.0
    %v3462 = vmax.f32 %v3430, 0.0
    %v3463 = vmax.f32 %v3431, 0.0
    %v3464 = vmax.f32 %v3432, 0.0
    %v3465 = vmax.f32 %v3433, 0.0
    %v3466 = vmax.f32 %v3434, 0.0
    %v3467 = vmax.f32 %v3435, 0.0
    %v3468 = vmax.f32 %v3436, 0.0
    %v3469 = vmax.f32 %v3437, 0.0
    %v3470 = vmax.f32 %v3438, 0.0
    %v3471 = vmax.f32 %v3439, 0.0
    %v3472 = vmax.f32 %v3440, 0.0
    %v3473 = vmax.f32 %v3441, 0.0
    %v3474 = vmax.f32 %v3442, 0.0
    %v3475 = vmax.f32 %v3443, 0.0
    %v3476 = vmax.f32 %v3444, 0.0
    %v3477 = vmax.f32 %v3445, 0.0
    %v3478 = vmax.f32 %v3446, 0.0
    %v3479 = vmax.f32 %v3447, 0.0
    %v3480 = vmax.f32 %v3448, 0.0
    %v3481 = vmax.f32 %v3449, 0.0
    %v3482 = vmax.f32 %v3450, 0.0
    %v3483 = vmax.f32 %v3451, 0.0
    %v3484 = vld [vmem:[%s0] sm:$0xff]
    %v3485 = vld [vmem:[%s0 + $0x38] sm:$0xff]
    %v3486 = vld [vmem:[%s0 + $0x70] sm:$0xff]
    %v3487 = vld [vmem:[%s0 + $0xa8] sm:$0xff]
    %v3488 = vld [vmem:[%s0 + $0xe0] sm:$0xff]
    %v3489 = vld [vmem:[%s0 + $0x118] sm:$0xff]
    %v3490 = vld [vmem:[%s0 + $0x150] sm:$0xff]
    %v3491 = vld [vmem:[%s0 + $0x188] sm:$0xff]
    %v3492 = vld [vmem:[%s0 + $0x1c0] sm:$0xff]
    %v3493 = vld [vmem:[%s0 + $0x1f8] sm:$0xff]
    %v3494 = vld [vmem:[%s0 + $0x230] sm:$0xff]
    %v3495 = vld [vmem:[%s0 + $0x268] sm:$0xff]
    %v3496 = vld [vmem:[%s0 + $0x2a0] sm:$0xff]
    %v3497 = vld [vmem:[%s0 + $0x2d8] sm:$0xff]
    %v3498 = vld [vmem:[%s0 + $0x310] sm:$0xff]
    %v3499 = vld [vmem:[%s0 + $0x348] sm:$0xff]
    %v3500 = vld [vmem:[%s0 + $0x4] sm:$0xff]
    %v3501 = vld [vmem:[%s0 + $0x3c] sm:$0xff]
    %v3502 = vld [vmem:[%s0 + $0x74] sm:$0xff]
    %v3503 = vld [vmem:[%s0 + $0xac] sm:$0xff]
    %v3504 = vld [vmem:[%s0 + $0xe4] sm:$0xff]
    %v3505 = vld [vmem:[%s0 + $0x11c] sm:$0xff]
    %v3506 = vld [vmem:[%s0 + $0x154] sm:$0xff]
    %v3507 = vld [vmem:[%s0 + $0x18c] sm:$0xff]
    %v3508 = vld [vmem:[%s0 + $0x1c4] sm:$0xff]
    %v3509 = vld [vmem:[%s0 + $0x1fc] sm:$0xff]
    %v3510 = vld [vmem:[%s0 + $0x234] sm:$0xff]
    %v3511 = vld [vmem:[%s0 + $0x26c] sm:$0xff]
    %v3512 = vld [vmem:[%s0 + $0x2a4] sm:$0xff]
    %v3513 = vld [vmem:[%s0 + $0x2dc] sm:$0xff]
    %v3514 = vld [vmem:[%s0 + $0x314] sm:$0xff]
    %v3515 = vld [vmem:[%s0 + $0x34c] sm:$0xff]
    %v3516 = vunpack.c.l.bf16 %v3484
    %v3517 = vunpack.c.h.bf16 %v3484
    %v3518 = vunpack.c.l.bf16 %v3485
    %v3519 = vunpack.c.h.bf16 %v3485
    %v3520 = vunpack.c.l.bf16 %v3486
    %v3521 = vunpack.c.h.bf16 %v3486
    %v3522 = vunpack.c.l.bf16 %v3487
    %v3523 = vunpack.c.h.bf16 %v3487
    %v3524 = vunpack.c.l.bf16 %v3488
    %v3525 = vunpack.c.h.bf16 %v3488
    %v3526 = vunpack.c.l.bf16 %v3489
    %v3527 = vunpack.c.h.bf16 %v3489
    %v3528 = vunpack.c.l.bf16 %v3490
    %v3529 = vunpack.c.h.bf16 %v3490
    %v3530 = vunpack.c.l.bf16 %v3491
    %v3531 = vunpack.c.h.bf16 %v3491
    %v3532 = vunpack.c.l.bf16 %v3492
    %v3533 = vunpack.c.h.bf16 %v3492
    %v3534 = vunpack.c.l.bf16 %v3493
    %v3535 = vunpack.c.h.bf16 %v3493
    %v3536 = vunpack.c.l.bf16 %v3494
    %v3537 = vunpack.c.h.bf16 %v3494
    %v3538 = vunpack.c.l.bf16 %v3495
    %v3539 = vunpack.c.h.bf16 %v3495
    %v3540 = vunpack.c.l.bf16 %v3496
    %v3541 = vunpack.c.h.bf16 %v3496
    %v3542 = vunpack.c.l.bf16 %v3497
    %v3543 = vunpack.c.h.bf16 %v3497
    %v3544 = vunpack.c.l.bf16 %v3498
    %v3545 = vunpack.c.h.bf16 %v3498
    %v3546 = vunpack.c.l.bf16 %v3499
    %v3547 = vunpack.c.h.bf16 %v3499
    %v3548 = vunpack.c.l.bf16 %v3500
    %v3549 = vunpack.c.h.bf16 %v3500
    %v3550 = vunpack.c.l.bf16 %v3501
    %v3551 = vunpack.c.h.bf16 %v3501
    %v3552 = vunpack.c.l.bf16 %v3502
    %v3553 = vunpack.c.h.bf16 %v3502
    %v3554 = vunpack.c.l.bf16 %v3503
    %v3555 = vunpack.c.h.bf16 %v3503
    %v3556 = vunpack.c.l.bf16 %v3504
    %v3557 = vunpack.c.h.bf16 %v3504
    %v3558 = vunpack.c.l.bf16 %v3505
    %v3559 = vunpack.c.h.bf16 %v3505
    %v3560 = vunpack.c.l.bf16 %v3506
    %v3561 = vunpack.c.h.bf16 %v3506
    %v3562 = vunpack.c.l.bf16 %v3507
    %v3563 = vunpack.c.h.bf16 %v3507
    %v3564 = vunpack.c.l.bf16 %v3508
    %v3565 = vunpack.c.h.bf16 %v3508
    %v3566 = vunpack.c.l.bf16 %v3509
    %v3567 = vunpack.c.h.bf16 %v3509
    %v3568 = vunpack.c.l.bf16 %v3510
    %v3569 = vunpack.c.h.bf16 %v3510
    %v3570 = vunpack.c.l.bf16 %v3511
    %v3571 = vunpack.c.h.bf16 %v3511
    %v3572 = vunpack.c.l.bf16 %v3512
    %v3573 = vunpack.c.h.bf16 %v3512
    %v3574 = vunpack.c.l.bf16 %v3513
    %v3575 = vunpack.c.h.bf16 %v3513
    %v3576 = vunpack.c.l.bf16 %v3514
    %v3577 = vunpack.c.h.bf16 %v3514
    %v3578 = vunpack.c.l.bf16 %v3515
    %v3579 = vunpack.c.h.bf16 %v3515
    %3612 = vrot.lane.b32.xlu0 %v3548, 64
    %v3613 = vpop.permute.xlu0 %3612
    %3614 = vrot.lane.b32.xlu0 %v3549, 64
    %v3615 = vpop.permute.xlu0 %3614
    %3616 = vrot.lane.b32.xlu0 %v3550, 64
    %v3617 = vpop.permute.xlu0 %3616
    %3618 = vrot.lane.b32.xlu0 %v3551, 64
    %v3619 = vpop.permute.xlu0 %3618
    %3620 = vrot.lane.b32.xlu0 %v3552, 64
    %v3621 = vpop.permute.xlu0 %3620
    %3622 = vrot.lane.b32.xlu0 %v3553, 64
    %v3623 = vpop.permute.xlu0 %3622
    %3624 = vrot.lane.b32.xlu0 %v3554, 64
    %v3625 = vpop.permute.xlu0 %3624
    %3626 = vrot.lane.b32.xlu0 %v3555, 64
    %v3627 = vpop.permute.xlu0 %3626
    %3628 = vrot.lane.b32.xlu0 %v3556, 64
    %v3629 = vpop.permute.xlu0 %3628
    %3630 = vrot.lane.b32.xlu0 %v3557, 64
    %v3631 = vpop.permute.xlu0 %3630
    %3632 = vrot.lane.b32.xlu0 %v3558, 64
    %v3633 = vpop.permute.xlu0 %3632
    %3634 = vrot.lane.b32.xlu0 %v3559, 64
    %v3635 = vpop.permute.xlu0 %3634
    %3636 = vrot.lane.b32.xlu0 %v3560, 64
    %v3637 = vpop.permute.xlu0 %3636
    %3638 = vrot.lane.b32.xlu0 %v3561, 64
    %v3639 = vpop.permute.xlu0 %3638
    %3640 = vrot.lane.b32.xlu0 %v3562, 64
    %v3641 = vpop.permute.xlu0 %3640
    %3642 = vrot.lane.b32.xlu0 %v3563, 64
    %v3643 = vpop.permute.xlu0 %3642
    %3644 = vrot.lane.b32.xlu0 %v3564, 64
    %v3645 = vpop.permute.xlu0 %3644
    %3646 = vrot.lane.b32.xlu0 %v3565, 64
    %v3647 = vpop.permute.xlu0 %3646
    %3648 = vrot.lane.b32.xlu0 %v3566, 64
    %v3649 = vpop.permute.xlu0 %3648
    %3650 = vrot.lane.b32.xlu0 %v3567, 64
    %v3651 = vpop.permute.xlu0 %3650
    %3652 = vrot.lane.b32.xlu0 %v3568, 64
    %v3653 = vpop.permute.xlu0 %3652
    %3654 = vrot.lane.b32.xlu0 %v3569, 64
    %v3655 = vpop.permute.xlu0 %3654
    %3656 = vrot.lane.b32.xlu0 %v3570, 64
    %v3657 = vpop.permute.xlu0 %3656
    %3658 = vrot.lane.b32.xlu0 %v3571, 64
    %v3659 = vpop.permute.xlu0 %3658
    %3660 = vrot.lane.b32.xlu0 %v3572, 64
    %v3661 = vpop.permute.xlu0 %3660
    %3662 = vrot.lane.b32.xlu0 %v3573, 64
    %v3663 = vpop.permute.xlu0 %3662
    %3664 = vrot.lane.b32.xlu0 %v3574, 64
    %v3665 = vpop.permute.xlu0 %3664
    %3666 = vrot.lane.b32.xlu0 %v3575, 64
    %v3667 = vpop.permute.xlu0 %3666
    %3668 = vrot.lane.b32.xlu0 %v3576, 64
    %v3669 = vpop.permute.xlu0 %3668
    %3670 = vrot.lane.b32.xlu0 %v3577, 64
    %v3671 = vpop.permute.xlu0 %3670
    %3672 = vrot.lane.b32.xlu0 %v3578, 64
    %v3673 = vpop.permute.xlu0 %3672
    %3674 = vrot.lane.b32.xlu0 %v3579, 64
    %v3675 = vpop.permute.xlu0 %3674
    %v3676 = vsel %vm1979, %v3613, %v3615
    %v3677 = vsel %vm1979, %v3617, %v3619
    %v3678 = vsel %vm1979, %v3621, %v3623
    %v3679 = vsel %vm1979, %v3625, %v3627
    %v3680 = vsel %vm1979, %v3629, %v3631
    %v3681 = vsel %vm1979, %v3633, %v3635
    %v3682 = vsel %vm1979, %v3637, %v3639
    %v3683 = vsel %vm1979, %v3641, %v3643
    %v3684 = vsel %vm1979, %v3645, %v3647
    %v3685 = vsel %vm1979, %v3649, %v3651
    %v3686 = vsel %vm1979, %v3653, %v3655
    %v3687 = vsel %vm1979, %v3657, %v3659
    %v3688 = vsel %vm1979, %v3661, %v3663
    %v3689 = vsel %vm1979, %v3665, %v3667
    %v3690 = vsel %vm1979, %v3669, %v3671
    %v3691 = vsel %vm1979, %v3673, %v3675
    %v3724 = vmax.f32 %v3516, %v3676
    %v3725 = vmax.f32 %v3517, %v3615
    %v3726 = vmax.f32 %v3518, %v3677
    %v3727 = vmax.f32 %v3519, %v3619
    %v3728 = vmax.f32 %v3520, %v3678
    %v3729 = vmax.f32 %v3521, %v3623
    %v3730 = vmax.f32 %v3522, %v3679
    %v3731 = vmax.f32 %v3523, %v3627
    %v3732 = vmax.f32 %v3524, %v3680
    %v3733 = vmax.f32 %v3525, %v3631
    %v3734 = vmax.f32 %v3526, %v3681
    %v3735 = vmax.f32 %v3527, %v3635
    %v3736 = vmax.f32 %v3528, %v3682
    %v3737 = vmax.f32 %v3529, %v3639
    %v3738 = vmax.f32 %v3530, %v3683
    %v3739 = vmax.f32 %v3531, %v3643
    %v3740 = vmax.f32 %v3532, %v3684
    %v3741 = vmax.f32 %v3533, %v3647
    %v3742 = vmax.f32 %v3534, %v3685
    %v3743 = vmax.f32 %v3535, %v3651
    %v3744 = vmax.f32 %v3536, %v3686
    %v3745 = vmax.f32 %v3537, %v3655
    %v3746 = vmax.f32 %v3538, %v3687
    %v3747 = vmax.f32 %v3539, %v3659
    %v3748 = vmax.f32 %v3540, %v3688
    %v3749 = vmax.f32 %v3541, %v3663
    %v3750 = vmax.f32 %v3542, %v3689
    %v3751 = vmax.f32 %v3543, %v3667
    %v3752 = vmax.f32 %v3544, %v3690
    %v3753 = vmax.f32 %v3545, %v3671
    %v3754 = vmax.f32 %v3546, %v3691
    %v3755 = vmax.f32 %v3547, %v3675
    %v3756 = vpack.c.bf16 %v3725, %v3724
    %v3757 = vpack.c.bf16 %v3727, %v3726
    %v3758 = vpack.c.bf16 %v3729, %v3728
    %v3759 = vpack.c.bf16 %v3731, %v3730
    %v3760 = vpack.c.bf16 %v3733, %v3732
    %v3761 = vpack.c.bf16 %v3735, %v3734
    %v3762 = vpack.c.bf16 %v3737, %v3736
    %v3763 = vpack.c.bf16 %v3739, %v3738
    %v3764 = vpack.c.bf16 %v3741, %v3740
    %v3765 = vpack.c.bf16 %v3743, %v3742
    %v3766 = vpack.c.bf16 %v3745, %v3744
    %v3767 = vpack.c.bf16 %v3747, %v3746
    %v3768 = vpack.c.bf16 %v3749, %v3748
    %v3769 = vpack.c.bf16 %v3751, %v3750
    %v3770 = vpack.c.bf16 %v3753, %v3752
    %v3771 = vpack.c.bf16 %v3755, %v3754
    %v3772 = vld [vmem:[%s0 + $0xc] sm:$0xff]
    %v3773 = vld [vmem:[%s0 + $0x44] sm:$0xff]
    %v3774 = vld [vmem:[%s0 + $0x7c] sm:$0xff]
    %v3775 = vld [vmem:[%s0 + $0xb4] sm:$0xff]
    %v3776 = vld [vmem:[%s0 + $0xec] sm:$0xff]
    %v3777 = vld [vmem:[%s0 + $0x124] sm:$0xff]
    %v3778 = vld [vmem:[%s0 + $0x15c] sm:$0xff]
    %v3779 = vld [vmem:[%s0 + $0x194] sm:$0xff]
    %v3780 = vld [vmem:[%s0 + $0x1cc] sm:$0xff]
    %v3781 = vld [vmem:[%s0 + $0x204] sm:$0xff]
    %v3782 = vld [vmem:[%s0 + $0x23c] sm:$0xff]
    %v3783 = vld [vmem:[%s0 + $0x274] sm:$0xff]
    %v3784 = vld [vmem:[%s0 + $0x2ac] sm:$0xff]
    %v3785 = vld [vmem:[%s0 + $0x2e4] sm:$0xff]
    %v3786 = vld [vmem:[%s0 + $0x31c] sm:$0xff]
    %v3787 = vld [vmem:[%s0 + $0x354] sm:$0xff]
    %v3788 = vunpack.c.l.bf16 %v3756
    %v3789 = vunpack.c.h.bf16 %v3756
    %v3790 = vunpack.c.l.bf16 %v3757
    %v3791 = vunpack.c.h.bf16 %v3757
    %v3792 = vunpack.c.l.bf16 %v3758
    %v3793 = vunpack.c.h.bf16 %v3758
    %v3794 = vunpack.c.l.bf16 %v3759
    %v3795 = vunpack.c.h.bf16 %v3759
    %v3796 = vunpack.c.l.bf16 %v3760
    %v3797 = vunpack.c.h.bf16 %v3760
    %v3798 = vunpack.c.l.bf16 %v3761
    %v3799 = vunpack.c.h.bf16 %v3761
    %v3800 = vunpack.c.l.bf16 %v3762
    %v3801 = vunpack.c.h.bf16 %v3762
    %v3802 = vunpack.c.l.bf16 %v3763
    %v3803 = vunpack.c.h.bf16 %v3763
    %v3804 = vunpack.c.l.bf16 %v3764
    %v3805 = vunpack.c.h.bf16 %v3764
    %v3806 = vunpack.c.l.bf16 %v3765
    %v3807 = vunpack.c.h.bf16 %v3765
    %v3808 = vunpack.c.l.bf16 %v3766
    %v3809 = vunpack.c.h.bf16 %v3766
    %v3810 = vunpack.c.l.bf16 %v3767
    %v3811 = vunpack.c.h.bf16 %v3767
    %v3812 = vunpack.c.l.bf16 %v3768
    %v3813 = vunpack.c.h.bf16 %v3768
    %v3814 = vunpack.c.l.bf16 %v3769
    %v3815 = vunpack.c.h.bf16 %v3769
    %v3816 = vunpack.c.l.bf16 %v3770
    %v3817 = vunpack.c.h.bf16 %v3770
    %v3818 = vunpack.c.l.bf16 %v3771
    %v3819 = vunpack.c.h.bf16 %v3771
    %v3820 = vunpack.c.l.bf16 %v3772
    %v3821 = vunpack.c.h.bf16 %v3772
    %v3822 = vunpack.c.l.bf16 %v3773
    %v3823 = vunpack.c.h.bf16 %v3773
    %v3824 = vunpack.c.l.bf16 %v3774
    %v3825 = vunpack.c.h.bf16 %v3774
    %v3826 = vunpack.c.l.bf16 %v3775
    %v3827 = vunpack.c.h.bf16 %v3775
    %v3828 = vunpack.c.l.bf16 %v3776
    %v3829 = vunpack.c.h.bf16 %v3776
    %v3830 = vunpack.c.l.bf16 %v3777
    %v3831 = vunpack.c.h.bf16 %v3777
    %v3832 = vunpack.c.l.bf16 %v3778
    %v3833 = vunpack.c.h.bf16 %v3778
    %v3834 = vunpack.c.l.bf16 %v3779
    %v3835 = vunpack.c.h.bf16 %v3779
    %v3836 = vunpack.c.l.bf16 %v3780
    %v3837 = vunpack.c.h.bf16 %v3780
    %v3838 = vunpack.c.l.bf16 %v3781
    %v3839 = vunpack.c.h.bf16 %v3781
    %v3840 = vunpack.c.l.bf16 %v3782
    %v3841 = vunpack.c.h.bf16 %v3782
    %v3842 = vunpack.c.l.bf16 %v3783
    %v3843 = vunpack.c.h.bf16 %v3783
    %v3844 = vunpack.c.l.bf16 %v3784
    %v3845 = vunpack.c.h.bf16 %v3784
    %v3846 = vunpack.c.l.bf16 %v3785
    %v3847 = vunpack.c.h.bf16 %v3785
    %v3848 = vunpack.c.l.bf16 %v3786
    %v3849 = vunpack.c.h.bf16 %v3786
    %v3850 = vunpack.c.l.bf16 %v3787
    %v3851 = vunpack.c.h.bf16 %v3787
    %v3852 = vmax.f32 %v3788, %v3820
    %v3853 = vmax.f32 %v3789, %v3821
    %v3854 = vmax.f32 %v3790, %v3822
    %v3855 = vmax.f32 %v3791, %v3823
    %v3856 = vmax.f32 %v3792, %v3824
    %v3857 = vmax.f32 %v3793, %v3825
    %v3858 = vmax.f32 %v3794, %v3826
    %v3859 = vmax.f32 %v3795, %v3827
    %v3860 = vmax.f32 %v3796, %v3828
    %v3861 = vmax.f32 %v3797, %v3829
    %v3862 = vmax.f32 %v3798, %v3830
    %v3863 = vmax.f32 %v3799, %v3831
    %v3864 = vmax.f32 %v3800, %v3832
    %v3865 = vmax.f32 %v3801, %v3833
    %v3866 = vmax.f32 %v3802, %v3834
    %v3867 = vmax.f32 %v3803, %v3835
    %v3868 = vmax.f32 %v3804, %v3836
    %v3869 = vmax.f32 %v3805, %v3837
    %v3870 = vmax.f32 %v3806, %v3838
    %v3871 = vmax.f32 %v3807, %v3839
    %v3872 = vmax.f32 %v3808, %v3840
    %v3873 = vmax.f32 %v3809, %v3841
    %v3874 = vmax.f32 %v3810, %v3842
    %v3875 = vmax.f32 %v3811, %v3843
    %v3876 = vmax.f32 %v3812, %v3844
    %v3877 = vmax.f32 %v3813, %v3845
    %v3878 = vmax.f32 %v3814, %v3846
    %v3879 = vmax.f32 %v3815, %v3847
    %v3880 = vmax.f32 %v3816, %v3848
    %v3881 = vmax.f32 %v3817, %v3849
    %v3882 = vmax.f32 %v3818, %v3850
    %v3883 = vmax.f32 %v3819, %v3851
    %v3884 = vpack.c.bf16 %v3853, %v3852
    %v3885 = vpack.c.bf16 %v3855, %v3854
    %v3886 = vpack.c.bf16 %v3857, %v3856
    %v3887 = vpack.c.bf16 %v3859, %v3858
    %v3888 = vpack.c.bf16 %v3861, %v3860
    %v3889 = vpack.c.bf16 %v3863, %v3862
    %v3890 = vpack.c.bf16 %v3865, %v3864
    %v3891 = vpack.c.bf16 %v3867, %v3866
    %v3892 = vpack.c.bf16 %v3869, %v3868
    %v3893 = vpack.c.bf16 %v3871, %v3870
    %v3894 = vpack.c.bf16 %v3873, %v3872
    %v3895 = vpack.c.bf16 %v3875, %v3874
    %v3896 = vpack.c.bf16 %v3877, %v3876
    %v3897 = vpack.c.bf16 %v3879, %v3878
    %v3898 = vpack.c.bf16 %v3881, %v3880
    %v3899 = vpack.c.bf16 %v3883, %v3882
    %v3900 = vld [vmem:[%s0 + $0x10] sm:$0xff]
    %v3901 = vld [vmem:[%s0 + $0x48] sm:$0xff]
    %v3902 = vld [vmem:[%s0 + $0x80] sm:$0xff]
    %v3903 = vld [vmem:[%s0 + $0xb8] sm:$0xff]
    %v3904 = vld [vmem:[%s0 + $0xf0] sm:$0xff]
    %v3905 = vld [vmem:[%s0 + $0x128] sm:$0xff]
    %v3906 = vld [vmem:[%s0 + $0x160] sm:$0xff]
    %v3907 = vld [vmem:[%s0 + $0x198] sm:$0xff]
    %v3908 = vld [vmem:[%s0 + $0x1d0] sm:$0xff]
    %v3909 = vld [vmem:[%s0 + $0x208] sm:$0xff]
    %v3910 = vld [vmem:[%s0 + $0x240] sm:$0xff]
    %v3911 = vld [vmem:[%s0 + $0x278] sm:$0xff]
    %v3912 = vld [vmem:[%s0 + $0x2b0] sm:$0xff]
    %v3913 = vld [vmem:[%s0 + $0x2e8] sm:$0xff]
    %v3914 = vld [vmem:[%s0 + $0x320] sm:$0xff]
    %v3915 = vld [vmem:[%s0 + $0x358] sm:$0xff]
    %v3916 = vunpack.c.l.bf16 %v3884
    %v3917 = vunpack.c.h.bf16 %v3884
    %v3918 = vunpack.c.l.bf16 %v3885
    %v3919 = vunpack.c.h.bf16 %v3885
    %v3920 = vunpack.c.l.bf16 %v3886
    %v3921 = vunpack.c.h.bf16 %v3886
    %v3922 = vunpack.c.l.bf16 %v3887
    %v3923 = vunpack.c.h.bf16 %v3887
    %v3924 = vunpack.c.l.bf16 %v3888
    %v3925 = vunpack.c.h.bf16 %v3888
    %v3926 = vunpack.c.l.bf16 %v3889
    %v3927 = vunpack.c.h.bf16 %v3889
    %v3928 = vunpack.c.l.bf16 %v3890
    %v3929 = vunpack.c.h.bf16 %v3890
    %v3930 = vunpack.c.l.bf16 %v3891
    %v3931 = vunpack.c.h.bf16 %v3891
    %v3932 = vunpack.c.l.bf16 %v3892
    %v3933 = vunpack.c.h.bf16 %v3892
    %v3934 = vunpack.c.l.bf16 %v3893
    %v3935 = vunpack.c.h.bf16 %v3893
    %v3936 = vunpack.c.l.bf16 %v3894
    %v3937 = vunpack.c.h.bf16 %v3894
    %v3938 = vunpack.c.l.bf16 %v3895
    %v3939 = vunpack.c.h.bf16 %v3895
    %v3940 = vunpack.c.l.bf16 %v3896
    %v3941 = vunpack.c.h.bf16 %v3896
    %v3942 = vunpack.c.l.bf16 %v3897
    %v3943 = vunpack.c.h.bf16 %v3897
    %v3944 = vunpack.c.l.bf16 %v3898
    %v3945 = vunpack.c.h.bf16 %v3898
    %v3946 = vunpack.c.l.bf16 %v3899
    %v3947 = vunpack.c.h.bf16 %v3899
    %v3948 = vunpack.c.l.bf16 %v3900
    %v3949 = vunpack.c.h.bf16 %v3900
    %v3950 = vunpack.c.l.bf16 %v3901
    %v3951 = vunpack.c.h.bf16 %v3901
    %v3952 = vunpack.c.l.bf16 %v3902
    %v3953 = vunpack.c.h.bf16 %v3902
    %v3954 = vunpack.c.l.bf16 %v3903
    %v3955 = vunpack.c.h.bf16 %v3903
    %v3956 = vunpack.c.l.bf16 %v3904
    %v3957 = vunpack.c.h.bf16 %v3904
    %v3958 = vunpack.c.l.bf16 %v3905
    %v3959 = vunpack.c.h.bf16 %v3905
    %v3960 = vunpack.c.l.bf16 %v3906
    %v3961 = vunpack.c.h.bf16 %v3906
    %v3962 = vunpack.c.l.bf16 %v3907
    %v3963 = vunpack.c.h.bf16 %v3907
    %v3964 = vunpack.c.l.bf16 %v3908
    %v3965 = vunpack.c.h.bf16 %v3908
    %v3966 = vunpack.c.l.bf16 %v3909
    %v3967 = vunpack.c.h.bf16 %v3909
    %v3968 = vunpack.c.l.bf16 %v3910
    %v3969 = vunpack.c.h.bf16 %v3910
    %v3970 = vunpack.c.l.bf16 %v3911
    %v3971 = vunpack.c.h.bf16 %v3911
    %v3972 = vunpack.c.l.bf16 %v3912
    %v3973 = vunpack.c.h.bf16 %v3912
    %v3974 = vunpack.c.l.bf16 %v3913
    %v3975 = vunpack.c.h.bf16 %v3913
    %v3976 = vunpack.c.l.bf16 %v3914
    %v3977 = vunpack.c.h.bf16 %v3914
    %v3978 = vunpack.c.l.bf16 %v3915
    %v3979 = vunpack.c.h.bf16 %v3915
    %4012 = vrot.lane.b32.xlu0 %v3948, 64
    %v4013 = vpop.permute.xlu0 %4012
    %4014 = vrot.lane.b32.xlu0 %v3949, 64
    %v4015 = vpop.permute.xlu0 %4014
    %4016 = vrot.lane.b32.xlu0 %v3950, 64
    %v4017 = vpop.permute.xlu0 %4016
    %4018 = vrot.lane.b32.xlu0 %v3951, 64
    %v4019 = vpop.permute.xlu0 %4018
    %4020 = vrot.lane.b32.xlu0 %v3952, 64
    %v4021 = vpop.permute.xlu0 %4020
    %4022 = vrot.lane.b32.xlu0 %v3953, 64
    %v4023 = vpop.permute.xlu0 %4022
    %4024 = vrot.lane.b32.xlu0 %v3954, 64
    %v4025 = vpop.permute.xlu0 %4024
    %4026 = vrot.lane.b32.xlu0 %v3955, 64
    %v4027 = vpop.permute.xlu0 %4026
    %4028 = vrot.lane.b32.xlu0 %v3956, 64
    %v4029 = vpop.permute.xlu0 %4028
    %4030 = vrot.lane.b32.xlu0 %v3957, 64
    %v4031 = vpop.permute.xlu0 %4030
    %4032 = vrot.lane.b32.xlu0 %v3958, 64
    %v4033 = vpop.permute.xlu0 %4032
    %4034 = vrot.lane.b32.xlu0 %v3959, 64
    %v4035 = vpop.permute.xlu0 %4034
    %4036 = vrot.lane.b32.xlu0 %v3960, 64
    %v4037 = vpop.permute.xlu0 %4036
    %4038 = vrot.lane.b32.xlu0 %v3961, 64
    %v4039 = vpop.permute.xlu0 %4038
    %4040 = vrot.lane.b32.xlu0 %v3962, 64
    %v4041 = vpop.permute.xlu0 %4040
    %4042 = vrot.lane.b32.xlu0 %v3963, 64
    %v4043 = vpop.permute.xlu0 %4042
    %4044 = vrot.lane.b32.xlu0 %v3964, 64
    %v4045 = vpop.permute.xlu0 %4044
    %4046 = vrot.lane.b32.xlu0 %v3965, 64
    %v4047 = vpop.permute.xlu0 %4046
    %4048 = vrot.lane.b32.xlu0 %v3966, 64
    %v4049 = vpop.permute.xlu0 %4048
    %4050 = vrot.lane.b32.xlu0 %v3967, 64
    %v4051 = vpop.permute.xlu0 %4050
    %4052 = vrot.lane.b32.xlu0 %v3968, 64
    %v4053 = vpop.permute.xlu0 %4052
    %4054 = vrot.lane.b32.xlu0 %v3969, 64
    %v4055 = vpop.permute.xlu0 %4054
    %4056 = vrot.lane.b32.xlu0 %v3970, 64
    %v4057 = vpop.permute.xlu0 %4056
    %4058 = vrot.lane.b32.xlu0 %v3971, 64
    %v4059 = vpop.permute.xlu0 %4058
    %4060 = vrot.lane.b32.xlu0 %v3972, 64
    %v4061 = vpop.permute.xlu0 %4060
    %4062 = vrot.lane.b32.xlu0 %v3973, 64
    %v4063 = vpop.permute.xlu0 %4062
    %4064 = vrot.lane.b32.xlu0 %v3974, 64
    %v4065 = vpop.permute.xlu0 %4064
    %4066 = vrot.lane.b32.xlu0 %v3975, 64
    %v4067 = vpop.permute.xlu0 %4066
    %4068 = vrot.lane.b32.xlu0 %v3976, 64
    %v4069 = vpop.permute.xlu0 %4068
    %4070 = vrot.lane.b32.xlu0 %v3977, 64
    %v4071 = vpop.permute.xlu0 %4070
    %4072 = vrot.lane.b32.xlu0 %v3978, 64
    %v4073 = vpop.permute.xlu0 %4072
    %4074 = vrot.lane.b32.xlu0 %v3979, 64
    %v4075 = vpop.permute.xlu0 %4074
    %v4076 = vsel %vm1979, %v4013, %v4015
    %v4077 = vsel %vm1979, %v4017, %v4019
    %v4078 = vsel %vm1979, %v4021, %v4023
    %v4079 = vsel %vm1979, %v4025, %v4027
    %v4080 = vsel %vm1979, %v4029, %v4031
    %v4081 = vsel %vm1979, %v4033, %v4035
    %v4082 = vsel %vm1979, %v4037, %v4039
    %v4083 = vsel %vm1979, %v4041, %v4043
    %v4084 = vsel %vm1979, %v4045, %v4047
    %v4085 = vsel %vm1979, %v4049, %v4051
    %v4086 = vsel %vm1979, %v4053, %v4055
    %v4087 = vsel %vm1979, %v4057, %v4059
    %v4088 = vsel %vm1979, %v4061, %v4063
    %v4089 = vsel %vm1979, %v4065, %v4067
    %v4090 = vsel %vm1979, %v4069, %v4071
    %v4091 = vsel %vm1979, %v4073, %v4075
    %v4124 = vmax.f32 %v3916, %v4076
    %v4125 = vmax.f32 %v3917, %v4015
    %v4126 = vmax.f32 %v3918, %v4077
    %v4127 = vmax.f32 %v3919, %v4019
    %v4128 = vmax.f32 %v3920, %v4078
    %v4129 = vmax.f32 %v3921, %v4023
    %v4130 = vmax.f32 %v3922, %v4079
    %v4131 = vmax.f32 %v3923, %v4027
    %v4132 = vmax.f32 %v3924, %v4080
    %v4133 = vmax.f32 %v3925, %v4031
    %v4134 = vmax.f32 %v3926, %v4081
    %v4135 = vmax.f32 %v3927, %v4035
    %v4136 = vmax.f32 %v3928, %v4082
    %v4137 = vmax.f32 %v3929, %v4039
    %v4138 = vmax.f32 %v3930, %v4083
    %v4139 = vmax.f32 %v3931, %v4043
    %v4140 = vmax.f32 %v3932, %v4084
    %v4141 = vmax.f32 %v3933, %v4047
    %v4142 = vmax.f32 %v3934, %v4085
    %v4143 = vmax.f32 %v3935, %v4051
    %v4144 = vmax.f32 %v3936, %v4086
    %v4145 = vmax.f32 %v3937, %v4055
    %v4146 = vmax.f32 %v3938, %v4087
    %v4147 = vmax.f32 %v3939, %v4059
    %v4148 = vmax.f32 %v3940, %v4088
    %v4149 = vmax.f32 %v3941, %v4063
    %v4150 = vmax.f32 %v3942, %v4089
    %v4151 = vmax.f32 %v3943, %v4067
    %v4152 = vmax.f32 %v3944, %v4090
    %v4153 = vmax.f32 %v3945, %v4071
    %v4154 = vmax.f32 %v3946, %v4091
    %v4155 = vmax.f32 %v3947, %v4075
    %v4156 = vpack.c.bf16 %v4125, %v4124
    %v4157 = vpack.c.bf16 %v4127, %v4126
    %v4158 = vpack.c.bf16 %v4129, %v4128
    %v4159 = vpack.c.bf16 %v4131, %v4130
    %v4160 = vpack.c.bf16 %v4133, %v4132
    %v4161 = vpack.c.bf16 %v4135, %v4134
    %v4162 = vpack.c.bf16 %v4137, %v4136
    %v4163 = vpack.c.bf16 %v4139, %v4138
    %v4164 = vpack.c.bf16 %v4141, %v4140
    %v4165 = vpack.c.bf16 %v4143, %v4142
    %v4166 = vpack.c.bf16 %v4145, %v4144
    %v4167 = vpack.c.bf16 %v4147, %v4146
    %v4168 = vpack.c.bf16 %v4149, %v4148
    %v4169 = vpack.c.bf16 %v4151, %v4150
    %v4170 = vpack.c.bf16 %v4153, %v4152
    %v4171 = vpack.c.bf16 %v4155, %v4154
    %v4172 = vld [vmem:[%s0 + $0x18] sm:$0xff]
    %v4173 = vld [vmem:[%s0 + $0x50] sm:$0xff]
    %v4174 = vld [vmem:[%s0 + $0x88] sm:$0xff]
    %v4175 = vld [vmem:[%s0 + $0xc0] sm:$0xff]
    %v4176 = vld [vmem:[%s0 + $0xf8] sm:$0xff]
    %v4177 = vld [vmem:[%s0 + $0x130] sm:$0xff]
    %v4178 = vld [vmem:[%s0 + $0x168] sm:$0xff]
    %v4179 = vld [vmem:[%s0 + $0x1a0] sm:$0xff]
    %v4180 = vld [vmem:[%s0 + $0x1d8] sm:$0xff]
    %v4181 = vld [vmem:[%s0 + $0x210] sm:$0xff]
    %v4182 = vld [vmem:[%s0 + $0x248] sm:$0xff]
    %v4183 = vld [vmem:[%s0 + $0x280] sm:$0xff]
    %v4184 = vld [vmem:[%s0 + $0x2b8] sm:$0xff]
    %v4185 = vld [vmem:[%s0 + $0x2f0] sm:$0xff]
    %v4186 = vld [vmem:[%s0 + $0x328] sm:$0xff]
    %v4187 = vld [vmem:[%s0 + $0x360] sm:$0xff]
    %v4188 = vunpack.c.l.bf16 %v4156
    %v4189 = vunpack.c.h.bf16 %v4156
    %v4190 = vunpack.c.l.bf16 %v4157
    %v4191 = vunpack.c.h.bf16 %v4157
    %v4192 = vunpack.c.l.bf16 %v4158
    %v4193 = vunpack.c.h.bf16 %v4158
    %v4194 = vunpack.c.l.bf16 %v4159
    %v4195 = vunpack.c.h.bf16 %v4159
    %v4196 = vunpack.c.l.bf16 %v4160
    %v4197 = vunpack.c.h.bf16 %v4160
    %v4198 = vunpack.c.l.bf16 %v4161
    %v4199 = vunpack.c.h.bf16 %v4161
    %v4200 = vunpack.c.l.bf16 %v4162
    %v4201 = vunpack.c.h.bf16 %v4162
    %v4202 = vunpack.c.l.bf16 %v4163
    %v4203 = vunpack.c.h.bf16 %v4163
    %v4204 = vunpack.c.l.bf16 %v4164
    %v4205 = vunpack.c.h.bf16 %v4164
    %v4206 = vunpack.c.l.bf16 %v4165
    %v4207 = vunpack.c.h.bf16 %v4165
    %v4208 = vunpack.c.l.bf16 %v4166
    %v4209 = vunpack.c.h.bf16 %v4166
    %v4210 = vunpack.c.l.bf16 %v4167
    %v4211 = vunpack.c.h.bf16 %v4167
    %v4212 = vunpack.c.l.bf16 %v4168
    %v4213 = vunpack.c.h.bf16 %v4168
    %v4214 = vunpack.c.l.bf16 %v4169
    %v4215 = vunpack.c.h.bf16 %v4169
    %v4216 = vunpack.c.l.bf16 %v4170
    %v4217 = vunpack.c.h.bf16 %v4170
    %v4218 = vunpack.c.l.bf16 %v4171
    %v4219 = vunpack.c.h.bf16 %v4171
    %v4220 = vunpack.c.l.bf16 %v4172
    %v4221 = vunpack.c.h.bf16 %v4172
    %v4222 = vunpack.c.l.bf16 %v4173
    %v4223 = vunpack.c.h.bf16 %v4173
    %v4224 = vunpack.c.l.bf16 %v4174
    %v4225 = vunpack.c.h.bf16 %v4174
    %v4226 = vunpack.c.l.bf16 %v4175
    %v4227 = vunpack.c.h.bf16 %v4175
    %v4228 = vunpack.c.l.bf16 %v4176
    %v4229 = vunpack.c.h.bf16 %v4176
    %v4230 = vunpack.c.l.bf16 %v4177
    %v4231 = vunpack.c.h.bf16 %v4177
    %v4232 = vunpack.c.l.bf16 %v4178
    %v4233 = vunpack.c.h.bf16 %v4178
    %v4234 = vunpack.c.l.bf16 %v4179
    %v4235 = vunpack.c.h.bf16 %v4179
    %v4236 = vunpack.c.l.bf16 %v4180
    %v4237 = vunpack.c.h.bf16 %v4180
    %v4238 = vunpack.c.l.bf16 %v4181
    %v4239 = vunpack.c.h.bf16 %v4181
    %v4240 = vunpack.c.l.bf16 %v4182
    %v4241 = vunpack.c.h.bf16 %v4182
    %v4242 = vunpack.c.l.bf16 %v4183
    %v4243 = vunpack.c.h.bf16 %v4183
    %v4244 = vunpack.c.l.bf16 %v4184
    %v4245 = vunpack.c.h.bf16 %v4184
    %v4246 = vunpack.c.l.bf16 %v4185
    %v4247 = vunpack.c.h.bf16 %v4185
    %v4248 = vunpack.c.l.bf16 %v4186
    %v4249 = vunpack.c.h.bf16 %v4186
    %v4250 = vunpack.c.l.bf16 %v4187
    %v4251 = vunpack.c.h.bf16 %v4187
    %v4252 = vmax.f32 %v4188, %v4220
    %v4253 = vmax.f32 %v4189, %v4221
    %v4254 = vmax.f32 %v4190, %v4222
    %v4255 = vmax.f32 %v4191, %v4223
    %v4256 = vmax.f32 %v4192, %v4224
    %v4257 = vmax.f32 %v4193, %v4225
    %v4258 = vmax.f32 %v4194, %v4226
    %v4259 = vmax.f32 %v4195, %v4227
    %v4260 = vmax.f32 %v4196, %v4228
    %v4261 = vmax.f32 %v4197, %v4229
    %v4262 = vmax.f32 %v4198, %v4230
    %v4263 = vmax.f32 %v4199, %v4231
    %v4264 = vmax.f32 %v4200, %v4232
    %v4265 = vmax.f32 %v4201, %v4233
    %v4266 = vmax.f32 %v4202, %v4234
    %v4267 = vmax.f32 %v4203, %v4235
    %v4268 = vmax.f32 %v4204, %v4236
    %v4269 = vmax.f32 %v4205, %v4237
    %v4270 = vmax.f32 %v4206, %v4238
    %v4271 = vmax.f32 %v4207, %v4239
    %v4272 = vmax.f32 %v4208, %v4240
    %v4273 = vmax.f32 %v4209, %v4241
    %v4274 = vmax.f32 %v4210, %v4242
    %v4275 = vmax.f32 %v4211, %v4243
    %v4276 = vmax.f32 %v4212, %v4244
    %v4277 = vmax.f32 %v4213, %v4245
    %v4278 = vmax.f32 %v4214, %v4246
    %v4279 = vmax.f32 %v4215, %v4247
    %v4280 = vmax.f32 %v4216, %v4248
    %v4281 = vmax.f32 %v4217, %v4249
    %v4282 = vmax.f32 %v4218, %v4250
    %v4283 = vmax.f32 %v4219, %v4251
    %v4284 = vpack.c.bf16 %v4253, %v4252
    %v4285 = vpack.c.bf16 %v4255, %v4254
    %v4286 = vpack.c.bf16 %v4257, %v4256
    %v4287 = vpack.c.bf16 %v4259, %v4258
    %v4288 = vpack.c.bf16 %v4261, %v4260
    %v4289 = vpack.c.bf16 %v4263, %v4262
    %v4290 = vpack.c.bf16 %v4265, %v4264
    %v4291 = vpack.c.bf16 %v4267, %v4266
    %v4292 = vpack.c.bf16 %v4269, %v4268
    %v4293 = vpack.c.bf16 %v4271, %v4270
    %v4294 = vpack.c.bf16 %v4273, %v4272
    %v4295 = vpack.c.bf16 %v4275, %v4274
    %v4296 = vpack.c.bf16 %v4277, %v4276
    %v4297 = vpack.c.bf16 %v4279, %v4278
    %v4298 = vpack.c.bf16 %v4281, %v4280
    %v4299 = vpack.c.bf16 %v4283, %v4282
    %v4300 = vld [vmem:[%s0 + $0x1c] sm:$0xff]
    %v4301 = vld [vmem:[%s0 + $0x54] sm:$0xff]
    %v4302 = vld [vmem:[%s0 + $0x8c] sm:$0xff]
    %v4303 = vld [vmem:[%s0 + $0xc4] sm:$0xff]
    %v4304 = vld [vmem:[%s0 + $0xfc] sm:$0xff]
    %v4305 = vld [vmem:[%s0 + $0x134] sm:$0xff]
    %v4306 = vld [vmem:[%s0 + $0x16c] sm:$0xff]
    %v4307 = vld [vmem:[%s0 + $0x1a4] sm:$0xff]
    %v4308 = vld [vmem:[%s0 + $0x1dc] sm:$0xff]
    %v4309 = vld [vmem:[%s0 + $0x214] sm:$0xff]
    %v4310 = vld [vmem:[%s0 + $0x24c] sm:$0xff]
    %v4311 = vld [vmem:[%s0 + $0x284] sm:$0xff]
    %v4312 = vld [vmem:[%s0 + $0x2bc] sm:$0xff]
    %v4313 = vld [vmem:[%s0 + $0x2f4] sm:$0xff]
    %v4314 = vld [vmem:[%s0 + $0x32c] sm:$0xff]
    %v4315 = vld [vmem:[%s0 + $0x364] sm:$0xff]
    %v4316 = vunpack.c.l.bf16 %v4284
    %v4317 = vunpack.c.h.bf16 %v4284
    %v4318 = vunpack.c.l.bf16 %v4285
    %v4319 = vunpack.c.h.bf16 %v4285
    %v4320 = vunpack.c.l.bf16 %v4286
    %v4321 = vunpack.c.h.bf16 %v4286
    %v4322 = vunpack.c.l.bf16 %v4287
    %v4323 = vunpack.c.h.bf16 %v4287
    %v4324 = vunpack.c.l.bf16 %v4288
    %v4325 = vunpack.c.h.bf16 %v4288
    %v4326 = vunpack.c.l.bf16 %v4289
    %v4327 = vunpack.c.h.bf16 %v4289
    %v4328 = vunpack.c.l.bf16 %v4290
    %v4329 = vunpack.c.h.bf16 %v4290
    %v4330 = vunpack.c.l.bf16 %v4291
    %v4331 = vunpack.c.h.bf16 %v4291
    %v4332 = vunpack.c.l.bf16 %v4292
    %v4333 = vunpack.c.h.bf16 %v4292
    %v4334 = vunpack.c.l.bf16 %v4293
    %v4335 = vunpack.c.h.bf16 %v4293
    %v4336 = vunpack.c.l.bf16 %v4294
    %v4337 = vunpack.c.h.bf16 %v4294
    %v4338 = vunpack.c.l.bf16 %v4295
    %v4339 = vunpack.c.h.bf16 %v4295
    %v4340 = vunpack.c.l.bf16 %v4296
    %v4341 = vunpack.c.h.bf16 %v4296
    %v4342 = vunpack.c.l.bf16 %v4297
    %v4343 = vunpack.c.h.bf16 %v4297
    %v4344 = vunpack.c.l.bf16 %v4298
    %v4345 = vunpack.c.h.bf16 %v4298
    %v4346 = vunpack.c.l.bf16 %v4299
    %v4347 = vunpack.c.h.bf16 %v4299
    %v4348 = vunpack.c.l.bf16 %v4300
    %v4349 = vunpack.c.h.bf16 %v4300
    %v4350 = vunpack.c.l.bf16 %v4301
    %v4351 = vunpack.c.h.bf16 %v4301
    %v4352 = vunpack.c.l.bf16 %v4302
    %v4353 = vunpack.c.h.bf16 %v4302
    %v4354 = vunpack.c.l.bf16 %v4303
    %v4355 = vunpack.c.h.bf16 %v4303
    %v4356 = vunpack.c.l.bf16 %v4304
    %v4357 = vunpack.c.h.bf16 %v4304
    %v4358 = vunpack.c.l.bf16 %v4305
    %v4359 = vunpack.c.h.bf16 %v4305
    %v4360 = vunpack.c.l.bf16 %v4306
    %v4361 = vunpack.c.h.bf16 %v4306
    %v4362 = vunpack.c.l.bf16 %v4307
    %v4363 = vunpack.c.h.bf16 %v4307
    %v4364 = vunpack.c.l.bf16 %v4308
    %v4365 = vunpack.c.h.bf16 %v4308
    %v4366 = vunpack.c.l.bf16 %v4309
    %v4367 = vunpack.c.h.bf16 %v4309
    %v4368 = vunpack.c.l.bf16 %v4310
    %v4369 = vunpack.c.h.bf16 %v4310
    %v4370 = vunpack.c.l.bf16 %v4311
    %v4371 = vunpack.c.h.bf16 %v4311
    %v4372 = vunpack.c.l.bf16 %v4312
    %v4373 = vunpack.c.h.bf16 %v4312
    %v4374 = vunpack.c.l.bf16 %v4313
    %v4375 = vunpack.c.h.bf16 %v4313
    %v4376 = vunpack.c.l.bf16 %v4314
    %v4377 = vunpack.c.h.bf16 %v4314
    %v4378 = vunpack.c.l.bf16 %v4315
    %v4379 = vunpack.c.h.bf16 %v4315
    %4412 = vrot.lane.b32.xlu0 %v4348, 64
    %v4413 = vpop.permute.xlu0 %4412
    %4414 = vrot.lane.b32.xlu0 %v4349, 64
    %v4415 = vpop.permute.xlu0 %4414
    %4416 = vrot.lane.b32.xlu0 %v4350, 64
    %v4417 = vpop.permute.xlu0 %4416
    %4418 = vrot.lane.b32.xlu0 %v4351, 64
    %v4419 = vpop.permute.xlu0 %4418
    %4420 = vrot.lane.b32.xlu0 %v4352, 64
    %v4421 = vpop.permute.xlu0 %4420
    %4422 = vrot.lane.b32.xlu0 %v4353, 64
    %v4423 = vpop.permute.xlu0 %4422
    %4424 = vrot.lane.b32.xlu0 %v4354, 64
    %v4425 = vpop.permute.xlu0 %4424
    %4426 = vrot.lane.b32.xlu0 %v4355, 64
    %v4427 = vpop.permute.xlu0 %4426
    %4428 = vrot.lane.b32.xlu0 %v4356, 64
    %v4429 = vpop.permute.xlu0 %4428
    %4430 = vrot.lane.b32.xlu0 %v4357, 64
    %v4431 = vpop.permute.xlu0 %4430
    %4432 = vrot.lane.b32.xlu0 %v4358, 64
    %v4433 = vpop.permute.xlu0 %4432
    %4434 = vrot.lane.b32.xlu0 %v4359, 64
    %v4435 = vpop.permute.xlu0 %4434
    %4436 = vrot.lane.b32.xlu0 %v4360, 64
    %v4437 = vpop.permute.xlu0 %4436
    %4438 = vrot.lane.b32.xlu0 %v4361, 64
    %v4439 = vpop.permute.xlu0 %4438
    %4440 = vrot.lane.b32.xlu0 %v4362, 64
    %v4441 = vpop.permute.xlu0 %4440
    %4442 = vrot.lane.b32.xlu0 %v4363, 64
    %v4443 = vpop.permute.xlu0 %4442
    %4444 = vrot.lane.b32.xlu0 %v4364, 64
    %v4445 = vpop.permute.xlu0 %4444
    %4446 = vrot.lane.b32.xlu0 %v4365, 64
    %v4447 = vpop.permute.xlu0 %4446
    %4448 = vrot.lane.b32.xlu0 %v4366, 64
    %v4449 = vpop.permute.xlu0 %4448
    %4450 = vrot.lane.b32.xlu0 %v4367, 64
    %v4451 = vpop.permute.xlu0 %4450
    %4452 = vrot.lane.b32.xlu0 %v4368, 64
    %v4453 = vpop.permute.xlu0 %4452
    %4454 = vrot.lane.b32.xlu0 %v4369, 64
    %v4455 = vpop.permute.xlu0 %4454
    %4456 = vrot.lane.b32.xlu0 %v4370, 64
    %v4457 = vpop.permute.xlu0 %4456
    %4458 = vrot.lane.b32.xlu0 %v4371, 64
    %v4459 = vpop.permute.xlu0 %4458
    %4460 = vrot.lane.b32.xlu0 %v4372, 64
    %v4461 = vpop.permute.xlu0 %4460
    %4462 = vrot.lane.b32.xlu0 %v4373, 64
    %v4463 = vpop.permute.xlu0 %4462
    %4464 = vrot.lane.b32.xlu0 %v4374, 64
    %v4465 = vpop.permute.xlu0 %4464
    %4466 = vrot.lane.b32.xlu0 %v4375, 64
    %v4467 = vpop.permute.xlu0 %4466
    %4468 = vrot.lane.b32.xlu0 %v4376, 64
    %v4469 = vpop.permute.xlu0 %4468
    %4470 = vrot.lane.b32.xlu0 %v4377, 64
    %v4471 = vpop.permute.xlu0 %4470
    %4472 = vrot.lane.b32.xlu0 %v4378, 64
    %v4473 = vpop.permute.xlu0 %4472
    %4474 = vrot.lane.b32.xlu0 %v4379, 64
    %v4475 = vpop.permute.xlu0 %4474
    %v4476 = vsel %vm1979, %v4413, %v4415
    %v4477 = vsel %vm1979, %v4417, %v4419
    %v4478 = vsel %vm1979, %v4421, %v4423
    %v4479 = vsel %vm1979, %v4425, %v4427
    %v4480 = vsel %vm1979, %v4429, %v4431
    %v4481 = vsel %vm1979, %v4433, %v4435
    %v4482 = vsel %vm1979, %v4437, %v4439
    %v4483 = vsel %vm1979, %v4441, %v4443
    %v4484 = vsel %vm1979, %v4445, %v4447
    %v4485 = vsel %vm1979, %v4449, %v4451
    %v4486 = vsel %vm1979, %v4453, %v4455
    %v4487 = vsel %vm1979, %v4457, %v4459
    %v4488 = vsel %vm1979, %v4461, %v4463
    %v4489 = vsel %vm1979, %v4465, %v4467
    %v4490 = vsel %vm1979, %v4469, %v4471
    %v4491 = vsel %vm1979, %v4473, %v4475
    %v4524 = vmax.f32 %v4316, %v4476
    %v4525 = vmax.f32 %v4317, %v4415
    %v4526 = vmax.f32 %v4318, %v4477
    %v4527 = vmax.f32 %v4319, %v4419
    %v4528 = vmax.f32 %v4320, %v4478
    %v4529 = vmax.f32 %v4321, %v4423
    %v4530 = vmax.f32 %v4322, %v4479
    %v4531 = vmax.f32 %v4323, %v4427
    %v4532 = vmax.f32 %v4324, %v4480
    %v4533 = vmax.f32 %v4325, %v4431
    %v4534 = vmax.f32 %v4326, %v4481
    %v4535 = vmax.f32 %v4327, %v4435
    %v4536 = vmax.f32 %v4328, %v4482
    %v4537 = vmax.f32 %v4329, %v4439
    %v4538 = vmax.f32 %v4330, %v4483
    %v4539 = vmax.f32 %v4331, %v4443
    %v4540 = vmax.f32 %v4332, %v4484
    %v4541 = vmax.f32 %v4333, %v4447
    %v4542 = vmax.f32 %v4334, %v4485
    %v4543 = vmax.f32 %v4335, %v4451
    %v4544 = vmax.f32 %v4336, %v4486
    %v4545 = vmax.f32 %v4337, %v4455
    %v4546 = vmax.f32 %v4338, %v4487
    %v4547 = vmax.f32 %v4339, %v4459
    %v4548 = vmax.f32 %v4340, %v4488
    %v4549 = vmax.f32 %v4341, %v4463
    %v4550 = vmax.f32 %v4342, %v4489
    %v4551 = vmax.f32 %v4343, %v4467
    %v4552 = vmax.f32 %v4344, %v4490
    %v4553 = vmax.f32 %v4345, %v4471
    %v4554 = vmax.f32 %v4346, %v4491
    %v4555 = vmax.f32 %v4347, %v4475
    %v4556 = vpack.c.bf16 %v4525, %v4524
    %v4557 = vpack.c.bf16 %v4527, %v4526
    %v4558 = vpack.c.bf16 %v4529, %v4528
    %v4559 = vpack.c.bf16 %v4531, %v4530
    %v4560 = vpack.c.bf16 %v4533, %v4532
    %v4561 = vpack.c.bf16 %v4535, %v4534
    %v4562 = vpack.c.bf16 %v4537, %v4536
    %v4563 = vpack.c.bf16 %v4539, %v4538
    %v4564 = vpack.c.bf16 %v4541, %v4540
    %v4565 = vpack.c.bf16 %v4543, %v4542
    %v4566 = vpack.c.bf16 %v4545, %v4544
    %v4567 = vpack.c.bf16 %v4547, %v4546
    %v4568 = vpack.c.bf16 %v4549, %v4548
    %v4569 = vpack.c.bf16 %v4551, %v4550
    %v4570 = vpack.c.bf16 %v4553, %v4552
    %v4571 = vpack.c.bf16 %v4555, %v4554
    %v4572 = vld [vmem:[%s0 + $0x24] sm:$0xff]
    %v4573 = vld [vmem:[%s0 + $0x5c] sm:$0xff]
    %v4574 = vld [vmem:[%s0 + $0x94] sm:$0xff]
    %v4575 = vld [vmem:[%s0 + $0xcc] sm:$0xff]
    %v4576 = vld [vmem:[%s0 + $0x104] sm:$0xff]
    %v4577 = vld [vmem:[%s0 + $0x13c] sm:$0xff]
    %v4578 = vld [vmem:[%s0 + $0x174] sm:$0xff]
    %v4579 = vld [vmem:[%s0 + $0x1ac] sm:$0xff]
    %v4580 = vld [vmem:[%s0 + $0x1e4] sm:$0xff]
    %v4581 = vld [vmem:[%s0 + $0x21c] sm:$0xff]
    %v4582 = vld [vmem:[%s0 + $0x254] sm:$0xff]
    %v4583 = vld [vmem:[%s0 + $0x28c] sm:$0xff]
    %v4584 = vld [vmem:[%s0 + $0x2c4] sm:$0xff]
    %v4585 = vld [vmem:[%s0 + $0x2fc] sm:$0xff]
    %v4586 = vld [vmem:[%s0 + $0x334] sm:$0xff]
    %v4587 = vld [vmem:[%s0 + $0x36c] sm:$0xff]
    %v4588 = vunpack.c.l.bf16 %v4556
    %v4589 = vunpack.c.h.bf16 %v4556
    %v4590 = vunpack.c.l.bf16 %v4557
    %v4591 = vunpack.c.h.bf16 %v4557
    %v4592 = vunpack.c.l.bf16 %v4558
    %v4593 = vunpack.c.h.bf16 %v4558
    %v4594 = vunpack.c.l.bf16 %v4559
    %v4595 = vunpack.c.h.bf16 %v4559
    %v4596 = vunpack.c.l.bf16 %v4560
    %v4597 = vunpack.c.h.bf16 %v4560
    %v4598 = vunpack.c.l.bf16 %v4561
    %v4599 = vunpack.c.h.bf16 %v4561
    %v4600 = vunpack.c.l.bf16 %v4562
    %v4601 = vunpack.c.h.bf16 %v4562
    %v4602 = vunpack.c.l.bf16 %v4563
    %v4603 = vunpack.c.h.bf16 %v4563
    %v4604 = vunpack.c.l.bf16 %v4564
    %v4605 = vunpack.c.h.bf16 %v4564
    %v4606 = vunpack.c.l.bf16 %v4565
    %v4607 = vunpack.c.h.bf16 %v4565
    %v4608 = vunpack.c.l.bf16 %v4566
    %v4609 = vunpack.c.h.bf16 %v4566
    %v4610 = vunpack.c.l.bf16 %v4567
    %v4611 = vunpack.c.h.bf16 %v4567
    %v4612 = vunpack.c.l.bf16 %v4568
    %v4613 = vunpack.c.h.bf16 %v4568
    %v4614 = vunpack.c.l.bf16 %v4569
    %v4615 = vunpack.c.h.bf16 %v4569
    %v4616 = vunpack.c.l.bf16 %v4570
    %v4617 = vunpack.c.h.bf16 %v4570
    %v4618 = vunpack.c.l.bf16 %v4571
    %v4619 = vunpack.c.h.bf16 %v4571
    %v4620 = vunpack.c.l.bf16 %v4572
    %v4621 = vunpack.c.h.bf16 %v4572
    %v4622 = vunpack.c.l.bf16 %v4573
    %v4623 = vunpack.c.h.bf16 %v4573
    %v4624 = vunpack.c.l.bf16 %v4574
    %v4625 = vunpack.c.h.bf16 %v4574
    %v4626 = vunpack.c.l.bf16 %v4575
    %v4627 = vunpack.c.h.bf16 %v4575
    %v4628 = vunpack.c.l.bf16 %v4576
    %v4629 = vunpack.c.h.bf16 %v4576
    %v4630 = vunpack.c.l.bf16 %v4577
    %v4631 = vunpack.c.h.bf16 %v4577
    %v4632 = vunpack.c.l.bf16 %v4578
    %v4633 = vunpack.c.h.bf16 %v4578
    %v4634 = vunpack.c.l.bf16 %v4579
    %v4635 = vunpack.c.h.bf16 %v4579
    %v4636 = vunpack.c.l.bf16 %v4580
    %v4637 = vunpack.c.h.bf16 %v4580
    %v4638 = vunpack.c.l.bf16 %v4581
    %v4639 = vunpack.c.h.bf16 %v4581
    %v4640 = vunpack.c.l.bf16 %v4582
    %v4641 = vunpack.c.h.bf16 %v4582
    %v4642 = vunpack.c.l.bf16 %v4583
    %v4643 = vunpack.c.h.bf16 %v4583
    %v4644 = vunpack.c.l.bf16 %v4584
    %v4645 = vunpack.c.h.bf16 %v4584
    %v4646 = vunpack.c.l.bf16 %v4585
    %v4647 = vunpack.c.h.bf16 %v4585
    %v4648 = vunpack.c.l.bf16 %v4586
    %v4649 = vunpack.c.h.bf16 %v4586
    %v4650 = vunpack.c.l.bf16 %v4587
    %v4651 = vunpack.c.h.bf16 %v4587
    %v4652 = vmax.f32 %v4588, %v4620
    %v4653 = vmax.f32 %v4589, %v4621
    %v4654 = vmax.f32 %v4590, %v4622
    %v4655 = vmax.f32 %v4591, %v4623
    %v4656 = vmax.f32 %v4592, %v4624
    %v4657 = vmax.f32 %v4593, %v4625
    %v4658 = vmax.f32 %v4594, %v4626
    %v4659 = vmax.f32 %v4595, %v4627
    %v4660 = vmax.f32 %v4596, %v4628
    %v4661 = vmax.f32 %v4597, %v4629
    %v4662 = vmax.f32 %v4598, %v4630
    %v4663 = vmax.f32 %v4599, %v4631
    %v4664 = vmax.f32 %v4600, %v4632
    %v4665 = vmax.f32 %v4601, %v4633
    %v4666 = vmax.f32 %v4602, %v4634
    %v4667 = vmax.f32 %v4603, %v4635
    %v4668 = vmax.f32 %v4604, %v4636
    %v4669 = vmax.f32 %v4605, %v4637
    %v4670 = vmax.f32 %v4606, %v4638
    %v4671 = vmax.f32 %v4607, %v4639
    %v4672 = vmax.f32 %v4608, %v4640
    %v4673 = vmax.f32 %v4609, %v4641
    %v4674 = vmax.f32 %v4610, %v4642
    %v4675 = vmax.f32 %v4611, %v4643
    %v4676 = vmax.f32 %v4612, %v4644
    %v4677 = vmax.f32 %v4613, %v4645
    %v4678 = vmax.f32 %v4614, %v4646
    %v4679 = vmax.f32 %v4615, %v4647
    %v4680 = vmax.f32 %v4616, %v4648
    %v4681 = vmax.f32 %v4617, %v4649
    %v4682 = vmax.f32 %v4618, %v4650
    %v4683 = vmax.f32 %v4619, %v4651
    %v4684 = vpack.c.bf16 %v4653, %v4652
    %v4685 = vpack.c.bf16 %v4655, %v4654
    %v4686 = vpack.c.bf16 %v4657, %v4656
    %v4687 = vpack.c.bf16 %v4659, %v4658
    %v4688 = vpack.c.bf16 %v4661, %v4660
    %v4689 = vpack.c.bf16 %v4663, %v4662
    %v4690 = vpack.c.bf16 %v4665, %v4664
    %v4691 = vpack.c.bf16 %v4667, %v4666
    %v4692 = vpack.c.bf16 %v4669, %v4668
    %v4693 = vpack.c.bf16 %v4671, %v4670
    %v4694 = vpack.c.bf16 %v4673, %v4672
    %v4695 = vpack.c.bf16 %v4675, %v4674
    %v4696 = vpack.c.bf16 %v4677, %v4676
    %v4697 = vpack.c.bf16 %v4679, %v4678
    %v4698 = vpack.c.bf16 %v4681, %v4680
    %v4699 = vpack.c.bf16 %v4683, %v4682
    %v4700 = vld [vmem:[%s0 + $0x28] sm:$0xff]
    %v4701 = vld [vmem:[%s0 + $0x60] sm:$0xff]
    %v4702 = vld [vmem:[%s0 + $0x98] sm:$0xff]
    %v4703 = vld [vmem:[%s0 + $0xd0] sm:$0xff]
    %v4704 = vld [vmem:[%s0 + $0x108] sm:$0xff]
    %v4705 = vld [vmem:[%s0 + $0x140] sm:$0xff]
    %v4706 = vld [vmem:[%s0 + $0x178] sm:$0xff]
    %v4707 = vld [vmem:[%s0 + $0x1b0] sm:$0xff]
    %v4708 = vld [vmem:[%s0 + $0x1e8] sm:$0xff]
    %v4709 = vld [vmem:[%s0 + $0x220] sm:$0xff]
    %v4710 = vld [vmem:[%s0 + $0x258] sm:$0xff]
    %v4711 = vld [vmem:[%s0 + $0x290] sm:$0xff]
    %v4712 = vld [vmem:[%s0 + $0x2c8] sm:$0xff]
    %v4713 = vld [vmem:[%s0 + $0x300] sm:$0xff]
    %v4714 = vld [vmem:[%s0 + $0x338] sm:$0xff]
    %v4715 = vld [vmem:[%s0 + $0x370] sm:$0xff]
    %v4716 = vunpack.c.l.bf16 %v4684
    %v4717 = vunpack.c.h.bf16 %v4684
    %v4718 = vunpack.c.l.bf16 %v4685
    %v4719 = vunpack.c.h.bf16 %v4685
    %v4720 = vunpack.c.l.bf16 %v4686
    %v4721 = vunpack.c.h.bf16 %v4686
    %v4722 = vunpack.c.l.bf16 %v4687
    %v4723 = vunpack.c.h.bf16 %v4687
    %v4724 = vunpack.c.l.bf16 %v4688
    %v4725 = vunpack.c.h.bf16 %v4688
    %v4726 = vunpack.c.l.bf16 %v4689
    %v4727 = vunpack.c.h.bf16 %v4689
    %v4728 = vunpack.c.l.bf16 %v4690
    %v4729 = vunpack.c.h.bf16 %v4690
    %v4730 = vunpack.c.l.bf16 %v4691
    %v4731 = vunpack.c.h.bf16 %v4691
    %v4732 = vunpack.c.l.bf16 %v4692
    %v4733 = vunpack.c.h.bf16 %v4692
    %v4734 = vunpack.c.l.bf16 %v4693
    %v4735 = vunpack.c.h.bf16 %v4693
    %v4736 = vunpack.c.l.bf16 %v4694
    %v4737 = vunpack.c.h.bf16 %v4694
    %v4738 = vunpack.c.l.bf16 %v4695
    %v4739 = vunpack.c.h.bf16 %v4695
    %v4740 = vunpack.c.l.bf16 %v4696
    %v4741 = vunpack.c.h.bf16 %v4696
    %v4742 = vunpack.c.l.bf16 %v4697
    %v4743 = vunpack.c.h.bf16 %v4697
    %v4744 = vunpack.c.l.bf16 %v4698
    %v4745 = vunpack.c.h.bf16 %v4698
    %v4746 = vunpack.c.l.bf16 %v4699
    %v4747 = vunpack.c.h.bf16 %v4699
    %v4748 = vunpack.c.l.bf16 %v4700
    %v4749 = vunpack.c.h.bf16 %v4700
    %v4750 = vunpack.c.l.bf16 %v4701
    %v4751 = vunpack.c.h.bf16 %v4701
    %v4752 = vunpack.c.l.bf16 %v4702
    %v4753 = vunpack.c.h.bf16 %v4702
    %v4754 = vunpack.c.l.bf16 %v4703
    %v4755 = vunpack.c.h.bf16 %v4703
    %v4756 = vunpack.c.l.bf16 %v4704
    %v4757 = vunpack.c.h.bf16 %v4704
    %v4758 = vunpack.c.l.bf16 %v4705
    %v4759 = vunpack.c.h.bf16 %v4705
    %v4760 = vunpack.c.l.bf16 %v4706
    %v4761 = vunpack.c.h.bf16 %v4706
    %v4762 = vunpack.c.l.bf16 %v4707
    %v4763 = vunpack.c.h.bf16 %v4707
    %v4764 = vunpack.c.l.bf16 %v4708
    %v4765 = vunpack.c.h.bf16 %v4708
    %v4766 = vunpack.c.l.bf16 %v4709
    %v4767 = vunpack.c.h.bf16 %v4709
    %v4768 = vunpack.c.l.bf16 %v4710
    %v4769 = vunpack.c.h.bf16 %v4710
    %v4770 = vunpack.c.l.bf16 %v4711
    %v4771 = vunpack.c.h.bf16 %v4711
    %v4772 = vunpack.c.l.bf16 %v4712
    %v4773 = vunpack.c.h.bf16 %v4712
    %v4774 = vunpack.c.l.bf16 %v4713
    %v4775 = vunpack.c.h.bf16 %v4713
    %v4776 = vunpack.c.l.bf16 %v4714
    %v4777 = vunpack.c.h.bf16 %v4714
    %v4778 = vunpack.c.l.bf16 %v4715
    %v4779 = vunpack.c.h.bf16 %v4715
    %4812 = vrot.lane.b32.xlu0 %v4748, 64
    %v4813 = vpop.permute.xlu0 %4812
    %4814 = vrot.lane.b32.xlu0 %v4749, 64
    %v4815 = vpop.permute.xlu0 %4814
    %4816 = vrot.lane.b32.xlu0 %v4750, 64
    %v4817 = vpop.permute.xlu0 %4816
    %4818 = vrot.lane.b32.xlu0 %v4751, 64
    %v4819 = vpop.permute.xlu0 %4818
    %4820 = vrot.lane.b32.xlu0 %v4752, 64
    %v4821 = vpop.permute.xlu0 %4820
    %4822 = vrot.lane.b32.xlu0 %v4753, 64
    %v4823 = vpop.permute.xlu0 %4822
    %4824 = vrot.lane.b32.xlu0 %v4754, 64
    %v4825 = vpop.permute.xlu0 %4824
    %4826 = vrot.lane.b32.xlu0 %v4755, 64
    %v4827 = vpop.permute.xlu0 %4826
    %4828 = vrot.lane.b32.xlu0 %v4756, 64
    %v4829 = vpop.permute.xlu0 %4828
    %4830 = vrot.lane.b32.xlu0 %v4757, 64
    %v4831 = vpop.permute.xlu0 %4830
    %4832 = vrot.lane.b32.xlu0 %v4758, 64
    %v4833 = vpop.permute.xlu0 %4832
    %4834 = vrot.lane.b32.xlu0 %v4759, 64
    %v4835 = vpop.permute.xlu0 %4834
    %4836 = vrot.lane.b32.xlu0 %v4760, 64
    %v4837 = vpop.permute.xlu0 %4836
    %4838 = vrot.lane.b32.xlu0 %v4761, 64
    %v4839 = vpop.permute.xlu0 %4838
    %4840 = vrot.lane.b32.xlu0 %v4762, 64
    %v4841 = vpop.permute.xlu0 %4840
    %4842 = vrot.lane.b32.xlu0 %v4763, 64
    %v4843 = vpop.permute.xlu0 %4842
    %4844 = vrot.lane.b32.xlu0 %v4764, 64
    %v4845 = vpop.permute.xlu0 %4844
    %4846 = vrot.lane.b32.xlu0 %v4765, 64
    %v4847 = vpop.permute.xlu0 %4846
    %4848 = vrot.lane.b32.xlu0 %v4766, 64
    %v4849 = vpop.permute.xlu0 %4848
    %4850 = vrot.lane.b32.xlu0 %v4767, 64
    %v4851 = vpop.permute.xlu0 %4850
    %4852 = vrot.lane.b32.xlu0 %v4768, 64
    %v4853 = vpop.permute.xlu0 %4852
    %4854 = vrot.lane.b32.xlu0 %v4769, 64
    %v4855 = vpop.permute.xlu0 %4854
    %4856 = vrot.lane.b32.xlu0 %v4770, 64
    %v4857 = vpop.permute.xlu0 %4856
    %4858 = vrot.lane.b32.xlu0 %v4771, 64
    %v4859 = vpop.permute.xlu0 %4858
    %4860 = vrot.lane.b32.xlu0 %v4772, 64
    %v4861 = vpop.permute.xlu0 %4860
    %4862 = vrot.lane.b32.xlu0 %v4773, 64
    %v4863 = vpop.permute.xlu0 %4862
    %4864 = vrot.lane.b32.xlu0 %v4774, 64
    %v4865 = vpop.permute.xlu0 %4864
    %4866 = vrot.lane.b32.xlu0 %v4775, 64
    %v4867 = vpop.permute.xlu0 %4866
    %4868 = vrot.lane.b32.xlu0 %v4776, 64
    %v4869 = vpop.permute.xlu0 %4868
    %4870 = vrot.lane.b32.xlu0 %v4777, 64
    %v4871 = vpop.permute.xlu0 %4870
    %4872 = vrot.lane.b32.xlu0 %v4778, 64
    %v4873 = vpop.permute.xlu0 %4872
    %4874 = vrot.lane.b32.xlu0 %v4779, 64
    %v4875 = vpop.permute.xlu0 %4874
    %v4876 = vsel %vm1979, %v4813, %v4815
    %v4877 = vsel %vm1979, %v4817, %v4819
    %v4878 = vsel %vm1979, %v4821, %v4823
    %v4879 = vsel %vm1979, %v4825, %v4827
    %v4880 = vsel %vm1979, %v4829, %v4831
    %v4881 = vsel %vm1979, %v4833, %v4835
    %v4882 = vsel %vm1979, %v4837, %v4839
    %v4883 = vsel %vm1979, %v4841, %v4843
    %v4884 = vsel %vm1979, %v4845, %v4847
    %v4885 = vsel %vm1979, %v4849, %v4851
    %v4886 = vsel %vm1979, %v4853, %v4855
    %v4887 = vsel %vm1979, %v4857, %v4859
    %v4888 = vsel %vm1979, %v4861, %v4863
    %v4889 = vsel %vm1979, %v4865, %v4867
    %v4890 = vsel %vm1979, %v4869, %v4871
    %v4891 = vsel %vm1979, %v4873, %v4875
    %v4924 = vmax.f32 %v4716, %v4876
    %v4925 = vmax.f32 %v4717, %v4815
    %v4926 = vmax.f32 %v4718, %v4877
    %v4927 = vmax.f32 %v4719, %v4819
    %v4928 = vmax.f32 %v4720, %v4878
    %v4929 = vmax.f32 %v4721, %v4823
    %v4930 = vmax.f32 %v4722, %v4879
    %v4931 = vmax.f32 %v4723, %v4827
    %v4932 = vmax.f32 %v4724, %v4880
    %v4933 = vmax.f32 %v4725, %v4831
    %v4934 = vmax.f32 %v4726, %v4881
    %v4935 = vmax.f32 %v4727, %v4835
    %v4936 = vmax.f32 %v4728, %v4882
    %v4937 = vmax.f32 %v4729, %v4839
    %v4938 = vmax.f32 %v4730, %v4883
    %v4939 = vmax.f32 %v4731, %v4843
    %v4940 = vmax.f32 %v4732, %v4884
    %v4941 = vmax.f32 %v4733, %v4847
    %v4942 = vmax.f32 %v4734, %v4885
    %v4943 = vmax.f32 %v4735, %v4851
    %v4944 = vmax.f32 %v4736, %v4886
    %v4945 = vmax.f32 %v4737, %v4855
    %v4946 = vmax.f32 %v4738, %v4887
    %v4947 = vmax.f32 %v4739, %v4859
    %v4948 = vmax.f32 %v4740, %v4888
    %v4949 = vmax.f32 %v4741, %v4863
    %v4950 = vmax.f32 %v4742, %v4889
    %v4951 = vmax.f32 %v4743, %v4867
    %v4952 = vmax.f32 %v4744, %v4890
    %v4953 = vmax.f32 %v4745, %v4871
    %v4954 = vmax.f32 %v4746, %v4891
    %v4955 = vmax.f32 %v4747, %v4875
    %v4956 = vpack.c.bf16 %v4925, %v4924
    %v4957 = vpack.c.bf16 %v4927, %v4926
    %v4958 = vpack.c.bf16 %v4929, %v4928
    %v4959 = vpack.c.bf16 %v4931, %v4930
    %v4960 = vpack.c.bf16 %v4933, %v4932
    %v4961 = vpack.c.bf16 %v4935, %v4934
    %v4962 = vpack.c.bf16 %v4937, %v4936
    %v4963 = vpack.c.bf16 %v4939, %v4938
    %v4964 = vpack.c.bf16 %v4941, %v4940
    %v4965 = vpack.c.bf16 %v4943, %v4942
    %v4966 = vpack.c.bf16 %v4945, %v4944
    %v4967 = vpack.c.bf16 %v4947, %v4946
    %v4968 = vpack.c.bf16 %v4949, %v4948
    %v4969 = vpack.c.bf16 %v4951, %v4950
    %v4970 = vpack.c.bf16 %v4953, %v4952
    %v4971 = vpack.c.bf16 %v4955, %v4954
    %v4972 = vunpack.c.l.bf16 %v4956
    %v4973 = vunpack.c.h.bf16 %v4956
    %v4974 = vunpack.c.l.bf16 %v4957
    %v4975 = vunpack.c.h.bf16 %v4957
    %v4976 = vunpack.c.l.bf16 %v4958
    %v4977 = vunpack.c.h.bf16 %v4958
    %v4978 = vunpack.c.l.bf16 %v4959
    %v4979 = vunpack.c.h.bf16 %v4959
    %v4980 = vunpack.c.l.bf16 %v4960
    %v4981 = vunpack.c.h.bf16 %v4960
    %v4982 = vunpack.c.l.bf16 %v4961
    %v4983 = vunpack.c.h.bf16 %v4961
    %v4984 = vunpack.c.l.bf16 %v4962
    %v4985 = vunpack.c.h.bf16 %v4962
    %v4986 = vunpack.c.l.bf16 %v4963
    %v4987 = vunpack.c.h.bf16 %v4963
    %v4988 = vunpack.c.l.bf16 %v4964
    %v4989 = vunpack.c.h.bf16 %v4964
    %v4990 = vunpack.c.l.bf16 %v4965
    %v4991 = vunpack.c.h.bf16 %v4965
    %v4992 = vunpack.c.l.bf16 %v4966
    %v4993 = vunpack.c.h.bf16 %v4966
    %v4994 = vunpack.c.l.bf16 %v4967
    %v4995 = vunpack.c.h.bf16 %v4967
    %v4996 = vunpack.c.l.bf16 %v4968
    %v4997 = vunpack.c.h.bf16 %v4968
    %v4998 = vunpack.c.l.bf16 %v4969
    %v4999 = vunpack.c.h.bf16 %v4969
    %v5000 = vunpack.c.l.bf16 %v4970
    %v5001 = vunpack.c.h.bf16 %v4970
    %v5002 = vunpack.c.l.bf16 %v4971
    %v5003 = vunpack.c.h.bf16 %v4971
    %v5004 = vunpack.c.l.bf16 %v25
    %v5005 = vunpack.c.h.bf16 %v25
    %v5006 = vunpack.c.l.bf16 %v32
    %v5007 = vunpack.c.h.bf16 %v32
    %v5008 = vunpack.c.l.bf16 %v39
    %v5009 = vunpack.c.h.bf16 %v39
    %v5010 = vunpack.c.l.bf16 %v46
    %v5011 = vunpack.c.h.bf16 %v46
    %v5012 = vunpack.c.l.bf16 %v53
    %v5013 = vunpack.c.h.bf16 %v53
    %v5014 = vunpack.c.l.bf16 %v60
    %v5015 = vunpack.c.h.bf16 %v60
    %v5016 = vunpack.c.l.bf16 %v67
    %v5017 = vunpack.c.h.bf16 %v67
    %v5018 = vunpack.c.l.bf16 %v74
    %v5019 = vunpack.c.h.bf16 %v74
    %v5020 = vunpack.c.l.bf16 %v81
    %v5021 = vunpack.c.h.bf16 %v81
    %v5022 = vunpack.c.l.bf16 %v88
    %v5023 = vunpack.c.h.bf16 %v88
    %v5024 = vunpack.c.l.bf16 %v95
    %v5025 = vunpack.c.h.bf16 %v95
    %v5026 = vunpack.c.l.bf16 %v102
    %v5027 = vunpack.c.h.bf16 %v102
    %v5028 = vunpack.c.l.bf16 %v109
    %v5029 = vunpack.c.h.bf16 %v109
    %v5030 = vunpack.c.l.bf16 %v116
    %v5031 = vunpack.c.h.bf16 %v116
    %v5032 = vunpack.c.l.bf16 %v123
    %v5033 = vunpack.c.h.bf16 %v123
    %v5034 = vunpack.c.l.bf16 %v130
    %v5035 = vunpack.c.h.bf16 %v130
    %v5036 = vmax.f32 %v4972, %v5004
    %v5037 = vmax.f32 %v4973, %v5005
    %v5038 = vmax.f32 %v4974, %v5006
    %v5039 = vmax.f32 %v4975, %v5007
    %v5040 = vmax.f32 %v4976, %v5008
    %v5041 = vmax.f32 %v4977, %v5009
    %v5042 = vmax.f32 %v4978, %v5010
    %v5043 = vmax.f32 %v4979, %v5011
    %v5044 = vmax.f32 %v4980, %v5012
    %v5045 = vmax.f32 %v4981, %v5013
    %v5046 = vmax.f32 %v4982, %v5014
    %v5047 = vmax.f32 %v4983, %v5015
    %v5048 = vmax.f32 %v4984, %v5016
    %v5049 = vmax.f32 %v4985, %v5017
    %v5050 = vmax.f32 %v4986, %v5018
    %v5051 = vmax.f32 %v4987, %v5019
    %v5052 = vmax.f32 %v4988, %v5020
    %v5053 = vmax.f32 %v4989, %v5021
    %v5054 = vmax.f32 %v4990, %v5022
    %v5055 = vmax.f32 %v4991, %v5023
    %v5056 = vmax.f32 %v4992, %v5024
    %v5057 = vmax.f32 %v4993, %v5025
    %v5058 = vmax.f32 %v4994, %v5026
    %v5059 = vmax.f32 %v4995, %v5027
    %v5060 = vmax.f32 %v4996, %v5028
    %v5061 = vmax.f32 %v4997, %v5029
    %v5062 = vmax.f32 %v4998, %v5030
    %v5063 = vmax.f32 %v4999, %v5031
    %v5064 = vmax.f32 %v5000, %v5032
    %v5065 = vmax.f32 %v5001, %v5033
    %v5066 = vmax.f32 %v5002, %v5034
    %v5067 = vmax.f32 %v5003, %v5035
    %v5068 = vpack.c.bf16 %v5037, %v5036
    %v5069 = vpack.c.bf16 %v5039, %v5038
    %v5070 = vpack.c.bf16 %v5041, %v5040
    %v5071 = vpack.c.bf16 %v5043, %v5042
    %v5072 = vpack.c.bf16 %v5045, %v5044
    %v5073 = vpack.c.bf16 %v5047, %v5046
    %v5074 = vpack.c.bf16 %v5049, %v5048
    %v5075 = vpack.c.bf16 %v5051, %v5050
    %v5076 = vpack.c.bf16 %v5053, %v5052
    %v5077 = vpack.c.bf16 %v5055, %v5054
    %v5078 = vpack.c.bf16 %v5057, %v5056
    %v5079 = vpack.c.bf16 %v5059, %v5058
    %v5080 = vpack.c.bf16 %v5061, %v5060
    %v5081 = vpack.c.bf16 %v5063, %v5062
    %v5082 = vpack.c.bf16 %v5065, %v5064
    %v5083 = vpack.c.bf16 %v5067, %v5066
    %v5084 = vunpack.c.l.bf16 %v5068
    %v5085 = vunpack.c.h.bf16 %v5068
    %v5086 = vunpack.c.l.bf16 %v5069
    %v5087 = vunpack.c.h.bf16 %v5069
    %v5088 = vunpack.c.l.bf16 %v5070
    %v5089 = vunpack.c.h.bf16 %v5070
    %v5090 = vunpack.c.l.bf16 %v5071
    %v5091 = vunpack.c.h.bf16 %v5071
    %v5092 = vunpack.c.l.bf16 %v5072
    %v5093 = vunpack.c.h.bf16 %v5072
    %v5094 = vunpack.c.l.bf16 %v5073
    %v5095 = vunpack.c.h.bf16 %v5073
    %v5096 = vunpack.c.l.bf16 %v5074
    %v5097 = vunpack.c.h.bf16 %v5074
    %v5098 = vunpack.c.l.bf16 %v5075
    %v5099 = vunpack.c.h.bf16 %v5075
    %v5100 = vunpack.c.l.bf16 %v5076
    %v5101 = vunpack.c.h.bf16 %v5076
    %v5102 = vunpack.c.l.bf16 %v5077
    %v5103 = vunpack.c.h.bf16 %v5077
    %v5104 = vunpack.c.l.bf16 %v5078
    %v5105 = vunpack.c.h.bf16 %v5078
    %v5106 = vunpack.c.l.bf16 %v5079
    %v5107 = vunpack.c.h.bf16 %v5079
    %v5108 = vunpack.c.l.bf16 %v5080
    %v5109 = vunpack.c.h.bf16 %v5080
    %v5110 = vunpack.c.l.bf16 %v5081
    %v5111 = vunpack.c.h.bf16 %v5081
    %v5112 = vunpack.c.l.bf16 %v5082
    %v5113 = vunpack.c.h.bf16 %v5082
    %v5114 = vunpack.c.l.bf16 %v5083
    %v5115 = vunpack.c.h.bf16 %v5083
    %5148 = vrot.lane.b32.xlu0 %v5084, 64
    %v5149 = vpop.permute.xlu0 %5148
    %5150 = vrot.lane.b32.xlu0 %v5085, 64
    %v5151 = vpop.permute.xlu0 %5150
    %5152 = vrot.lane.b32.xlu0 %v5086, 64
    %v5153 = vpop.permute.xlu0 %5152
    %5154 = vrot.lane.b32.xlu0 %v5087, 64
    %v5155 = vpop.permute.xlu0 %5154
    %5156 = vrot.lane.b32.xlu0 %v5088, 64
    %v5157 = vpop.permute.xlu0 %5156
    %5158 = vrot.lane.b32.xlu0 %v5089, 64
    %v5159 = vpop.permute.xlu0 %5158
    %5160 = vrot.lane.b32.xlu0 %v5090, 64
    %v5161 = vpop.permute.xlu0 %5160
    %5162 = vrot.lane.b32.xlu0 %v5091, 64
    %v5163 = vpop.permute.xlu0 %5162
    %5164 = vrot.lane.b32.xlu0 %v5092, 64
    %v5165 = vpop.permute.xlu0 %5164
    %5166 = vrot.lane.b32.xlu0 %v5093, 64
    %v5167 = vpop.permute.xlu0 %5166
    %5168 = vrot.lane.b32.xlu0 %v5094, 64
    %v5169 = vpop.permute.xlu0 %5168
    %5170 = vrot.lane.b32.xlu0 %v5095, 64
    %v5171 = vpop.permute.xlu0 %5170
    %5172 = vrot.lane.b32.xlu0 %v5096, 64
    %v5173 = vpop.permute.xlu0 %5172
    %5174 = vrot.lane.b32.xlu0 %v5097, 64
    %v5175 = vpop.permute.xlu0 %5174
    %5176 = vrot.lane.b32.xlu0 %v5098, 64
    %v5177 = vpop.permute.xlu0 %5176
    %5178 = vrot.lane.b32.xlu0 %v5099, 64
    %v5179 = vpop.permute.xlu0 %5178
    %5180 = vrot.lane.b32.xlu0 %v5100, 64
    %v5181 = vpop.permute.xlu0 %5180
    %5182 = vrot.lane.b32.xlu0 %v5101, 64
    %v5183 = vpop.permute.xlu0 %5182
    %5184 = vrot.lane.b32.xlu0 %v5102, 64
    %v5185 = vpop.permute.xlu0 %5184
    %5186 = vrot.lane.b32.xlu0 %v5103, 64
    %v5187 = vpop.permute.xlu0 %5186
    %5188 = vrot.lane.b32.xlu0 %v5104, 64
    %v5189 = vpop.permute.xlu0 %5188
    %5190 = vrot.lane.b32.xlu0 %v5105, 64
    %v5191 = vpop.permute.xlu0 %5190
    %5192 = vrot.lane.b32.xlu0 %v5106, 64
    %v5193 = vpop.permute.xlu0 %5192
    %5194 = vrot.lane.b32.xlu0 %v5107, 64
    %v5195 = vpop.permute.xlu0 %5194
    %5196 = vrot.lane.b32.xlu0 %v5108, 64
    %v5197 = vpop.permute.xlu0 %5196
    %5198 = vrot.lane.b32.xlu0 %v5109, 64
    %v5199 = vpop.permute.xlu0 %5198
    %5200 = vrot.lane.b32.xlu0 %v5110, 64
    %v5201 = vpop.permute.xlu0 %5200
    %5202 = vrot.lane.b32.xlu0 %v5111, 64
    %v5203 = vpop.permute.xlu0 %5202
    %5204 = vrot.lane.b32.xlu0 %v5112, 64
    %v5205 = vpop.permute.xlu0 %5204
    %5206 = vrot.lane.b32.xlu0 %v5113, 64
    %v5207 = vpop.permute.xlu0 %5206
    %5208 = vrot.lane.b32.xlu0 %v5114, 64
    %v5209 = vpop.permute.xlu0 %5208
    %5210 = vrot.lane.b32.xlu0 %v5115, 64
    %v5211 = vpop.permute.xlu0 %5210
    %v5212 = vsel %vm1979, %v5149, %v5151
    %v5213 = vsel %vm1979, %v5153, %v5155
    %v5214 = vsel %vm1979, %v5157, %v5159
    %v5215 = vsel %vm1979, %v5161, %v5163
    %v5216 = vsel %vm1979, %v5165, %v5167
    %v5217 = vsel %vm1979, %v5169, %v5171
    %v5218 = vsel %vm1979, %v5173, %v5175
    %v5219 = vsel %vm1979, %v5177, %v5179
    %v5220 = vsel %vm1979, %v5181, %v5183
    %v5221 = vsel %vm1979, %v5185, %v5187
    %v5222 = vsel %vm1979, %v5189, %v5191
    %v5223 = vsel %vm1979, %v5193, %v5195
    %v5224 = vsel %vm1979, %v5197, %v5199
    %v5225 = vsel %vm1979, %v5201, %v5203
    %v5226 = vsel %vm1979, %v5205, %v5207
    %v5227 = vsel %vm1979, %v5209, %v5211
    %v5260 = vsel %vm1979, %v3453, %v5149
    %v5261 = vsel %vm1979, %v3455, %v5153
    %v5262 = vsel %vm1979, %v3457, %v5157
    %v5263 = vsel %vm1979, %v3459, %v5161
    %v5264 = vsel %vm1979, %v3461, %v5165
    %v5265 = vsel %vm1979, %v3463, %v5169
    %v5266 = vsel %vm1979, %v3465, %v5173
    %v5267 = vsel %vm1979, %v3467, %v5177
    %v5268 = vsel %vm1979, %v3469, %v5181
    %v5269 = vsel %vm1979, %v3471, %v5185
    %v5270 = vsel %vm1979, %v3473, %v5189
    %v5271 = vsel %vm1979, %v3475, %v5193
    %v5272 = vsel %vm1979, %v3477, %v5197
    %v5273 = vsel %vm1979, %v3479, %v5201
    %v5274 = vsel %vm1979, %v3481, %v5205
    %v5275 = vsel %vm1979, %v3483, %v5209
    %5276 = vst [vmem:[#allocation2] sm:$0xff] %v3452
    %5277 = vst [vmem:[#allocation2 + $0x8] sm:$0xff] %v5260
    %5278 = vst [vmem:[#allocation2 + $0x10] sm:$0xff] %v5212
    %5279 = vst [vmem:[#allocation2 + $0x18] sm:$0xff] %v3454
    %5280 = vst [vmem:[#allocation2 + $0x20] sm:$0xff] %v5261
    %5281 = vst [vmem:[#allocation2 + $0x28] sm:$0xff] %v5213
    %5282 = vst [vmem:[#allocation2 + $0x30] sm:$0xff] %v3456
    %5283 = vst [vmem:[#allocation2 + $0x38] sm:$0xff] %v5262
    %5284 = vst [vmem:[#allocation2 + $0x40] sm:$0xff] %v5214
    %5285 = vst [vmem:[#allocation2 + $0x48] sm:$0xff] %v3458
    %5286 = vst [vmem:[#allocation2 + $0x50] sm:$0xff] %v5263
    %5287 = vst [vmem:[#allocation2 + $0x58] sm:$0xff] %v5215
    %5288 = vst [vmem:[#allocation2 + $0x60] sm:$0xff] %v3460
    %5289 = vst [vmem:[#allocation2 + $0x68] sm:$0xff] %v5264
    %5290 = vst [vmem:[#allocation2 + $0x70] sm:$0xff] %v5216
    %5291 = vst [vmem:[#allocation2 + $0x78] sm:$0xff] %v3462
    %5292 = vst [vmem:[#allocation2 + $0x80] sm:$0xff] %v5265
    %5293 = vst [vmem:[#allocation2 + $0x88] sm:$0xff] %v5217
    %5294 = vst [vmem:[#allocation2 + $0x90] sm:$0xff] %v3464
    %5295 = vst [vmem:[#allocation2 + $0x98] sm:$0xff] %v5266
    %5296 = vst [vmem:[#allocation2 + $0xa0] sm:$0xff] %v5218
    %5297 = vst [vmem:[#allocation2 + $0xa8] sm:$0xff] %v3466
    %5298 = vst [vmem:[#allocation2 + $0xb0] sm:$0xff] %v5267
    %5299 = vst [vmem:[#allocation2 + $0xb8] sm:$0xff] %v5219
    %5300 = vst [vmem:[#allocation2 + $0xc0] sm:$0xff] %v3468
    %5301 = vst [vmem:[#allocation2 + $0xc8] sm:$0xff] %v5268
    %5302 = vst [vmem:[#allocation2 + $0xd0] sm:$0xff] %v5220
    %5303 = vst [vmem:[#allocation2 + $0xd8] sm:$0xff] %v3470
    %5304 = vst [vmem:[#allocation2 + $0xe0] sm:$0xff] %v5269
    %5305 = vst [vmem:[#allocation2 + $0xe8] sm:$0xff] %v5221
    %5306 = vst [vmem:[#allocation2 + $0xf0] sm:$0xff] %v3472
    %5307 = vst [vmem:[#allocation2 + $0xf8] sm:$0xff] %v5270
    %5308 = vst [vmem:[#allocation2 + $0x100] sm:$0xff] %v5222
    %5309 = vst [vmem:[#allocation2 + $0x108] sm:$0xff] %v3474
    %5310 = vst [vmem:[#allocation2 + $0x110] sm:$0xff] %v5271
    %5311 = vst [vmem:[#allocation2 + $0x118] sm:$0xff] %v5223
    %5312 = vst [vmem:[#allocation2 + $0x120] sm:$0xff] %v3476
    %5313 = vst [vmem:[#allocation2 + $0x128] sm:$0xff] %v5272
    %5314 = vst [vmem:[#allocation2 + $0x130] sm:$0xff] %v5224
    %5315 = vst [vmem:[#allocation2 + $0x138] sm:$0xff] %v3478
    %5316 = vst [vmem:[#allocation2 + $0x140] sm:$0xff] %v5273
    %5317 = vst [vmem:[#allocation2 + $0x148] sm:$0xff] %v5225
    %5318 = vst [vmem:[#allocation2 + $0x150] sm:$0xff] %v3480
    %5319 = vst [vmem:[#allocation2 + $0x158] sm:$0xff] %v5274
    %5320 = vst [vmem:[#allocation2 + $0x160] sm:$0xff] %v5226
    %5321 = vst [vmem:[#allocation2 + $0x168] sm:$0xff] %v3482
    %5322 = vst [vmem:[#allocation2 + $0x170] sm:$0xff] %v5275
    %5323 = vst [vmem:[#allocation2 + $0x178] sm:$0xff] %v5227
    // Predicated region
    $region18: #{tpu_custom_call.1} parent=1 // pred_check
      _
    $region19: #{tpu_custom_call.1} parent=1 // pred_check_branch
      %5325 = sbr.rel (0) target = $region21
    $region20: #{tpu_custom_call.1} parent=1 // pred_region
      %5327 = vsyncadd [#allocation3], 0
      %s5328 = sshll.u32 [#allocation2], 4
      %s5329 = int_to_ptr.vmem [resolvable:$true] %s5328
      %s5330 = sshll.u32 %s4, 4
      %s5331 = int_to_ptr.hbm [resolvable:$true] %s5330
      %5336 = dma.vmem_to_hbm [thread:$0]  %s5329, 6144, %s5331, [#allocation3], 384, 384, 24
    $region21: #{tpu_custom_call.1} parent=1 // pred_fallthru
      _
    // Predicated region
    $region22: #{tpu_custom_call.1} parent=1 // pred_check
      _
    $region23: #{tpu_custom_call.1} parent=1 // pred_check_branch
      %5338 = sbr.rel (0) target = $region25
    $region24: #{tpu_custom_call.1} parent=1 // pred_region
      %5340 = dma.done [#allocation3], 6144
    $region25: #{tpu_custom_call.1} parent=1 // pred_fallthru
      _
    %5341 = vsyncpa [#allocation3], 1

</llo_original>
